<compile_context>
chip_gen: v7x
topology: tpu7x:2x2x1
jax: 0.10.0
libtpu: 0.0.40
codegen_flags: <defaults>
</compile_context>

<pallas_src>
import functools

import numpy as np
import jax
import jax.numpy as jnp
from jax import random
from jax.experimental import pallas as pl
from jax.experimental.pallas import tpu as pltpu

# ---- small synthetic configuration ----
N, H, W = 2, 16, 16
P = H * W
NB = 8              # message bits
CH = 16             # encoder hidden channels
SCALING_I = 1.0
SCALING_W = 1.5
SCALE_CHANNELS = True

MAX_NPL = 8192      # target lane width per grid step (multiple of 128)

# fixed JND convolution kernels (attenuations.JND)
KERNEL_X = [[-1., 0., 1.], [-2., 0., 2.], [-1., 0., 1.]]
KERNEL_Y = [[1., 2., 1.], [0., 0., 0.], [-1., -2., -1.]]
KERNEL_LUM = [[1., 1., 1., 1., 1.],
              [1., 2., 2., 2., 1.],
              [1., 2., 0., 2., 1.],
              [1., 2., 2., 2., 1.],
              [1., 1., 1., 1., 1.]]

# 3x3 tap order == PyTorch kernel index ky*3+kx with (dy,dx)=(ky-1,kx-1)
TAPS3 = [(dy, dx) for dy in (-1, 0, 1) for dx in (-1, 0, 1)]

K_IMG = 4 * 9                 # fused im2col rows: (r,g,b,gray) per 3x3 tap
K_HID = 9 * CH + 9 * NB       # conv3 im2col rows: features + masked message
M13 = 2 * CH + 3              # fused first-dot rows: conv1, conv3-img, la/gx/gy


def _choose_bblk(n):
    """Largest batch block whose lane width fits MAX_NPL, keeping >=2 grid
    steps when the batch allows it (v7x megacore)."""
    best = 1
    for d in range(1, n + 1):
        if n % d == 0 and d * P <= MAX_NPL:
            best = d
    if n // best < 2:
        cands = [d for d in range(1, n)
                 if n % d == 0 and n // d >= 2 and d * P <= MAX_NPL]
        if cands:
            best = max(cands)
    return best


def _build_masks(bblk):
    """masks[t, n*P + y*W + x] = 1 iff (y+dy, x+dx) is inside the image,
    t = (dy+2)*5 + (dx+2), dy,dx in [-2,2].  Encodes the conv zero padding."""
    m = np.zeros((25, P), np.float32)
    for dy in range(-2, 3):
        for dx in range(-2, 3):
            t = (dy + 2) * 5 + (dx + 2)
            for y in range(H):
                if not (0 <= y + dy < H):
                    continue
                for x in range(W):
                    if 0 <= x + dx < W:
                        m[t, y * W + x] = 1.0
    return jnp.asarray(np.tile(m, (1, bblk)))          # (25, bblk*P)


def _encoder_jnd_kernel(img_ref, msgb_ref, mask_ref,
                        w13i_ref, b1_ref, w2_ref, b2_ref,
                        w3fm_ref, b3_ref, w4_ref, b4_ref,
                        out_ref, xi_ref, xh_ref, *, npl):
    img4 = img_ref[...]                                  # (4, npl) f32: r,g,b,255*gray

    def shift(x, dy, dx):
        # zero-padded spatial shift on the flattened (batch-folded) pixel axis:
        # out[.., y*W+x'] = x[.., (y+dy)*W + (x'+dx)] inside the image, else 0.
        # (circular wrap from the roll only lands on masked positions)
        if dy == 0 and dx == 0:
            return x
        t25 = (dy + 2) * 5 + (dx + 2)
        k = dy * W + dx
        r = pltpu.roll(x, (-k) % npl, axis=1)
        return r * mask_ref[pl.ds(t25, 1), :]

    # ---- im2col of [r,g,b,gray]: rows 4*t + c, cast to bf16 at the store ----
    for t9, (dy, dx) in enumerate(TAPS3):
        xi_ref[pl.ds(4 * t9, 4), :] = shift(img4, dy, dx).astype(jnp.bfloat16)

    # ---- fused dot: conv1, conv3 image branch, inner-3x3 JND rows ----
    y = jnp.dot(w13i_ref[...], xi_ref[...],
                preferred_element_type=jnp.float32)      # (M13, npl) f32
    f1 = jnp.maximum(y[0:CH, :] + b1_ref[...], 0.0)
    acc3 = y[CH:2 * CH, :]                               # conv3 image branch (gamma folded)
    la = y[2 * CH:2 * CH + 1, :]                         # inner 3x3 luminance taps
    gx = y[2 * CH + 1:2 * CH + 2, :]
    gy = y[2 * CH + 2:2 * CH + 3, :]

    # ---- conv2: im2col of f1 (rows CH*t + c), one K=144 dot ----
    for t9, (dy, dx) in enumerate(TAPS3):
        xh_ref[pl.ds(CH * t9, CH), :] = shift(f1, dy, dx).astype(jnp.bfloat16)
    f2 = jnp.maximum(
        jnp.dot(w2_ref[...], xh_ref[pl.ds(0, 9 * CH), :],
                preferred_element_type=jnp.float32) + b2_ref[...], 0.0)

    # ---- conv3: f2 im2col reuses rows 0..9CH-1; the spatially-constant
    #      message (masked per tap) fills rows 9CH..; one K=216 dot covers
    #      the feature and message branches together ----
    msgv = msgb_ref[...]                                 # (NB, npl) f32
    for t9, (dy, dx) in enumerate(TAPS3):
        xh_ref[pl.ds(CH * t9, CH), :] = shift(f2, dy, dx).astype(jnp.bfloat16)
        t25 = (dy + 2) * 5 + (dx + 2)
        xh_ref[pl.ds(9 * CH + NB * t9, NB), :] = (
            msgv * mask_ref[pl.ds(t25, 1), :]).astype(jnp.bfloat16)
    f3 = jnp.maximum(
        acc3 + jnp.dot(w3fm_ref[...], xh_ref[...],
                       preferred_element_type=jnp.float32) + b3_ref[...], 0.0)

    # ---- final 1x1 conv (aas channel scaling & scaling_w folded into w4/b4) ----
    deltas = jnp.dot(w4_ref[...], f3.astype(jnp.bfloat16),
                     preferred_element_type=jnp.float32) + b4_ref[...]   # (3, npl)

    # ---- JND heatmap: outer ring of the 5x5 luminance kernel (weights 1.0);
    #      inner taps / gradients already came out of the fused dot ----
    gray = img_ref[pl.ds(3, 1), :]                       # (1, npl), 255-scaled
    for dy in range(-2, 3):
        for dx in range(-2, 3):
            if max(abs(dy), abs(dx)) < 2:
                continue                                 # handled by the fused dot
            if KERNEL_LUM[dy + 2][dx + 2] == 0.0:
                continue                                 # (all outer weights are 1.0)
            la = la + shift(gray, dy, dx)

    # luminance masking (alpha = 1, eps = 1e-3)
    la = la * (1.0 / 32.0)
    la = jnp.where(la <= 127.0,
                   17.0 * (1.0 - jnp.sqrt(la / 127.0 + 1e-3)) + 3.0,
                   (3.0 / 128.0) * (la - 127.0) + 3.0)
    # contrast masking (beta = 0.117)
    cmm = jnp.sqrt(gx * gx + gy * gy)
    cm24 = jnp.exp(2.4 * jnp.log(jnp.maximum(cmm, 1e-12)))
    cm24 = jnp.where(cmm > 0.0, cm24, 0.0)               # matches pow(0., 2.4) == 0
    cm = 0.117 * (16.0 * cm24 / (cmm * cmm + 26.0 ** 2))
    heat = (la + cm - 0.3 * jnp.minimum(la, cm)) * (1.0 / 255.0)         # (1, npl)

    # ---- blend: imgs_w = si*imgs + (sw*aas folded) deltas * heat ----
    out_ref[...] = SCALING_I * img_ref[pl.ds(0, 3), :] + deltas * heat


def init_params(key):
    ks = random.split(key, 12)
    sd = 0.1
    return dict(
        w1=sd * random.normal(ks[0], (9, 3, CH), jnp.float32),
        g1=1.0 + 0.05 * random.normal(ks[1], (1, CH), jnp.float32),
        b1=0.05 * random.normal(ks[2], (1, CH), jnp.float32),
        w2=sd * random.normal(ks[3], (9, CH, CH), jnp.float32),
        g2=1.0 + 0.05 * random.normal(ks[4], (1, CH), jnp.float32),
        b2=0.05 * random.normal(ks[5], (1, CH), jnp.float32),
        w3m=sd * random.normal(ks[6], (9, NB, CH), jnp.float32),
        w3f=sd * random.normal(ks[7], (9, CH, CH), jnp.float32),
        w3i=sd * random.normal(ks[8], (9, 3, CH), jnp.float32),
        g3=1.0 + 0.05 * random.normal(ks[9], (1, CH), jnp.float32),
        b3=0.05 * random.normal(ks[10], (1, CH), jnp.float32),
        w4=sd * random.normal(ks[11], (CH, 3), jnp.float32),
        b4=jnp.zeros((1, 3), jnp.float32),
    )


def _pack_params(params):
    """Host-side weight folding: per-channel gammas into conv weights,
    aas*scaling_w into w4/b4, im2col stacking, inner-JND rows appended to the
    fused first-dot weight, message weights appended to the conv3 weight."""
    aa = 1.0 / 4.6
    if SCALE_CHANNELS:
        aas = jnp.asarray([aa / 0.299, aa / 0.587, aa / 0.114], jnp.float32)
    else:
        aas = jnp.ones((3,), jnp.float32)

    g1 = params["g1"].reshape(1, 1, CH)
    g2 = params["g2"].reshape(1, 1, CH)
    g3 = params["g3"].reshape(1, 1, CH)

    # fused first dot: columns 4*t + c, c in {r, g, b, gray(zero for convs)}
    w1s = jnp.transpose(params["w1"] * g1, (2, 0, 1))                 # (CH, 9, 3)
    w1s = jnp.pad(w1s, ((0, 0), (0, 0), (0, 1))).reshape(CH, K_IMG)
    w3is = jnp.transpose(params["w3i"] * g3, (2, 0, 1))
    w3is = jnp.pad(w3is, ((0, 0), (0, 0), (0, 1))).reshape(CH, K_IMG)
    # JND inner-tap rows (la_inner, gx, gy) act only on the gray column (c=3)
    jrows = np.zeros((3, 9, 4), np.float32)
    for t9, (dy, dx) in enumerate(TAPS3):
        jrows[0, t9, 3] = KERNEL_LUM[dy + 2][dx + 2]
        jrows[1, t9, 3] = KERNEL_X[dy + 1][dx + 1]
        jrows[2, t9, 3] = KERNEL_Y[dy + 1][dx + 1]
    jrows = jnp.asarray(jrows.reshape(3, K_IMG))
    w13i = jnp.concatenate([w1s, w3is, jrows], axis=0).astype(jnp.bfloat16)  # (M13, K_IMG)

    # conv2 weights: columns t*CH + ci
    w2s = jnp.transpose(params["w2"] * g2, (2, 0, 1)).reshape(CH, 9 * CH).astype(jnp.bfloat16)
    # conv3: feature columns t*CH + ci, then message columns 9*CH + t*NB + mb
    w3fs = jnp.transpose(params["w3f"] * g3, (2, 0, 1)).reshape(CH, 9 * CH)
    w3ms = jnp.transpose(params["w3m"] * g3, (2, 0, 1)).reshape(CH, 9 * NB)
    w3fm = jnp.concatenate([w3fs, w3ms], axis=1).astype(jnp.bfloat16)  # (CH, K_HID)

    w4p = (params["w4"] * (aas * SCALING_W)[None, :]).T.astype(jnp.bfloat16)   # (3, CH)
    b4p = (params["b4"].reshape(3) * aas * SCALING_W).reshape(3, 1)

    return dict(
        w13i=w13i, b1=params["b1"].reshape(CH, 1),
        w2=w2s, b2=params["b2"].reshape(CH, 1),
        w3fm=w3fm, b3=params["b3"].reshape(CH, 1),
        w4=w4p, b4=b4p)


def encoder_with_jnd_forward(imgs_nchw, msgs, params):
    n = imgs_nchw.shape[0]
    bblk = _choose_bblk(n)
    npl = bblk * P                      # lanes per grid step (multiple of 128)
    pk = _pack_params(params)

    # channels-on-sublane, pixels-on-lane; row 3 carries the 255-scaled gray
    imgs_cp = jnp.transpose(imgs_nchw, (1, 0, 2, 3)).reshape(3, n * P)
    gray = 255.0 * (0.299 * imgs_cp[0:1] + 0.587 * imgs_cp[1:2] + 0.114 * imgs_cp[2:3])
    img4 = jnp.concatenate([imgs_cp, gray], axis=0)                   # (4, n*P) f32
    # message broadcast over the pixels of its own image (data layout only)
    msgb = jnp.repeat(jnp.transpose(msgs), P, axis=1)                 # (NB, n*P) f32
    masks = _build_masks(bblk)                                        # (25, npl) f32

    def bspec(rows):
        return pl.BlockSpec((rows, npl), lambda blk: (0, blk))

    def cspec(shape):
        nd = len(shape)
        return pl.BlockSpec(shape, lambda blk, _nd=nd: (0,) * _nd)

    kernel = functools.partial(_encoder_jnd_kernel, npl=npl)

    out2d = pl.pallas_call(
        kernel,
        out_shape=jax.ShapeDtypeStruct((3, n * P), jnp.float32),
        grid_spec=pltpu.PrefetchScalarGridSpec(
            num_scalar_prefetch=0,
            grid=(n // bblk,),
            in_specs=[
                bspec(4),                      # [r, g, b, gray] (f32)
                bspec(NB),                     # message broadcast (f32)
                cspec((25, npl)),              # border masks (grid-invariant)
                cspec((M13, K_IMG)), cspec((CH, 1)),      # w13i, b1
                cspec((CH, 9 * CH)), cspec((CH, 1)),      # w2, b2
                cspec((CH, K_HID)), cspec((CH, 1)),       # w3fm, b3
                cspec((3, CH)), cspec((3, 1)),            # w4', b4'
            ],
            out_specs=pl.BlockSpec((3, npl), lambda blk: (0, blk)),
            scratch_shapes=[
                pltpu.VMEM((K_IMG, npl), jnp.bfloat16),   # image im2col (bf16)
                pltpu.VMEM((K_HID, npl), jnp.bfloat16),   # hidden im2col + msg (bf16)
            ]),
        compiler_params=pltpu.CompilerParams(
            dimension_semantics=("parallel",)),
    )(img4, msgb, masks,
      pk["w13i"], pk["b1"], pk["w2"], pk["b2"],
      pk["w3fm"], pk["b3"], pk["w4"], pk["b4"])

    return jnp.transpose(out2d.reshape(3, n, H, W), (1, 0, 2, 3))     # back to NCHW


if __name__ == "__main__":
    key = jax.random.PRNGKey(0)
    k_img, k_msg, k_par = random.split(key, 3)
    imgs = random.uniform(k_img, (N, 3, H, W), jnp.float32)           # NCHW in [0,1]
    msgs = 2.0 * random.bernoulli(k_msg, 0.5, (N, NB)).astype(jnp.float32) - 1.0
    params = init_params(k_par)

    fwd = jax.jit(encoder_with_jnd_forward)
    out = fwd(imgs, msgs, params)
    jax.block_until_ready(out)
    assert out.shape == (N, 3, H, W) and out.dtype == jnp.float32
    assert bool(jnp.all(jnp.isfinite(out)))
    print("KERNEL_OK")
</pallas_src>

<mosaic_0001>
module attributes {stable_mosaic.version = 11 : i64} {
  func.func @_encoder_jnd_kernel(%arg0: i32, %arg1: memref<4x256xf32, #tpu.memory_space<vmem>>, %arg2: memref<8x256xf32, #tpu.memory_space<vmem>>, %arg3: memref<25x256xf32, #tpu.memory_space<vmem>>, %arg4: memref<35x36xbf16, #tpu.memory_space<vmem>>, %arg5: memref<16x1xf32, #tpu.memory_space<vmem>>, %arg6: memref<16x144xbf16, #tpu.memory_space<vmem>>, %arg7: memref<16x1xf32, #tpu.memory_space<vmem>>, %arg8: memref<16x216xbf16, #tpu.memory_space<vmem>>, %arg9: memref<16x1xf32, #tpu.memory_space<vmem>>, %arg10: memref<3x16xbf16, #tpu.memory_space<vmem>>, %arg11: memref<3x1xf32, #tpu.memory_space<vmem>>, %arg12: memref<3x256xf32, #tpu.memory_space<vmem>>, %arg13: memref<36x256xbf16, #tpu.memory_space<vmem>>, %arg14: memref<216x256xbf16, #tpu.memory_space<vmem>>) attributes {dimension_semantics = [#tpu.dimension_semantics<parallel>], iteration_bounds = array<i64: 2>, scalar_prefetch = 0 : i64, scratch_operands = 2 : i64, tpu.core_type = #tpu.core_type<tc>, window_params = [{transform_indices = @transform_0, window_bounds = array<i64: 4, 256>}, {transform_indices = @transform_1, window_bounds = array<i64: 8, 256>}, {pipeline_mode = #tpu.pipeline_mode<synchronous>, transform_indices = @transform_2, window_bounds = array<i64: 25, 256>}, {pipeline_mode = #tpu.pipeline_mode<synchronous>, transform_indices = @transform_3, window_bounds = array<i64: 35, 36>}, {pipeline_mode = #tpu.pipeline_mode<synchronous>, transform_indices = @transform_4, window_bounds = array<i64: 16, 1>}, {pipeline_mode = #tpu.pipeline_mode<synchronous>, transform_indices = @transform_5, window_bounds = array<i64: 16, 144>}, {pipeline_mode = #tpu.pipeline_mode<synchronous>, transform_indices = @transform_6, window_bounds = array<i64: 16, 1>}, {pipeline_mode = #tpu.pipeline_mode<synchronous>, transform_indices = @transform_7, window_bounds = array<i64: 16, 216>}, {pipeline_mode = #tpu.pipeline_mode<synchronous>, transform_indices = @transform_8, window_bounds = array<i64: 16, 1>}, {pipeline_mode = #tpu.pipeline_mode<synchronous>, transform_indices = @transform_9, window_bounds = array<i64: 3, 16>}, {pipeline_mode = #tpu.pipeline_mode<synchronous>, transform_indices = @transform_10, window_bounds = array<i64: 3, 1>}, {transform_indices = @transform_11, window_bounds = array<i64: 3, 256>}]} {
    %c0 = arith.constant 0 : index
    %c0_0 = arith.constant 0 : index
    %0 = vector.load %arg1[%c0, %c0_0] : memref<4x256xf32, #tpu.memory_space<vmem>>, vector<4x256xf32>
    %c17_i32 = arith.constant 17 : i32
    %1 = tpu.dynamic_rotate %0 by %c17_i32 dim 1 : vector<4x256xf32>, i32 -> vector<4x256xf32>
    %c6 = arith.constant 6 : index
    %c0_1 = arith.constant 0 : index
    %2 = vector.load %arg3[%c6, %c0_1] : memref<25x256xf32, #tpu.memory_space<vmem>>, vector<1x256xf32>
    %3 = vector.broadcast %2 : vector<1x256xf32> to vector<4x256xf32>
    %4 = arith.mulf %1, %3 : vector<4x256xf32>
    %5 = arith.truncf %4 : vector<4x256xf32> to vector<4x256xbf16>
    %c0_2 = arith.constant 0 : index
    %c0_3 = arith.constant 0 : index
    %6 = vector.load %arg13[%c0_2, %c0_3] : memref<36x256xbf16, #tpu.memory_space<vmem>>, vector<4x256xbf16>
    tpu.vector_store %arg13[%c0_2, %c0_3], %5 {strides = array<i32>} : memref<36x256xbf16, #tpu.memory_space<vmem>>, vector<4x256xbf16>,
    %c16_i32 = arith.constant 16 : i32
    %7 = tpu.dynamic_rotate %0 by %c16_i32 dim 1 : vector<4x256xf32>, i32 -> vector<4x256xf32>
    %c7 = arith.constant 7 : index
    %c0_4 = arith.constant 0 : index
    %8 = vector.load %arg3[%c7, %c0_4] : memref<25x256xf32, #tpu.memory_space<vmem>>, vector<1x256xf32>
    %9 = vector.broadcast %8 : vector<1x256xf32> to vector<4x256xf32>
    %10 = arith.mulf %7, %9 : vector<4x256xf32>
    %11 = arith.truncf %10 : vector<4x256xf32> to vector<4x256xbf16>
    %c4 = arith.constant 4 : index
    %c0_5 = arith.constant 0 : index
    %12 = vector.load %arg13[%c4, %c0_5] : memref<36x256xbf16, #tpu.memory_space<vmem>>, vector<4x256xbf16>
    tpu.vector_store %arg13[%c4, %c0_5], %11 {strides = array<i32>} : memref<36x256xbf16, #tpu.memory_space<vmem>>, vector<4x256xbf16>,
    %c15_i32 = arith.constant 15 : i32
    %13 = tpu.dynamic_rotate %0 by %c15_i32 dim 1 : vector<4x256xf32>, i32 -> vector<4x256xf32>
    %c8 = arith.constant 8 : index
    %c0_6 = arith.constant 0 : index
    %14 = vector.load %arg3[%c8, %c0_6] : memref<25x256xf32, #tpu.memory_space<vmem>>, vector<1x256xf32>
    %15 = vector.broadcast %14 : vector<1x256xf32> to vector<4x256xf32>
    %16 = arith.mulf %13, %15 : vector<4x256xf32>
    %17 = arith.truncf %16 : vector<4x256xf32> to vector<4x256xbf16>
    %c8_7 = arith.constant 8 : index
    %c0_8 = arith.constant 0 : index
    %18 = vector.load %arg13[%c8_7, %c0_8] : memref<36x256xbf16, #tpu.memory_space<vmem>>, vector<4x256xbf16>
    tpu.vector_store %arg13[%c8_7, %c0_8], %17 {strides = array<i32>} : memref<36x256xbf16, #tpu.memory_space<vmem>>, vector<4x256xbf16>,
    %c1_i32 = arith.constant 1 : i32
    %19 = tpu.dynamic_rotate %0 by %c1_i32 dim 1 : vector<4x256xf32>, i32 -> vector<4x256xf32>
    %c11 = arith.constant 11 : index
    %c0_9 = arith.constant 0 : index
    %20 = vector.load %arg3[%c11, %c0_9] : memref<25x256xf32, #tpu.memory_space<vmem>>, vector<1x256xf32>
    %21 = vector.broadcast %20 : vector<1x256xf32> to vector<4x256xf32>
    %22 = arith.mulf %19, %21 : vector<4x256xf32>
    %23 = arith.truncf %22 : vector<4x256xf32> to vector<4x256xbf16>
    %c12 = arith.constant 12 : index
    %c0_10 = arith.constant 0 : index
    %24 = vector.load %arg13[%c12, %c0_10] : memref<36x256xbf16, #tpu.memory_space<vmem>>, vector<4x256xbf16>
    tpu.vector_store %arg13[%c12, %c0_10], %23 {strides = array<i32>} : memref<36x256xbf16, #tpu.memory_space<vmem>>, vector<4x256xbf16>,
    %25 = arith.truncf %0 : vector<4x256xf32> to vector<4x256xbf16>
    %c16 = arith.constant 16 : index
    %c0_11 = arith.constant 0 : index
    %26 = vector.load %arg13[%c16, %c0_11] : memref<36x256xbf16, #tpu.memory_space<vmem>>, vector<4x256xbf16>
    tpu.vector_store %arg13[%c16, %c0_11], %25 {strides = array<i32>} : memref<36x256xbf16, #tpu.memory_space<vmem>>, vector<4x256xbf16>,
    %c255_i32 = arith.constant 255 : i32
    %27 = tpu.dynamic_rotate %0 by %c255_i32 dim 1 : vector<4x256xf32>, i32 -> vector<4x256xf32>
    %c13 = arith.constant 13 : index
    %c0_12 = arith.constant 0 : index
    %28 = vector.load %arg3[%c13, %c0_12] : memref<25x256xf32, #tpu.memory_space<vmem>>, vector<1x256xf32>
    %29 = vector.broadcast %28 : vector<1x256xf32> to vector<4x256xf32>
    %30 = arith.mulf %27, %29 : vector<4x256xf32>
    %31 = arith.truncf %30 : vector<4x256xf32> to vector<4x256xbf16>
    %c20 = arith.constant 20 : index
    %c0_13 = arith.constant 0 : index
    %32 = vector.load %arg13[%c20, %c0_13] : memref<36x256xbf16, #tpu.memory_space<vmem>>, vector<4x256xbf16>
    tpu.vector_store %arg13[%c20, %c0_13], %31 {strides = array<i32>} : memref<36x256xbf16, #tpu.memory_space<vmem>>, vector<4x256xbf16>,
    %c241_i32 = arith.constant 241 : i32
    %33 = tpu.dynamic_rotate %0 by %c241_i32 dim 1 : vector<4x256xf32>, i32 -> vector<4x256xf32>
    %c16_14 = arith.constant 16 : index
    %c0_15 = arith.constant 0 : index
    %34 = vector.load %arg3[%c16_14, %c0_15] : memref<25x256xf32, #tpu.memory_space<vmem>>, vector<1x256xf32>
    %35 = vector.broadcast %34 : vector<1x256xf32> to vector<4x256xf32>
    %36 = arith.mulf %33, %35 : vector<4x256xf32>
    %37 = arith.truncf %36 : vector<4x256xf32> to vector<4x256xbf16>
    %c24 = arith.constant 24 : index
    %c0_16 = arith.constant 0 : index
    %38 = vector.load %arg13[%c24, %c0_16] : memref<36x256xbf16, #tpu.memory_space<vmem>>, vector<4x256xbf16>
    tpu.vector_store %arg13[%c24, %c0_16], %37 {strides = array<i32>} : memref<36x256xbf16, #tpu.memory_space<vmem>>, vector<4x256xbf16>,
    %c240_i32 = arith.constant 240 : i32
    %39 = tpu.dynamic_rotate %0 by %c240_i32 dim 1 : vector<4x256xf32>, i32 -> vector<4x256xf32>
    %c17 = arith.constant 17 : index
    %c0_17 = arith.constant 0 : index
    %40 = vector.load %arg3[%c17, %c0_17] : memref<25x256xf32, #tpu.memory_space<vmem>>, vector<1x256xf32>
    %41 = vector.broadcast %40 : vector<1x256xf32> to vector<4x256xf32>
    %42 = arith.mulf %39, %41 : vector<4x256xf32>
    %43 = arith.truncf %42 : vector<4x256xf32> to vector<4x256xbf16>
    %c28 = arith.constant 28 : index
    %c0_18 = arith.constant 0 : index
    %44 = vector.load %arg13[%c28, %c0_18] : memref<36x256xbf16, #tpu.memory_space<vmem>>, vector<4x256xbf16>
    tpu.vector_store %arg13[%c28, %c0_18], %43 {strides = array<i32>} : memref<36x256xbf16, #tpu.memory_space<vmem>>, vector<4x256xbf16>,
    %c239_i32 = arith.constant 239 : i32
    %45 = tpu.dynamic_rotate %0 by %c239_i32 dim 1 : vector<4x256xf32>, i32 -> vector<4x256xf32>
    %c18 = arith.constant 18 : index
    %c0_19 = arith.constant 0 : index
    %46 = vector.load %arg3[%c18, %c0_19] : memref<25x256xf32, #tpu.memory_space<vmem>>, vector<1x256xf32>
    %47 = vector.broadcast %46 : vector<1x256xf32> to vector<4x256xf32>
    %48 = arith.mulf %45, %47 : vector<4x256xf32>
    %49 = arith.truncf %48 : vector<4x256xf32> to vector<4x256xbf16>
    %c32 = arith.constant 32 : index
    %c0_20 = arith.constant 0 : index
    %50 = vector.load %arg13[%c32, %c0_20] : memref<36x256xbf16, #tpu.memory_space<vmem>>, vector<4x256xbf16>
    tpu.vector_store %arg13[%c32, %c0_20], %49 {strides = array<i32>} : memref<36x256xbf16, #tpu.memory_space<vmem>>, vector<4x256xbf16>,
    %c0_21 = arith.constant 0 : index
    %c0_22 = arith.constant 0 : index
    %51 = vector.load %arg4[%c0_21, %c0_22] : memref<35x36xbf16, #tpu.memory_space<vmem>>, vector<35x36xbf16>
    %c0_23 = arith.constant 0 : index
    %c0_24 = arith.constant 0 : index
    %52 = vector.load %arg13[%c0_23, %c0_24] : memref<36x256xbf16, #tpu.memory_space<vmem>>, vector<36x256xbf16>
    %cst = arith.constant dense<0.000000e+00> : vector<35x256xf32>
    %53 = tpu.matmul %51, %52, %cst {dimension_numbers = #tpu.dot_dimension_numbers<[1], [0], [0], [1], [0, 0, 1, 1], [], []>} : vector<35x36xbf16>, vector<36x256xbf16>, vector<35x256xf32> -> vector<35x256xf32>
    %54 = vector.extract_strided_slice %53 {offsets = [0, 0], sizes = [16, 256], strides = [1, 1]} : vector<35x256xf32> to vector<16x256xf32>
    %c0_25 = arith.constant 0 : index
    %c0_26 = arith.constant 0 : index
    %55 = vector.load %arg5[%c0_25, %c0_26] : memref<16x1xf32, #tpu.memory_space<vmem>>, vector<16x1xf32>
    %56 = vector.broadcast %55 : vector<16x1xf32> to vector<16x256xf32>
    %57 = arith.addf %54, %56 : vector<16x256xf32>
    %cst_27 = arith.constant 0.000000e+00 : f32
    %58 = vector.broadcast %cst_27 : f32 to vector<16x256xf32>
    %59 = arith.maximumf %57, %58 : vector<16x256xf32>
    %60 = vector.extract_strided_slice %53 {offsets = [16, 0], sizes = [16, 256], strides = [1, 1]} : vector<35x256xf32> to vector<16x256xf32>
    %61 = vector.extract_strided_slice %53 {offsets = [32, 0], sizes = [1, 256], strides = [1, 1]} : vector<35x256xf32> to vector<1x256xf32>
    %62 = vector.extract_strided_slice %53 {offsets = [33, 0], sizes = [1, 256], strides = [1, 1]} : vector<35x256xf32> to vector<1x256xf32>
    %63 = vector.extract_strided_slice %53 {offsets = [34, 0], sizes = [1, 256], strides = [1, 1]} : vector<35x256xf32> to vector<1x256xf32>
    %c17_i32_28 = arith.constant 17 : i32
    %64 = tpu.dynamic_rotate %59 by %c17_i32_28 dim 1 : vector<16x256xf32>, i32 -> vector<16x256xf32>
    %c6_29 = arith.constant 6 : index
    %c0_30 = arith.constant 0 : index
    %65 = vector.load %arg3[%c6_29, %c0_30] : memref<25x256xf32, #tpu.memory_space<vmem>>, vector<1x256xf32>
    %66 = vector.broadcast %65 : vector<1x256xf32> to vector<16x256xf32>
    %67 = arith.mulf %64, %66 : vector<16x256xf32>
    %68 = arith.truncf %67 : vector<16x256xf32> to vector<16x256xbf16>
    %c0_31 = arith.constant 0 : index
    %c0_32 = arith.constant 0 : index
    %69 = vector.load %arg14[%c0_31, %c0_32] : memref<216x256xbf16, #tpu.memory_space<vmem>>, vector<16x256xbf16>
    tpu.vector_store %arg14[%c0_31, %c0_32], %68 {strides = array<i32>} : memref<216x256xbf16, #tpu.memory_space<vmem>>, vector<16x256xbf16>,
    %c16_i32_33 = arith.constant 16 : i32
    %70 = tpu.dynamic_rotate %59 by %c16_i32_33 dim 1 : vector<16x256xf32>, i32 -> vector<16x256xf32>
    %c7_34 = arith.constant 7 : index
    %c0_35 = arith.constant 0 : index
    %71 = vector.load %arg3[%c7_34, %c0_35] : memref<25x256xf32, #tpu.memory_space<vmem>>, vector<1x256xf32>
    %72 = vector.broadcast %71 : vector<1x256xf32> to vector<16x256xf32>
    %73 = arith.mulf %70, %72 : vector<16x256xf32>
    %74 = arith.truncf %73 : vector<16x256xf32> to vector<16x256xbf16>
    %c16_36 = arith.constant 16 : index
    %c0_37 = arith.constant 0 : index
    %75 = vector.load %arg14[%c16_36, %c0_37] : memref<216x256xbf16, #tpu.memory_space<vmem>>, vector<16x256xbf16>
    tpu.vector_store %arg14[%c16_36, %c0_37], %74 {strides = array<i32>} : memref<216x256xbf16, #tpu.memory_space<vmem>>, vector<16x256xbf16>,
    %c15_i32_38 = arith.constant 15 : i32
    %76 = tpu.dynamic_rotate %59 by %c15_i32_38 dim 1 : vector<16x256xf32>, i32 -> vector<16x256xf32>
    %c8_39 = arith.constant 8 : index
    %c0_40 = arith.constant 0 : index
    %77 = vector.load %arg3[%c8_39, %c0_40] : memref<25x256xf32, #tpu.memory_space<vmem>>, vector<1x256xf32>
    %78 = vector.broadcast %77 : vector<1x256xf32> to vector<16x256xf32>
    %79 = arith.mulf %76, %78 : vector<16x256xf32>
    %80 = arith.truncf %79 : vector<16x256xf32> to vector<16x256xbf16>
    %c32_41 = arith.constant 32 : index
    %c0_42 = arith.constant 0 : index
    %81 = vector.load %arg14[%c32_41, %c0_42] : memref<216x256xbf16, #tpu.memory_space<vmem>>, vector<16x256xbf16>
    tpu.vector_store %arg14[%c32_41, %c0_42], %80 {strides = array<i32>} : memref<216x256xbf16, #tpu.memory_space<vmem>>, vector<16x256xbf16>,
    %c1_i32_43 = arith.constant 1 : i32
    %82 = tpu.dynamic_rotate %59 by %c1_i32_43 dim 1 : vector<16x256xf32>, i32 -> vector<16x256xf32>
    %c11_44 = arith.constant 11 : index
    %c0_45 = arith.constant 0 : index
    %83 = vector.load %arg3[%c11_44, %c0_45] : memref<25x256xf32, #tpu.memory_space<vmem>>, vector<1x256xf32>
    %84 = vector.broadcast %83 : vector<1x256xf32> to vector<16x256xf32>
    %85 = arith.mulf %82, %84 : vector<16x256xf32>
    %86 = arith.truncf %85 : vector<16x256xf32> to vector<16x256xbf16>
    %c48 = arith.constant 48 : index
    %c0_46 = arith.constant 0 : index
    %87 = vector.load %arg14[%c48, %c0_46] : memref<216x256xbf16, #tpu.memory_space<vmem>>, vector<16x256xbf16>
    tpu.vector_store %arg14[%c48, %c0_46], %86 {strides = array<i32>} : memref<216x256xbf16, #tpu.memory_space<vmem>>, vector<16x256xbf16>,
    %88 = arith.truncf %59 : vector<16x256xf32> to vector<16x256xbf16>
    %c64 = arith.constant 64 : index
    %c0_47 = arith.constant 0 : index
    %89 = vector.load %arg14[%c64, %c0_47] : memref<216x256xbf16, #tpu.memory_space<vmem>>, vector<16x256xbf16>
    tpu.vector_store %arg14[%c64, %c0_47], %88 {strides = array<i32>} : memref<216x256xbf16, #tpu.memory_space<vmem>>, vector<16x256xbf16>,
    %c255_i32_48 = arith.constant 255 : i32
    %90 = tpu.dynamic_rotate %59 by %c255_i32_48 dim 1 : vector<16x256xf32>, i32 -> vector<16x256xf32>
    %c13_49 = arith.constant 13 : index
    %c0_50 = arith.constant 0 : index
    %91 = vector.load %arg3[%c13_49, %c0_50] : memref<25x256xf32, #tpu.memory_space<vmem>>, vector<1x256xf32>
    %92 = vector.broadcast %91 : vector<1x256xf32> to vector<16x256xf32>
    %93 = arith.mulf %90, %92 : vector<16x256xf32>
    %94 = arith.truncf %93 : vector<16x256xf32> to vector<16x256xbf16>
    %c80 = arith.constant 80 : index
    %c0_51 = arith.constant 0 : index
    %95 = vector.load %arg14[%c80, %c0_51] : memref<216x256xbf16, #tpu.memory_space<vmem>>, vector<16x256xbf16>
    tpu.vector_store %arg14[%c80, %c0_51], %94 {strides = array<i32>} : memref<216x256xbf16, #tpu.memory_space<vmem>>, vector<16x256xbf16>,
    %c241_i32_52 = arith.constant 241 : i32
    %96 = tpu.dynamic_rotate %59 by %c241_i32_52 dim 1 : vector<16x256xf32>, i32 -> vector<16x256xf32>
    %c16_53 = arith.constant 16 : index
    %c0_54 = arith.constant 0 : index
    %97 = vector.load %arg3[%c16_53, %c0_54] : memref<25x256xf32, #tpu.memory_space<vmem>>, vector<1x256xf32>
    %98 = vector.broadcast %97 : vector<1x256xf32> to vector<16x256xf32>
    %99 = arith.mulf %96, %98 : vector<16x256xf32>
    %100 = arith.truncf %99 : vector<16x256xf32> to vector<16x256xbf16>
    %c96 = arith.constant 96 : index
    %c0_55 = arith.constant 0 : index
    %101 = vector.load %arg14[%c96, %c0_55] : memref<216x256xbf16, #tpu.memory_space<vmem>>, vector<16x256xbf16>
    tpu.vector_store %arg14[%c96, %c0_55], %100 {strides = array<i32>} : memref<216x256xbf16, #tpu.memory_space<vmem>>, vector<16x256xbf16>,
    %c240_i32_56 = arith.constant 240 : i32
    %102 = tpu.dynamic_rotate %59 by %c240_i32_56 dim 1 : vector<16x256xf32>, i32 -> vector<16x256xf32>
    %c17_57 = arith.constant 17 : index
    %c0_58 = arith.constant 0 : index
    %103 = vector.load %arg3[%c17_57, %c0_58] : memref<25x256xf32, #tpu.memory_space<vmem>>, vector<1x256xf32>
    %104 = vector.broadcast %103 : vector<1x256xf32> to vector<16x256xf32>
    %105 = arith.mulf %102, %104 : vector<16x256xf32>
    %106 = arith.truncf %105 : vector<16x256xf32> to vector<16x256xbf16>
    %c112 = arith.constant 112 : index
    %c0_59 = arith.constant 0 : index
    %107 = vector.load %arg14[%c112, %c0_59] : memref<216x256xbf16, #tpu.memory_space<vmem>>, vector<16x256xbf16>
    tpu.vector_store %arg14[%c112, %c0_59], %106 {strides = array<i32>} : memref<216x256xbf16, #tpu.memory_space<vmem>>, vector<16x256xbf16>,
    %c239_i32_60 = arith.constant 239 : i32
    %108 = tpu.dynamic_rotate %59 by %c239_i32_60 dim 1 : vector<16x256xf32>, i32 -> vector<16x256xf32>
    %c18_61 = arith.constant 18 : index
    %c0_62 = arith.constant 0 : index
    %109 = vector.load %arg3[%c18_61, %c0_62] : memref<25x256xf32, #tpu.memory_space<vmem>>, vector<1x256xf32>
    %110 = vector.broadcast %109 : vector<1x256xf32> to vector<16x256xf32>
    %111 = arith.mulf %108, %110 : vector<16x256xf32>
    %112 = arith.truncf %111 : vector<16x256xf32> to vector<16x256xbf16>
    %c128 = arith.constant 128 : index
    %c0_63 = arith.constant 0 : index
    %113 = vector.load %arg14[%c128, %c0_63] : memref<216x256xbf16, #tpu.memory_space<vmem>>, vector<16x256xbf16>
    tpu.vector_store %arg14[%c128, %c0_63], %112 {strides = array<i32>} : memref<216x256xbf16, #tpu.memory_space<vmem>>, vector<16x256xbf16>,
    %c0_64 = arith.constant 0 : index
    %c0_65 = arith.constant 0 : index
    %114 = vector.load %arg6[%c0_64, %c0_65] : memref<16x144xbf16, #tpu.memory_space<vmem>>, vector<16x144xbf16>
    %c0_66 = arith.constant 0 : index
    %c0_67 = arith.constant 0 : index
    %115 = vector.load %arg14[%c0_66, %c0_67] : memref<216x256xbf16, #tpu.memory_space<vmem>>, vector<144x256xbf16>
    %cst_68 = arith.constant dense<0.000000e+00> : vector<16x256xf32>
    %116 = tpu.matmul %114, %115, %cst_68 {dimension_numbers = #tpu.dot_dimension_numbers<[1], [0], [0], [1], [0, 0, 1, 1], [], []>} : vector<16x144xbf16>, vector<144x256xbf16>, vector<16x256xf32> -> vector<16x256xf32>
    %c0_69 = arith.constant 0 : index
    %c0_70 = arith.constant 0 : index
    %117 = vector.load %arg7[%c0_69, %c0_70] : memref<16x1xf32, #tpu.memory_space<vmem>>, vector<16x1xf32>
    %118 = vector.broadcast %117 : vector<16x1xf32> to vector<16x256xf32>
    %119 = arith.addf %116, %118 : vector<16x256xf32>
    %cst_71 = arith.constant 0.000000e+00 : f32
    %120 = vector.broadcast %cst_71 : f32 to vector<16x256xf32>
    %121 = arith.maximumf %119, %120 : vector<16x256xf32>
    %c0_72 = arith.constant 0 : index
    %c0_73 = arith.constant 0 : index
    %122 = vector.load %arg2[%c0_72, %c0_73] : memref<8x256xf32, #tpu.memory_space<vmem>>, vector<8x256xf32>
    %c17_i32_74 = arith.constant 17 : i32
    %123 = tpu.dynamic_rotate %121 by %c17_i32_74 dim 1 : vector<16x256xf32>, i32 -> vector<16x256xf32>
    %c6_75 = arith.constant 6 : index
    %c0_76 = arith.constant 0 : index
    %124 = vector.load %arg3[%c6_75, %c0_76] : memref<25x256xf32, #tpu.memory_space<vmem>>, vector<1x256xf32>
    %125 = vector.broadcast %124 : vector<1x256xf32> to vector<16x256xf32>
    %126 = arith.mulf %123, %125 : vector<16x256xf32>
    %127 = arith.truncf %126 : vector<16x256xf32> to vector<16x256xbf16>
    %c0_77 = arith.constant 0 : index
    %c0_78 = arith.constant 0 : index
    %128 = vector.load %arg14[%c0_77, %c0_78] : memref<216x256xbf16, #tpu.memory_space<vmem>>, vector<16x256xbf16>
    tpu.vector_store %arg14[%c0_77, %c0_78], %127 {strides = array<i32>} : memref<216x256xbf16, #tpu.memory_space<vmem>>, vector<16x256xbf16>,
    %c6_79 = arith.constant 6 : index
    %c0_80 = arith.constant 0 : index
    %129 = vector.load %arg3[%c6_79, %c0_80] : memref<25x256xf32, #tpu.memory_space<vmem>>, vector<1x256xf32>
    %130 = vector.broadcast %129 : vector<1x256xf32> to vector<8x256xf32>
    %131 = arith.mulf %122, %130 : vector<8x256xf32>
    %132 = arith.truncf %131 : vector<8x256xf32> to vector<8x256xbf16>
    %c144 = arith.constant 144 : index
    %c0_81 = arith.constant 0 : index
    %133 = vector.load %arg14[%c144, %c0_81] : memref<216x256xbf16, #tpu.memory_space<vmem>>, vector<8x256xbf16>
    tpu.vector_store %arg14[%c144, %c0_81], %132 {strides = array<i32>} : memref<216x256xbf16, #tpu.memory_space<vmem>>, vector<8x256xbf16>,
    %c16_i32_82 = arith.constant 16 : i32
    %134 = tpu.dynamic_rotate %121 by %c16_i32_82 dim 1 : vector<16x256xf32>, i32 -> vector<16x256xf32>
    %c7_83 = arith.constant 7 : index
    %c0_84 = arith.constant 0 : index
    %135 = vector.load %arg3[%c7_83, %c0_84] : memref<25x256xf32, #tpu.memory_space<vmem>>, vector<1x256xf32>
    %136 = vector.broadcast %135 : vector<1x256xf32> to vector<16x256xf32>
    %137 = arith.mulf %134, %136 : vector<16x256xf32>
    %138 = arith.truncf %137 : vector<16x256xf32> to vector<16x256xbf16>
    %c16_85 = arith.constant 16 : index
    %c0_86 = arith.constant 0 : index
    %139 = vector.load %arg14[%c16_85, %c0_86] : memref<216x256xbf16, #tpu.memory_space<vmem>>, vector<16x256xbf16>
    tpu.vector_store %arg14[%c16_85, %c0_86], %138 {strides = array<i32>} : memref<216x256xbf16, #tpu.memory_space<vmem>>, vector<16x256xbf16>,
    %c7_87 = arith.constant 7 : index
    %c0_88 = arith.constant 0 : index
    %140 = vector.load %arg3[%c7_87, %c0_88] : memref<25x256xf32, #tpu.memory_space<vmem>>, vector<1x256xf32>
    %141 = vector.broadcast %140 : vector<1x256xf32> to vector<8x256xf32>
    %142 = arith.mulf %122, %141 : vector<8x256xf32>
    %143 = arith.truncf %142 : vector<8x256xf32> to vector<8x256xbf16>
    %c152 = arith.constant 152 : index
    %c0_89 = arith.constant 0 : index
    %144 = vector.load %arg14[%c152, %c0_89] : memref<216x256xbf16, #tpu.memory_space<vmem>>, vector<8x256xbf16>
    tpu.vector_store %arg14[%c152, %c0_89], %143 {strides = array<i32>} : memref<216x256xbf16, #tpu.memory_space<vmem>>, vector<8x256xbf16>,
    %c15_i32_90 = arith.constant 15 : i32
    %145 = tpu.dynamic_rotate %121 by %c15_i32_90 dim 1 : vector<16x256xf32>, i32 -> vector<16x256xf32>
    %c8_91 = arith.constant 8 : index
    %c0_92 = arith.constant 0 : index
    %146 = vector.load %arg3[%c8_91, %c0_92] : memref<25x256xf32, #tpu.memory_space<vmem>>, vector<1x256xf32>
    %147 = vector.broadcast %146 : vector<1x256xf32> to vector<16x256xf32>
    %148 = arith.mulf %145, %147 : vector<16x256xf32>
    %149 = arith.truncf %148 : vector<16x256xf32> to vector<16x256xbf16>
    %c32_93 = arith.constant 32 : index
    %c0_94 = arith.constant 0 : index
    %150 = vector.load %arg14[%c32_93, %c0_94] : memref<216x256xbf16, #tpu.memory_space<vmem>>, vector<16x256xbf16>
    tpu.vector_store %arg14[%c32_93, %c0_94], %149 {strides = array<i32>} : memref<216x256xbf16, #tpu.memory_space<vmem>>, vector<16x256xbf16>,
    %c8_95 = arith.constant 8 : index
    %c0_96 = arith.constant 0 : index
    %151 = vector.load %arg3[%c8_95, %c0_96] : memref<25x256xf32, #tpu.memory_space<vmem>>, vector<1x256xf32>
    %152 = vector.broadcast %151 : vector<1x256xf32> to vector<8x256xf32>
    %153 = arith.mulf %122, %152 : vector<8x256xf32>
    %154 = arith.truncf %153 : vector<8x256xf32> to vector<8x256xbf16>
    %c160 = arith.constant 160 : index
    %c0_97 = arith.constant 0 : index
    %155 = vector.load %arg14[%c160, %c0_97] : memref<216x256xbf16, #tpu.memory_space<vmem>>, vector<8x256xbf16>
    tpu.vector_store %arg14[%c160, %c0_97], %154 {strides = array<i32>} : memref<216x256xbf16, #tpu.memory_space<vmem>>, vector<8x256xbf16>,
    %c1_i32_98 = arith.constant 1 : i32
    %156 = tpu.dynamic_rotate %121 by %c1_i32_98 dim 1 : vector<16x256xf32>, i32 -> vector<16x256xf32>
    %c11_99 = arith.constant 11 : index
    %c0_100 = arith.constant 0 : index
    %157 = vector.load %arg3[%c11_99, %c0_100] : memref<25x256xf32, #tpu.memory_space<vmem>>, vector<1x256xf32>
    %158 = vector.broadcast %157 : vector<1x256xf32> to vector<16x256xf32>
    %159 = arith.mulf %156, %158 : vector<16x256xf32>
    %160 = arith.truncf %159 : vector<16x256xf32> to vector<16x256xbf16>
    %c48_101 = arith.constant 48 : index
    %c0_102 = arith.constant 0 : index
    %161 = vector.load %arg14[%c48_101, %c0_102] : memref<216x256xbf16, #tpu.memory_space<vmem>>, vector<16x256xbf16>
    tpu.vector_store %arg14[%c48_101, %c0_102], %160 {strides = array<i32>} : memref<216x256xbf16, #tpu.memory_space<vmem>>, vector<16x256xbf16>,
    %c11_103 = arith.constant 11 : index
    %c0_104 = arith.constant 0 : index
    %162 = vector.load %arg3[%c11_103, %c0_104] : memref<25x256xf32, #tpu.memory_space<vmem>>, vector<1x256xf32>
    %163 = vector.broadcast %162 : vector<1x256xf32> to vector<8x256xf32>
    %164 = arith.mulf %122, %163 : vector<8x256xf32>
    %165 = arith.truncf %164 : vector<8x256xf32> to vector<8x256xbf16>
    %c168 = arith.constant 168 : index
    %c0_105 = arith.constant 0 : index
    %166 = vector.load %arg14[%c168, %c0_105] : memref<216x256xbf16, #tpu.memory_space<vmem>>, vector<8x256xbf16>
    tpu.vector_store %arg14[%c168, %c0_105], %165 {strides = array<i32>} : memref<216x256xbf16, #tpu.memory_space<vmem>>, vector<8x256xbf16>,
    %167 = arith.truncf %121 : vector<16x256xf32> to vector<16x256xbf16>
    %c64_106 = arith.constant 64 : index
    %c0_107 = arith.constant 0 : index
    %168 = vector.load %arg14[%c64_106, %c0_107] : memref<216x256xbf16, #tpu.memory_space<vmem>>, vector<16x256xbf16>
    tpu.vector_store %arg14[%c64_106, %c0_107], %167 {strides = array<i32>} : memref<216x256xbf16, #tpu.memory_space<vmem>>, vector<16x256xbf16>,
    %c12_108 = arith.constant 12 : index
    %c0_109 = arith.constant 0 : index
    %169 = vector.load %arg3[%c12_108, %c0_109] : memref<25x256xf32, #tpu.memory_space<vmem>>, vector<1x256xf32>
    %170 = vector.broadcast %169 : vector<1x256xf32> to vector<8x256xf32>
    %171 = arith.mulf %122, %170 : vector<8x256xf32>
    %172 = arith.truncf %171 : vector<8x256xf32> to vector<8x256xbf16>
    %c176 = arith.constant 176 : index
    %c0_110 = arith.constant 0 : index
    %173 = vector.load %arg14[%c176, %c0_110] : memref<216x256xbf16, #tpu.memory_space<vmem>>, vector<8x256xbf16>
    tpu.vector_store %arg14[%c176, %c0_110], %172 {strides = array<i32>} : memref<216x256xbf16, #tpu.memory_space<vmem>>, vector<8x256xbf16>,
    %c255_i32_111 = arith.constant 255 : i32
    %174 = tpu.dynamic_rotate %121 by %c255_i32_111 dim 1 : vector<16x256xf32>, i32 -> vector<16x256xf32>
    %c13_112 = arith.constant 13 : index
    %c0_113 = arith.constant 0 : index
    %175 = vector.load %arg3[%c13_112, %c0_113] : memref<25x256xf32, #tpu.memory_space<vmem>>, vector<1x256xf32>
    %176 = vector.broadcast %175 : vector<1x256xf32> to vector<16x256xf32>
    %177 = arith.mulf %174, %176 : vector<16x256xf32>
    %178 = arith.truncf %177 : vector<16x256xf32> to vector<16x256xbf16>
    %c80_114 = arith.constant 80 : index
    %c0_115 = arith.constant 0 : index
    %179 = vector.load %arg14[%c80_114, %c0_115] : memref<216x256xbf16, #tpu.memory_space<vmem>>, vector<16x256xbf16>
    tpu.vector_store %arg14[%c80_114, %c0_115], %178 {strides = array<i32>} : memref<216x256xbf16, #tpu.memory_space<vmem>>, vector<16x256xbf16>,
    %c13_116 = arith.constant 13 : index
    %c0_117 = arith.constant 0 : index
    %180 = vector.load %arg3[%c13_116, %c0_117] : memref<25x256xf32, #tpu.memory_space<vmem>>, vector<1x256xf32>
    %181 = vector.broadcast %180 : vector<1x256xf32> to vector<8x256xf32>
    %182 = arith.mulf %122, %181 : vector<8x256xf32>
    %183 = arith.truncf %182 : vector<8x256xf32> to vector<8x256xbf16>
    %c184 = arith.constant 184 : index
    %c0_118 = arith.constant 0 : index
    %184 = vector.load %arg14[%c184, %c0_118] : memref<216x256xbf16, #tpu.memory_space<vmem>>, vector<8x256xbf16>
    tpu.vector_store %arg14[%c184, %c0_118], %183 {strides = array<i32>} : memref<216x256xbf16, #tpu.memory_space<vmem>>, vector<8x256xbf16>,
    %c241_i32_119 = arith.constant 241 : i32
    %185 = tpu.dynamic_rotate %121 by %c241_i32_119 dim 1 : vector<16x256xf32>, i32 -> vector<16x256xf32>
    %c16_120 = arith.constant 16 : index
    %c0_121 = arith.constant 0 : index
    %186 = vector.load %arg3[%c16_120, %c0_121] : memref<25x256xf32, #tpu.memory_space<vmem>>, vector<1x256xf32>
    %187 = vector.broadcast %186 : vector<1x256xf32> to vector<16x256xf32>
    %188 = arith.mulf %185, %187 : vector<16x256xf32>
    %189 = arith.truncf %188 : vector<16x256xf32> to vector<16x256xbf16>
    %c96_122 = arith.constant 96 : index
    %c0_123 = arith.constant 0 : index
    %190 = vector.load %arg14[%c96_122, %c0_123] : memref<216x256xbf16, #tpu.memory_space<vmem>>, vector<16x256xbf16>
    tpu.vector_store %arg14[%c96_122, %c0_123], %189 {strides = array<i32>} : memref<216x256xbf16, #tpu.memory_space<vmem>>, vector<16x256xbf16>,
    %c16_124 = arith.constant 16 : index
    %c0_125 = arith.constant 0 : index
    %191 = vector.load %arg3[%c16_124, %c0_125] : memref<25x256xf32, #tpu.memory_space<vmem>>, vector<1x256xf32>
    %192 = vector.broadcast %191 : vector<1x256xf32> to vector<8x256xf32>
    %193 = arith.mulf %122, %192 : vector<8x256xf32>
    %194 = arith.truncf %193 : vector<8x256xf32> to vector<8x256xbf16>
    %c192 = arith.constant 192 : index
    %c0_126 = arith.constant 0 : index
    %195 = vector.load %arg14[%c192, %c0_126] : memref<216x256xbf16, #tpu.memory_space<vmem>>, vector<8x256xbf16>
    tpu.vector_store %arg14[%c192, %c0_126], %194 {strides = array<i32>} : memref<216x256xbf16, #tpu.memory_space<vmem>>, vector<8x256xbf16>,
    %c240_i32_127 = arith.constant 240 : i32
    %196 = tpu.dynamic_rotate %121 by %c240_i32_127 dim 1 : vector<16x256xf32>, i32 -> vector<16x256xf32>
    %c17_128 = arith.constant 17 : index
    %c0_129 = arith.constant 0 : index
    %197 = vector.load %arg3[%c17_128, %c0_129] : memref<25x256xf32, #tpu.memory_space<vmem>>, vector<1x256xf32>
    %198 = vector.broadcast %197 : vector<1x256xf32> to vector<16x256xf32>
    %199 = arith.mulf %196, %198 : vector<16x256xf32>
    %200 = arith.truncf %199 : vector<16x256xf32> to vector<16x256xbf16>
    %c112_130 = arith.constant 112 : index
    %c0_131 = arith.constant 0 : index
    %201 = vector.load %arg14[%c112_130, %c0_131] : memref<216x256xbf16, #tpu.memory_space<vmem>>, vector<16x256xbf16>
    tpu.vector_store %arg14[%c112_130, %c0_131], %200 {strides = array<i32>} : memref<216x256xbf16, #tpu.memory_space<vmem>>, vector<16x256xbf16>,
    %c17_132 = arith.constant 17 : index
    %c0_133 = arith.constant 0 : index
    %202 = vector.load %arg3[%c17_132, %c0_133] : memref<25x256xf32, #tpu.memory_space<vmem>>, vector<1x256xf32>
    %203 = vector.broadcast %202 : vector<1x256xf32> to vector<8x256xf32>
    %204 = arith.mulf %122, %203 : vector<8x256xf32>
    %205 = arith.truncf %204 : vector<8x256xf32> to vector<8x256xbf16>
    %c200 = arith.constant 200 : index
    %c0_134 = arith.constant 0 : index
    %206 = vector.load %arg14[%c200, %c0_134] : memref<216x256xbf16, #tpu.memory_space<vmem>>, vector<8x256xbf16>
    tpu.vector_store %arg14[%c200, %c0_134], %205 {strides = array<i32>} : memref<216x256xbf16, #tpu.memory_space<vmem>>, vector<8x256xbf16>,
    %c239_i32_135 = arith.constant 239 : i32
    %207 = tpu.dynamic_rotate %121 by %c239_i32_135 dim 1 : vector<16x256xf32>, i32 -> vector<16x256xf32>
    %c18_136 = arith.constant 18 : index
    %c0_137 = arith.constant 0 : index
    %208 = vector.load %arg3[%c18_136, %c0_137] : memref<25x256xf32, #tpu.memory_space<vmem>>, vector<1x256xf32>
    %209 = vector.broadcast %208 : vector<1x256xf32> to vector<16x256xf32>
    %210 = arith.mulf %207, %209 : vector<16x256xf32>
    %211 = arith.truncf %210 : vector<16x256xf32> to vector<16x256xbf16>
    %c128_138 = arith.constant 128 : index
    %c0_139 = arith.constant 0 : index
    %212 = vector.load %arg14[%c128_138, %c0_139] : memref<216x256xbf16, #tpu.memory_space<vmem>>, vector<16x256xbf16>
    tpu.vector_store %arg14[%c128_138, %c0_139], %211 {strides = array<i32>} : memref<216x256xbf16, #tpu.memory_space<vmem>>, vector<16x256xbf16>,
    %c18_140 = arith.constant 18 : index
    %c0_141 = arith.constant 0 : index
    %213 = vector.load %arg3[%c18_140, %c0_141] : memref<25x256xf32, #tpu.memory_space<vmem>>, vector<1x256xf32>
    %214 = vector.broadcast %213 : vector<1x256xf32> to vector<8x256xf32>
    %215 = arith.mulf %122, %214 : vector<8x256xf32>
    %216 = arith.truncf %215 : vector<8x256xf32> to vector<8x256xbf16>
    %c208 = arith.constant 208 : index
    %c0_142 = arith.constant 0 : index
    %217 = vector.load %arg14[%c208, %c0_142] : memref<216x256xbf16, #tpu.memory_space<vmem>>, vector<8x256xbf16>
    tpu.vector_store %arg14[%c208, %c0_142], %216 {strides = array<i32>} : memref<216x256xbf16, #tpu.memory_space<vmem>>, vector<8x256xbf16>,
    %c0_143 = arith.constant 0 : index
    %c0_144 = arith.constant 0 : index
    %218 = vector.load %arg8[%c0_143, %c0_144] : memref<16x216xbf16, #tpu.memory_space<vmem>>, vector<16x216xbf16>
    %c0_145 = arith.constant 0 : index
    %c0_146 = arith.constant 0 : index
    %219 = vector.load %arg14[%c0_145, %c0_146] : memref<216x256xbf16, #tpu.memory_space<vmem>>, vector<216x256xbf16>
    %cst_147 = arith.constant dense<0.000000e+00> : vector<16x256xf32>
    %220 = tpu.matmul %218, %219, %cst_147 {dimension_numbers = #tpu.dot_dimension_numbers<[1], [0], [0], [1], [0, 0, 1, 1], [], []>} : vector<16x216xbf16>, vector<216x256xbf16>, vector<16x256xf32> -> vector<16x256xf32>
    %221 = arith.addf %60, %220 : vector<16x256xf32>
    %c0_148 = arith.constant 0 : index
    %c0_149 = arith.constant 0 : index
    %222 = vector.load %arg9[%c0_148, %c0_149] : memref<16x1xf32, #tpu.memory_space<vmem>>, vector<16x1xf32>
    %223 = vector.broadcast %222 : vector<16x1xf32> to vector<16x256xf32>
    %224 = arith.addf %221, %223 : vector<16x256xf32>
    %cst_150 = arith.constant 0.000000e+00 : f32
    %225 = vector.broadcast %cst_150 : f32 to vector<16x256xf32>
    %226 = arith.maximumf %224, %225 : vector<16x256xf32>
    %c0_151 = arith.constant 0 : index
    %c0_152 = arith.constant 0 : index
    %227 = vector.load %arg10[%c0_151, %c0_152] : memref<3x16xbf16, #tpu.memory_space<vmem>>, vector<3x16xbf16>
    %228 = arith.truncf %226 : vector<16x256xf32> to vector<16x256xbf16>
    %cst_153 = arith.constant dense<0.000000e+00> : vector<3x256xf32>
    %229 = tpu.matmul %227, %228, %cst_153 {dimension_numbers = #tpu.dot_dimension_numbers<[1], [0], [0], [1], [0, 0, 1, 1], [], []>} : vector<3x16xbf16>, vector<16x256xbf16>, vector<3x256xf32> -> vector<3x256xf32>
    %c0_154 = arith.constant 0 : index
    %c0_155 = arith.constant 0 : index
    %230 = vector.load %arg11[%c0_154, %c0_155] : memref<3x1xf32, #tpu.memory_space<vmem>>, vector<3x1xf32>
    %231 = vector.broadcast %230 : vector<3x1xf32> to vector<3x256xf32>
    %232 = arith.addf %229, %231 : vector<3x256xf32>
    %c3 = arith.constant 3 : index
    %c0_156 = arith.constant 0 : index
    %233 = vector.load %arg1[%c3, %c0_156] : memref<4x256xf32, #tpu.memory_space<vmem>>, vector<1x256xf32>
    %c34_i32 = arith.constant 34 : i32
    %234 = tpu.dynamic_rotate %233 by %c34_i32 dim 1 : vector<1x256xf32>, i32 -> vector<1x256xf32>
    %c0_157 = arith.constant 0 : index
    %c0_158 = arith.constant 0 : index
    %235 = vector.load %arg3[%c0_157, %c0_158] : memref<25x256xf32, #tpu.memory_space<vmem>>, vector<1x256xf32>
    %236 = arith.mulf %234, %235 : vector<1x256xf32>
    %237 = arith.addf %61, %236 : vector<1x256xf32>
    %c33_i32 = arith.constant 33 : i32
    %238 = tpu.dynamic_rotate %233 by %c33_i32 dim 1 : vector<1x256xf32>, i32 -> vector<1x256xf32>
    %c1 = arith.constant 1 : index
    %c0_159 = arith.constant 0 : index
    %239 = vector.load %arg3[%c1, %c0_159] : memref<25x256xf32, #tpu.memory_space<vmem>>, vector<1x256xf32>
    %240 = arith.mulf %238, %239 : vector<1x256xf32>
    %241 = arith.addf %237, %240 : vector<1x256xf32>
    %c32_i32 = arith.constant 32 : i32
    %242 = tpu.dynamic_rotate %233 by %c32_i32 dim 1 : vector<1x256xf32>, i32 -> vector<1x256xf32>
    %c2 = arith.constant 2 : index
    %c0_160 = arith.constant 0 : index
    %243 = vector.load %arg3[%c2, %c0_160] : memref<25x256xf32, #tpu.memory_space<vmem>>, vector<1x256xf32>
    %244 = arith.mulf %242, %243 : vector<1x256xf32>
    %245 = arith.addf %241, %244 : vector<1x256xf32>
    %c31_i32 = arith.constant 31 : i32
    %246 = tpu.dynamic_rotate %233 by %c31_i32 dim 1 : vector<1x256xf32>, i32 -> vector<1x256xf32>
    %c3_161 = arith.constant 3 : index
    %c0_162 = arith.constant 0 : index
    %247 = vector.load %arg3[%c3_161, %c0_162] : memref<25x256xf32, #tpu.memory_space<vmem>>, vector<1x256xf32>
    %248 = arith.mulf %246, %247 : vector<1x256xf32>
    %249 = arith.addf %245, %248 : vector<1x256xf32>
    %c30_i32 = arith.constant 30 : i32
    %250 = tpu.dynamic_rotate %233 by %c30_i32 dim 1 : vector<1x256xf32>, i32 -> vector<1x256xf32>
    %c4_163 = arith.constant 4 : index
    %c0_164 = arith.constant 0 : index
    %251 = vector.load %arg3[%c4_163, %c0_164] : memref<25x256xf32, #tpu.memory_space<vmem>>, vector<1x256xf32>
    %252 = arith.mulf %250, %251 : vector<1x256xf32>
    %253 = arith.addf %249, %252 : vector<1x256xf32>
    %c18_i32 = arith.constant 18 : i32
    %254 = tpu.dynamic_rotate %233 by %c18_i32 dim 1 : vector<1x256xf32>, i32 -> vector<1x256xf32>
    %c5 = arith.constant 5 : index
    %c0_165 = arith.constant 0 : index
    %255 = vector.load %arg3[%c5, %c0_165] : memref<25x256xf32, #tpu.memory_space<vmem>>, vector<1x256xf32>
    %256 = arith.mulf %254, %255 : vector<1x256xf32>
    %257 = arith.addf %253, %256 : vector<1x256xf32>
    %c14_i32 = arith.constant 14 : i32
    %258 = tpu.dynamic_rotate %233 by %c14_i32 dim 1 : vector<1x256xf32>, i32 -> vector<1x256xf32>
    %c9 = arith.constant 9 : index
    %c0_166 = arith.constant 0 : index
    %259 = vector.load %arg3[%c9, %c0_166] : memref<25x256xf32, #tpu.memory_space<vmem>>, vector<1x256xf32>
    %260 = arith.mulf %258, %259 : vector<1x256xf32>
    %261 = arith.addf %257, %260 : vector<1x256xf32>
    %c2_i32 = arith.constant 2 : i32
    %262 = tpu.dynamic_rotate %233 by %c2_i32 dim 1 : vector<1x256xf32>, i32 -> vector<1x256xf32>
    %c10 = arith.constant 10 : index
    %c0_167 = arith.constant 0 : index
    %263 = vector.load %arg3[%c10, %c0_167] : memref<25x256xf32, #tpu.memory_space<vmem>>, vector<1x256xf32>
    %264 = arith.mulf %262, %263 : vector<1x256xf32>
    %265 = arith.addf %261, %264 : vector<1x256xf32>
    %c254_i32 = arith.constant 254 : i32
    %266 = tpu.dynamic_rotate %233 by %c254_i32 dim 1 : vector<1x256xf32>, i32 -> vector<1x256xf32>
    %c14 = arith.constant 14 : index
    %c0_168 = arith.constant 0 : index
    %267 = vector.load %arg3[%c14, %c0_168] : memref<25x256xf32, #tpu.memory_space<vmem>>, vector<1x256xf32>
    %268 = arith.mulf %266, %267 : vector<1x256xf32>
    %269 = arith.addf %265, %268 : vector<1x256xf32>
    %c242_i32 = arith.constant 242 : i32
    %270 = tpu.dynamic_rotate %233 by %c242_i32 dim 1 : vector<1x256xf32>, i32 -> vector<1x256xf32>
    %c15 = arith.constant 15 : index
    %c0_169 = arith.constant 0 : index
    %271 = vector.load %arg3[%c15, %c0_169] : memref<25x256xf32, #tpu.memory_space<vmem>>, vector<1x256xf32>
    %272 = arith.mulf %270, %271 : vector<1x256xf32>
    %273 = arith.addf %269, %272 : vector<1x256xf32>
    %c238_i32 = arith.constant 238 : i32
    %274 = tpu.dynamic_rotate %233 by %c238_i32 dim 1 : vector<1x256xf32>, i32 -> vector<1x256xf32>
    %c19 = arith.constant 19 : index
    %c0_170 = arith.constant 0 : index
    %275 = vector.load %arg3[%c19, %c0_170] : memref<25x256xf32, #tpu.memory_space<vmem>>, vector<1x256xf32>
    %276 = arith.mulf %274, %275 : vector<1x256xf32>
    %277 = arith.addf %273, %276 : vector<1x256xf32>
    %c226_i32 = arith.constant 226 : i32
    %278 = tpu.dynamic_rotate %233 by %c226_i32 dim 1 : vector<1x256xf32>, i32 -> vector<1x256xf32>
    %c20_171 = arith.constant 20 : index
    %c0_172 = arith.constant 0 : index
    %279 = vector.load %arg3[%c20_171, %c0_172] : memref<25x256xf32, #tpu.memory_space<vmem>>, vector<1x256xf32>
    %280 = arith.mulf %278, %279 : vector<1x256xf32>
    %281 = arith.addf %277, %280 : vector<1x256xf32>
    %c225_i32 = arith.constant 225 : i32
    %282 = tpu.dynamic_rotate %233 by %c225_i32 dim 1 : vector<1x256xf32>, i32 -> vector<1x256xf32>
    %c21 = arith.constant 21 : index
    %c0_173 = arith.constant 0 : index
    %283 = vector.load %arg3[%c21, %c0_173] : memref<25x256xf32, #tpu.memory_space<vmem>>, vector<1x256xf32>
    %284 = arith.mulf %282, %283 : vector<1x256xf32>
    %285 = arith.addf %281, %284 : vector<1x256xf32>
    %c224_i32 = arith.constant 224 : i32
    %286 = tpu.dynamic_rotate %233 by %c224_i32 dim 1 : vector<1x256xf32>, i32 -> vector<1x256xf32>
    %c22 = arith.constant 22 : index
    %c0_174 = arith.constant 0 : index
    %287 = vector.load %arg3[%c22, %c0_174] : memref<25x256xf32, #tpu.memory_space<vmem>>, vector<1x256xf32>
    %288 = arith.mulf %286, %287 : vector<1x256xf32>
    %289 = arith.addf %285, %288 : vector<1x256xf32>
    %c223_i32 = arith.constant 223 : i32
    %290 = tpu.dynamic_rotate %233 by %c223_i32 dim 1 : vector<1x256xf32>, i32 -> vector<1x256xf32>
    %c23 = arith.constant 23 : index
    %c0_175 = arith.constant 0 : index
    %291 = vector.load %arg3[%c23, %c0_175] : memref<25x256xf32, #tpu.memory_space<vmem>>, vector<1x256xf32>
    %292 = arith.mulf %290, %291 : vector<1x256xf32>
    %293 = arith.addf %289, %292 : vector<1x256xf32>
    %c222_i32 = arith.constant 222 : i32
    %294 = tpu.dynamic_rotate %233 by %c222_i32 dim 1 : vector<1x256xf32>, i32 -> vector<1x256xf32>
    %c24_176 = arith.constant 24 : index
    %c0_177 = arith.constant 0 : index
    %295 = vector.load %arg3[%c24_176, %c0_177] : memref<25x256xf32, #tpu.memory_space<vmem>>, vector<1x256xf32>
    %296 = arith.mulf %294, %295 : vector<1x256xf32>
    %297 = arith.addf %293, %296 : vector<1x256xf32>
    %cst_178 = arith.constant 3.125000e-02 : f32
    %298 = vector.broadcast %cst_178 : f32 to vector<1x256xf32>
    %299 = arith.mulf %297, %298 : vector<1x256xf32>
    %cst_179 = arith.constant 1.270000e+02 : f32
    %300 = vector.broadcast %cst_179 : f32 to vector<1x256xf32>
    %301 = arith.cmpf ole, %299, %300 : vector<1x256xf32>
    %cst_180 = arith.constant 1.270000e+02 : f32
    %302 = vector.broadcast %cst_180 : f32 to vector<1x256xf32>
    %303 = arith.divf %299, %302 : vector<1x256xf32>
    %cst_181 = arith.constant 1.000000e-03 : f32
    %304 = vector.broadcast %cst_181 : f32 to vector<1x256xf32>
    %305 = arith.addf %303, %304 : vector<1x256xf32>
    %306 = math.sqrt %305 : vector<1x256xf32>
    %cst_182 = arith.constant 1.000000e+00 : f32
    %307 = vector.broadcast %cst_182 : f32 to vector<1x256xf32>
    %308 = arith.subf %307, %306 : vector<1x256xf32>
    %cst_183 = arith.constant 1.700000e+01 : f32
    %309 = vector.broadcast %cst_183 : f32 to vector<1x256xf32>
    %310 = arith.mulf %309, %308 : vector<1x256xf32>
    %cst_184 = arith.constant 3.000000e+00 : f32
    %311 = vector.broadcast %cst_184 : f32 to vector<1x256xf32>
    %312 = arith.addf %310, %311 : vector<1x256xf32>
    %cst_185 = arith.constant 1.270000e+02 : f32
    %313 = vector.broadcast %cst_185 : f32 to vector<1x256xf32>
    %314 = arith.subf %299, %313 : vector<1x256xf32>
    %cst_186 = arith.constant 2.343750e-02 : f32
    %315 = vector.broadcast %cst_186 : f32 to vector<1x256xf32>
    %316 = arith.mulf %315, %314 : vector<1x256xf32>
    %cst_187 = arith.constant 3.000000e+00 : f32
    %317 = vector.broadcast %cst_187 : f32 to vector<1x256xf32>
    %318 = arith.addf %316, %317 : vector<1x256xf32>
    %319 = arith.select %301, %312, %318 : vector<1x256xi1>, vector<1x256xf32>
    %320 = arith.mulf %62, %62 : vector<1x256xf32>
    %321 = arith.mulf %63, %63 : vector<1x256xf32>
    %322 = arith.addf %320, %321 : vector<1x256xf32>
    %323 = math.sqrt %322 : vector<1x256xf32>
    %cst_188 = arith.constant 9.99999996E-13 : f32
    %324 = vector.broadcast %cst_188 : f32 to vector<1x256xf32>
    %325 = arith.maximumf %323, %324 : vector<1x256xf32>
    %326 = math.log %325 : vector<1x256xf32>
    %cst_189 = arith.constant 2.400000e+00 : f32
    %327 = vector.broadcast %cst_189 : f32 to vector<1x256xf32>
    %328 = arith.mulf %327, %326 : vector<1x256xf32>
    %329 = math.exp %328 : vector<1x256xf32>
    %cst_190 = arith.constant 0.000000e+00 : f32
    %330 = vector.broadcast %cst_190 : f32 to vector<1x256xf32>
    %331 = arith.cmpf ogt, %323, %330 : vector<1x256xf32>
    %cst_191 = arith.constant 0.000000e+00 : f32
    %332 = vector.broadcast %cst_191 : f32 to vector<1x256xf32>
    %333 = arith.select %331, %329, %332 : vector<1x256xi1>, vector<1x256xf32>
    %cst_192 = arith.constant 1.600000e+01 : f32
    %334 = vector.broadcast %cst_192 : f32 to vector<1x256xf32>
    %335 = arith.mulf %334, %333 : vector<1x256xf32>
    %336 = arith.mulf %323, %323 : vector<1x256xf32>
    %cst_193 = arith.constant 6.760000e+02 : f32
    %337 = vector.broadcast %cst_193 : f32 to vector<1x256xf32>
    %338 = arith.addf %336, %337 : vector<1x256xf32>
    %339 = arith.divf %335, %338 : vector<1x256xf32>
    %cst_194 = arith.constant 1.170000e-01 : f32
    %340 = vector.broadcast %cst_194 : f32 to vector<1x256xf32>
    %341 = arith.mulf %340, %339 : vector<1x256xf32>
    %342 = arith.addf %319, %341 : vector<1x256xf32>
    %343 = arith.minimumf %319, %341 : vector<1x256xf32>
    %cst_195 = arith.constant 3.000000e-01 : f32
    %344 = vector.broadcast %cst_195 : f32 to vector<1x256xf32>
    %345 = arith.mulf %344, %343 : vector<1x256xf32>
    %346 = arith.subf %342, %345 : vector<1x256xf32>
    %cst_196 = arith.constant 0.00392156886 : f32
    %347 = vector.broadcast %cst_196 : f32 to vector<1x256xf32>
    %348 = arith.mulf %346, %347 : vector<1x256xf32>
    %c0_197 = arith.constant 0 : index
    %c0_198 = arith.constant 0 : index
    %349 = vector.load %arg1[%c0_197, %c0_198] : memref<4x256xf32, #tpu.memory_space<vmem>>, vector<3x256xf32>
    %cst_199 = arith.constant 1.000000e+00 : f32
    %350 = vector.broadcast %cst_199 : f32 to vector<3x256xf32>
    %351 = arith.mulf %350, %349 : vector<3x256xf32>
    %352 = vector.broadcast %348 : vector<1x256xf32> to vector<3x256xf32>
    %353 = arith.mulf %232, %352 : vector<3x256xf32>
    %354 = arith.addf %351, %353 : vector<3x256xf32>
    %c0_200 = arith.constant 0 : index
    %c0_201 = arith.constant 0 : index
    %355 = vector.load %arg12[%c0_200, %c0_201] : memref<3x256xf32, #tpu.memory_space<vmem>>, vector<3x256xf32>
    tpu.vector_store %arg12[%c0_200, %c0_201], %354 {strides = array<i32>} : memref<3x256xf32, #tpu.memory_space<vmem>>, vector<3x256xf32>,
    return
  }
  func.func @transform_0(%arg0: i32) -> (i32, i32) {
    %c0_i32 = arith.constant 0 : i32
    %c0_i32_0 = arith.constant 0 : i32
    return %c0_i32, %arg0 : i32, i32
  }
  func.func @transform_1(%arg0: i32) -> (i32, i32) {
    %c0_i32 = arith.constant 0 : i32
    %c0_i32_0 = arith.constant 0 : i32
    return %c0_i32, %arg0 : i32, i32
  }
  func.func @transform_2(%arg0: i32) -> (i32, i32) {
    %c0_i32 = arith.constant 0 : i32
    %c0_i32_0 = arith.constant 0 : i32
    %c0_i32_1 = arith.constant 0 : i32
    return %c0_i32, %c0_i32_0 : i32, i32
  }
  func.func @transform_3(%arg0: i32) -> (i32, i32) {
    %c0_i32 = arith.constant 0 : i32
    %c0_i32_0 = arith.constant 0 : i32
    %c0_i32_1 = arith.constant 0 : i32
    return %c0_i32, %c0_i32_0 : i32, i32
  }
  func.func @transform_4(%arg0: i32) -> (i32, i32) {
    %c0_i32 = arith.constant 0 : i32
    %c0_i32_0 = arith.constant 0 : i32
    %c0_i32_1 = arith.constant 0 : i32
    return %c0_i32, %c0_i32_0 : i32, i32
  }
  func.func @transform_5(%arg0: i32) -> (i32, i32) {
    %c0_i32 = arith.constant 0 : i32
    %c0_i32_0 = arith.constant 0 : i32
    %c0_i32_1 = arith.constant 0 : i32
    return %c0_i32, %c0_i32_0 : i32, i32
  }
  func.func @transform_6(%arg0: i32) -> (i32, i32) {
    %c0_i32 = arith.constant 0 : i32
    %c0_i32_0 = arith.constant 0 : i32
    %c0_i32_1 = arith.constant 0 : i32
    return %c0_i32, %c0_i32_0 : i32, i32
  }
  func.func @transform_7(%arg0: i32) -> (i32, i32) {
    %c0_i32 = arith.constant 0 : i32
    %c0_i32_0 = arith.constant 0 : i32
    %c0_i32_1 = arith.constant 0 : i32
    return %c0_i32, %c0_i32_0 : i32, i32
  }
  func.func @transform_8(%arg0: i32) -> (i32, i32) {
    %c0_i32 = arith.constant 0 : i32
    %c0_i32_0 = arith.constant 0 : i32
    %c0_i32_1 = arith.constant 0 : i32
    return %c0_i32, %c0_i32_0 : i32, i32
  }
  func.func @transform_9(%arg0: i32) -> (i32, i32) {
    %c0_i32 = arith.constant 0 : i32
    %c0_i32_0 = arith.constant 0 : i32
    %c0_i32_1 = arith.constant 0 : i32
    return %c0_i32, %c0_i32_0 : i32, i32
  }
  func.func @transform_10(%arg0: i32) -> (i32, i32) {
    %c0_i32 = arith.constant 0 : i32
    %c0_i32_0 = arith.constant 0 : i32
    %c0_i32_1 = arith.constant 0 : i32
    return %c0_i32, %c0_i32_0 : i32, i32
  }
  func.func @transform_11(%arg0: i32) -> (i32, i32) {
    %c0_i32 = arith.constant 0 : i32
    %c0_i32_0 = arith.constant 0 : i32
    return %c0_i32, %arg0 : i32, i32
  }
}

</mosaic_0001>

<llo_original>
// kernel: encoder_with_jnd_forward.1
$region0: #{encoder_with_jnd_forward.1}
  #allocation0 [shape = 'u32[]', space=smem, size = 0x4, offset = 0x4, fixed_abs, tag = 'smem constant byte address 0x4 - core index']
  #allocation1 [shape = 'u32[144,128]{1,0:T(1,128)}', space=vmem, size = 0x12000, scoped, tag = 'internal scratch']
  #allocation2 [shape = 'bf16[36,256]{1,0:T(8,128)(2,1)}', space=vmem, size = 0x5000, scoped, tag = 'scratch operand']
  #allocation3 [shape = 'bf16[216,256]{1,0:T(8,128)(2,1)}', space=vmem, size = 0x1b000, scoped, tag = 'scratch operand']
  %s0 = inlined_call_operand.vmem [shape: f32[4,512], index: 0, kind: input, shape index: {}]
  %s1 = inlined_call_operand.vmem [shape: f32[8,512], index: 1, kind: input, shape index: {}]
  %s2 = inlined_call_operand.vmem [shape: f32[25,256], index: 2, kind: input, shape index: {}]
  %s3 = inlined_call_operand.vmem [shape: bf16[35,36], index: 3, kind: input, shape index: {}]
  %s4 = inlined_call_operand.vmem [shape: f32[16,1], index: 4, kind: input, shape index: {}]
  %s5 = inlined_call_operand.vmem [shape: bf16[16,144], index: 5, kind: input, shape index: {}]
  %s6 = inlined_call_operand.vmem [shape: f32[16,1], index: 6, kind: input, shape index: {}]
  %s7 = inlined_call_operand.vmem [shape: bf16[16,216], index: 7, kind: input, shape index: {}]
  %s8 = inlined_call_operand.vmem [shape: f32[16,1], index: 8, kind: input, shape index: {}]
  %s9 = inlined_call_operand.vmem [shape: bf16[3,16], index: 9, kind: input, shape index: {}]
  %s10 = inlined_call_operand.vmem [shape: f32[3,1], index: 10, kind: input, shape index: {}]
  %s11 = inlined_call_operand.vmem [shape: f32[3,512], index: 11, kind: output, shape index: {}]
  %s12 = sld [smem:[#allocation0]]
  $region77: #{encoder_with_jnd_forward.1} parent=0
    _
  %s14 = ssub.s32 1, %s12
  %s15 = scalar_select 0, %s14, %s12
  loop: start=0, step=1, limit=4
  $region2: #{encoder_with_jnd_forward.1} parent=0 // loop_pre_header
    _
  $region3: #{encoder_with_jnd_forward.1} parent=0 // loop_header
    %s17 = sphi 0, %s21
    %p18 = scmp.ge.s32.totalorder %s17, 4
    %s27 = sphi 0, %s29
    %s30 = sphi 0, %s27
    %s31 = sphi 0, %s30
    %s47 = sphi 0, %s31
    %s53 = sphi 0, %s55
    %s56 = sphi 0, %s53
    %s57 = sphi 0, %s56
    %s73 = sphi 0, %s57
    %s77 = sphi 0, %s77
    %s79 = sphi 0, %s77
    %s80 = sphi 0, %s79
    %s94 = sphi 0, %s80
    %s98 = sphi 0, %s98
    %s100 = sphi 0, %s98
    %s101 = sphi 0, %s100
    %s115 = sphi 0, %s101
    %s119 = sphi 0, %s119
    %s121 = sphi 0, %s119
    %s122 = sphi 0, %s121
    %s136 = sphi 0, %s122
    %s140 = sphi 0, %s140
    %s142 = sphi 0, %s140
    %s143 = sphi 0, %s142
    %s157 = sphi 0, %s143
    %s161 = sphi 0, %s161
    %s163 = sphi 0, %s161
    %s164 = sphi 0, %s163
    %s178 = sphi 0, %s164
    %s182 = sphi 0, %s182
    %s184 = sphi 0, %s182
    %s185 = sphi 0, %s184
    %s199 = sphi 0, %s185
    %s203 = sphi 0, %s203
    %s205 = sphi 0, %s203
    %s206 = sphi 0, %s205
    %s220 = sphi 0, %s206
    %s224 = sphi 0, %s224
    %s226 = sphi 0, %s224
    %s227 = sphi 0, %s226
    %s241 = sphi 0, %s227
    %s245 = sphi 0, %s245
    %s247 = sphi 0, %s245
    %s248 = sphi 0, %s247
    %s262 = sphi 0, %s248
    %s268 = sphi 0, %s270
    %s271 = sphi 0, %s268
    %s272 = sphi 0, %s271
    %s288 = sphi 0, %s272
  $region4: #{encoder_with_jnd_forward.1} parent=0 // loop_header_branch
    %20 = sbr.rel (%p18) target = $region8
  $region5: #{encoder_with_jnd_forward.1} parent=0 // loop_body
    %s22 = ssub.s32 %s17, 1
    %s23 = ssub.s32 %s17, 2
    %s24 = sadd.s32 %s17, 1
    %s25 = ssub.s32 %s17, %s24
    %p26 = scmp.eq.s32.totalorder %s25, 0
    %s28 = sadd.s32 %s27, 1
    %s29 = scalar_select %p26, %s27, %s28
    %p32 = pneg %p26
    %p33 = scmp.eq.s32.totalorder %s17, 1
    %p34 = por %p32, %p33
    %p35 = scmp.ne.s32.totalorder %s27, %s30
    %p36 = scmp.eq.s32.totalorder %s17, 0
    %p37 = por %p35, %p36
    %p38 = scmp.ne.s32.totalorder %s27, %s30
    %p39 = scmp.eq.s32.totalorder %s22, 1
    %p40 = por %p38, %p39
    %p41 = scmp.ne.s32.totalorder %s30, %s31
    %p42 = scmp.eq.s32.totalorder %s22, 0
    %p43 = por %p41, %p42
    %p44 = scmp.ne.s32.totalorder %s30, %s31
    %p45 = scmp.eq.s32.totalorder %s23, 1
    %p46 = por %p44, %p45
    %p48 = scmp.ne.s32.totalorder %s31, %s47
    %p49 = scmp.eq.s32.totalorder %s23, 0
    %p50 = por %p48, %p49
    %s51 = ssub.s32 %s17, %s24
    %p52 = scmp.eq.s32.totalorder %s51, 0
    %s54 = sadd.s32 %s53, 1
    %s55 = scalar_select %p52, %s53, %s54
    %p58 = pneg %p52
    %p59 = scmp.eq.s32.totalorder %s17, 1
    %p60 = por %p58, %p59
    %p61 = scmp.ne.s32.totalorder %s53, %s56
    %p62 = scmp.eq.s32.totalorder %s17, 0
    %p63 = por %p61, %p62
    %p64 = scmp.ne.s32.totalorder %s53, %s56
    %p65 = scmp.eq.s32.totalorder %s22, 1
    %p66 = por %p64, %p65
    %p67 = scmp.ne.s32.totalorder %s56, %s57
    %p68 = scmp.eq.s32.totalorder %s22, 0
    %p69 = por %p67, %p68
    %p70 = scmp.ne.s32.totalorder %s56, %s57
    %p71 = scmp.eq.s32.totalorder %s23, 1
    %p72 = por %p70, %p71
    %p74 = scmp.ne.s32.totalorder %s57, %s73
    %p75 = scmp.eq.s32.totalorder %s23, 0
    %p76 = por %p74, %p75
    %s78 = sadd.s32 %s77, 1
    %p81 = scmp.eq.s32.totalorder %s17, 1
    %p82 = scmp.ne.s32.totalorder %s77, %s79
    %p83 = scmp.eq.s32.totalorder %s17, 0
    %p84 = por %p82, %p83
    %p85 = scmp.ne.s32.totalorder %s77, %s79
    %p86 = scmp.eq.s32.totalorder %s22, 1
    %p87 = por %p85, %p86
    %p88 = scmp.ne.s32.totalorder %s79, %s80
    %p89 = scmp.eq.s32.totalorder %s22, 0
    %p90 = por %p88, %p89
    %p91 = scmp.ne.s32.totalorder %s79, %s80
    %p92 = scmp.eq.s32.totalorder %s23, 1
    %p93 = por %p91, %p92
    %p95 = scmp.ne.s32.totalorder %s80, %s94
    %p96 = scmp.eq.s32.totalorder %s23, 0
    %p97 = por %p95, %p96
    %s99 = sadd.s32 %s98, 1
    %p102 = scmp.eq.s32.totalorder %s17, 1
    %p103 = scmp.ne.s32.totalorder %s98, %s100
    %p104 = scmp.eq.s32.totalorder %s17, 0
    %p105 = por %p103, %p104
    %p106 = scmp.ne.s32.totalorder %s98, %s100
    %p107 = scmp.eq.s32.totalorder %s22, 1
    %p108 = por %p106, %p107
    %p109 = scmp.ne.s32.totalorder %s100, %s101
    %p110 = scmp.eq.s32.totalorder %s22, 0
    %p111 = por %p109, %p110
    %p112 = scmp.ne.s32.totalorder %s100, %s101
    %p113 = scmp.eq.s32.totalorder %s23, 1
    %p114 = por %p112, %p113
    %p116 = scmp.ne.s32.totalorder %s101, %s115
    %p117 = scmp.eq.s32.totalorder %s23, 0
    %p118 = por %p116, %p117
    %s120 = sadd.s32 %s119, 1
    %p123 = scmp.eq.s32.totalorder %s17, 1
    %p124 = scmp.ne.s32.totalorder %s119, %s121
    %p125 = scmp.eq.s32.totalorder %s17, 0
    %p126 = por %p124, %p125
    %p127 = scmp.ne.s32.totalorder %s119, %s121
    %p128 = scmp.eq.s32.totalorder %s22, 1
    %p129 = por %p127, %p128
    %p130 = scmp.ne.s32.totalorder %s121, %s122
    %p131 = scmp.eq.s32.totalorder %s22, 0
    %p132 = por %p130, %p131
    %p133 = scmp.ne.s32.totalorder %s121, %s122
    %p134 = scmp.eq.s32.totalorder %s23, 1
    %p135 = por %p133, %p134
    %p137 = scmp.ne.s32.totalorder %s122, %s136
    %p138 = scmp.eq.s32.totalorder %s23, 0
    %p139 = por %p137, %p138
    %s141 = sadd.s32 %s140, 1
    %p144 = scmp.eq.s32.totalorder %s17, 1
    %p145 = scmp.ne.s32.totalorder %s140, %s142
    %p146 = scmp.eq.s32.totalorder %s17, 0
    %p147 = por %p145, %p146
    %p148 = scmp.ne.s32.totalorder %s140, %s142
    %p149 = scmp.eq.s32.totalorder %s22, 1
    %p150 = por %p148, %p149
    %p151 = scmp.ne.s32.totalorder %s142, %s143
    %p152 = scmp.eq.s32.totalorder %s22, 0
    %p153 = por %p151, %p152
    %p154 = scmp.ne.s32.totalorder %s142, %s143
    %p155 = scmp.eq.s32.totalorder %s23, 1
    %p156 = por %p154, %p155
    %p158 = scmp.ne.s32.totalorder %s143, %s157
    %p159 = scmp.eq.s32.totalorder %s23, 0
    %p160 = por %p158, %p159
    %s162 = sadd.s32 %s161, 1
    %p165 = scmp.eq.s32.totalorder %s17, 1
    %p166 = scmp.ne.s32.totalorder %s161, %s163
    %p167 = scmp.eq.s32.totalorder %s17, 0
    %p168 = por %p166, %p167
    %p169 = scmp.ne.s32.totalorder %s161, %s163
    %p170 = scmp.eq.s32.totalorder %s22, 1
    %p171 = por %p169, %p170
    %p172 = scmp.ne.s32.totalorder %s163, %s164
    %p173 = scmp.eq.s32.totalorder %s22, 0
    %p174 = por %p172, %p173
    %p175 = scmp.ne.s32.totalorder %s163, %s164
    %p176 = scmp.eq.s32.totalorder %s23, 1
    %p177 = por %p175, %p176
    %p179 = scmp.ne.s32.totalorder %s164, %s178
    %p180 = scmp.eq.s32.totalorder %s23, 0
    %p181 = por %p179, %p180
    %s183 = sadd.s32 %s182, 1
    %p186 = scmp.eq.s32.totalorder %s17, 1
    %p187 = scmp.ne.s32.totalorder %s182, %s184
    %p188 = scmp.eq.s32.totalorder %s17, 0
    %p189 = por %p187, %p188
    %p190 = scmp.ne.s32.totalorder %s182, %s184
    %p191 = scmp.eq.s32.totalorder %s22, 1
    %p192 = por %p190, %p191
    %p193 = scmp.ne.s32.totalorder %s184, %s185
    %p194 = scmp.eq.s32.totalorder %s22, 0
    %p195 = por %p193, %p194
    %p196 = scmp.ne.s32.totalorder %s184, %s185
    %p197 = scmp.eq.s32.totalorder %s23, 1
    %p198 = por %p196, %p197
    %p200 = scmp.ne.s32.totalorder %s185, %s199
    %p201 = scmp.eq.s32.totalorder %s23, 0
    %p202 = por %p200, %p201
    %s204 = sadd.s32 %s203, 1
    %p207 = scmp.eq.s32.totalorder %s17, 1
    %p208 = scmp.ne.s32.totalorder %s203, %s205
    %p209 = scmp.eq.s32.totalorder %s17, 0
    %p210 = por %p208, %p209
    %p211 = scmp.ne.s32.totalorder %s203, %s205
    %p212 = scmp.eq.s32.totalorder %s22, 1
    %p213 = por %p211, %p212
    %p214 = scmp.ne.s32.totalorder %s205, %s206
    %p215 = scmp.eq.s32.totalorder %s22, 0
    %p216 = por %p214, %p215
    %p217 = scmp.ne.s32.totalorder %s205, %s206
    %p218 = scmp.eq.s32.totalorder %s23, 1
    %p219 = por %p217, %p218
    %p221 = scmp.ne.s32.totalorder %s206, %s220
    %p222 = scmp.eq.s32.totalorder %s23, 0
    %p223 = por %p221, %p222
    %s225 = sadd.s32 %s224, 1
    %p228 = scmp.eq.s32.totalorder %s17, 1
    %p229 = scmp.ne.s32.totalorder %s224, %s226
    %p230 = scmp.eq.s32.totalorder %s17, 0
    %p231 = por %p229, %p230
    %p232 = scmp.ne.s32.totalorder %s224, %s226
    %p233 = scmp.eq.s32.totalorder %s22, 1
    %p234 = por %p232, %p233
    %p235 = scmp.ne.s32.totalorder %s226, %s227
    %p236 = scmp.eq.s32.totalorder %s22, 0
    %p237 = por %p235, %p236
    %p238 = scmp.ne.s32.totalorder %s226, %s227
    %p239 = scmp.eq.s32.totalorder %s23, 1
    %p240 = por %p238, %p239
    %p242 = scmp.ne.s32.totalorder %s227, %s241
    %p243 = scmp.eq.s32.totalorder %s23, 0
    %p244 = por %p242, %p243
    %s246 = sadd.s32 %s245, 1
    %p249 = scmp.eq.s32.totalorder %s17, 1
    %p250 = scmp.ne.s32.totalorder %s245, %s247
    %p251 = scmp.eq.s32.totalorder %s17, 0
    %p252 = por %p250, %p251
    %p253 = scmp.ne.s32.totalorder %s245, %s247
    %p254 = scmp.eq.s32.totalorder %s22, 1
    %p255 = por %p253, %p254
    %p256 = scmp.ne.s32.totalorder %s247, %s248
    %p257 = scmp.eq.s32.totalorder %s22, 0
    %p258 = por %p256, %p257
    %p259 = scmp.ne.s32.totalorder %s247, %s248
    %p260 = scmp.eq.s32.totalorder %s23, 1
    %p261 = por %p259, %p260
    %p263 = scmp.ne.s32.totalorder %s248, %s262
    %p264 = scmp.eq.s32.totalorder %s23, 0
    %p265 = por %p263, %p264
    %s266 = ssub.s32 %s17, %s24
    %p267 = scmp.eq.s32.totalorder %s266, 0
    %s269 = sadd.s32 %s268, 1
    %s270 = scalar_select %p267, %s268, %s269
    %p273 = pneg %p267
    %p274 = scmp.eq.s32.totalorder %s17, 1
    %p275 = por %p273, %p274
    %p276 = scmp.ne.s32.totalorder %s268, %s271
    %p277 = scmp.eq.s32.totalorder %s17, 0
    %p278 = por %p276, %p277
    %p279 = scmp.ne.s32.totalorder %s268, %s271
    %p280 = scmp.eq.s32.totalorder %s22, 1
    %p281 = por %p279, %p280
    %p282 = scmp.ne.s32.totalorder %s271, %s272
    %p283 = scmp.eq.s32.totalorder %s22, 0
    %p284 = por %p282, %p283
    %p285 = scmp.ne.s32.totalorder %s271, %s272
    %p286 = scmp.eq.s32.totalorder %s23, 1
    %p287 = por %p285, %p286
    %p289 = scmp.ne.s32.totalorder %s272, %s288
    %p290 = scmp.eq.s32.totalorder %s23, 0
    %p291 = por %p289, %p290
    %p292 = scmp.le.s32.totalorder 1, %s17
    %p293 = scmp.lt.s32.totalorder %s17, 3
    %p294 = pnand %p292, %p293
    %p295 = pneg %p294
    // Predicated region
    $region9: #{encoder_with_jnd_forward.1} parent=5 // pred_check
      _
    $region10: #{encoder_with_jnd_forward.1} parent=5 // pred_check_branch
      %297 = sbr.rel (%p294) target = $region12
    $region11: #{encoder_with_jnd_forward.1} parent=5 // pred_region
      %s298 = ssub.s32 %s17, 1
      // Predicated region
      $region13: #{encoder_with_jnd_forward.1} parent=11 // pred_check
        %p299 = pneg %p90
      $region14: #{encoder_with_jnd_forward.1} parent=11 // pred_check_branch
        %301 = sbr.rel (%p299) target = $region16
      $region15: #{encoder_with_jnd_forward.1} parent=11 // pred_region
        _
      $region16: #{encoder_with_jnd_forward.1} parent=11 // pred_fallthru
        _
      // Predicated region
      $region17: #{encoder_with_jnd_forward.1} parent=11 // pred_check
        %p302 = pneg %p111
      $region18: #{encoder_with_jnd_forward.1} parent=11 // pred_check_branch
        %304 = sbr.rel (%p302) target = $region20
      $region19: #{encoder_with_jnd_forward.1} parent=11 // pred_region
        _
      $region20: #{encoder_with_jnd_forward.1} parent=11 // pred_fallthru
        _
      // Predicated region
      $region21: #{encoder_with_jnd_forward.1} parent=11 // pred_check
        %p305 = pneg %p132
      $region22: #{encoder_with_jnd_forward.1} parent=11 // pred_check_branch
        %307 = sbr.rel (%p305) target = $region24
      $region23: #{encoder_with_jnd_forward.1} parent=11 // pred_region
        _
      $region24: #{encoder_with_jnd_forward.1} parent=11 // pred_fallthru
        _
      // Predicated region
      $region25: #{encoder_with_jnd_forward.1} parent=11 // pred_check
        %p308 = pneg %p153
      $region26: #{encoder_with_jnd_forward.1} parent=11 // pred_check_branch
        %310 = sbr.rel (%p308) target = $region28
      $region27: #{encoder_with_jnd_forward.1} parent=11 // pred_region
        _
      $region28: #{encoder_with_jnd_forward.1} parent=11 // pred_fallthru
        _
      // Predicated region
      $region29: #{encoder_with_jnd_forward.1} parent=11 // pred_check
        %p311 = pneg %p174
      $region30: #{encoder_with_jnd_forward.1} parent=11 // pred_check_branch
        %313 = sbr.rel (%p311) target = $region32
      $region31: #{encoder_with_jnd_forward.1} parent=11 // pred_region
        _
      $region32: #{encoder_with_jnd_forward.1} parent=11 // pred_fallthru
        _
      // Predicated region
      $region33: #{encoder_with_jnd_forward.1} parent=11 // pred_check
        %p314 = pneg %p195
      $region34: #{encoder_with_jnd_forward.1} parent=11 // pred_check_branch
        %316 = sbr.rel (%p314) target = $region36
      $region35: #{encoder_with_jnd_forward.1} parent=11 // pred_region
        _
      $region36: #{encoder_with_jnd_forward.1} parent=11 // pred_fallthru
        _
      // Predicated region
      $region37: #{encoder_with_jnd_forward.1} parent=11 // pred_check
        %p317 = pneg %p216
      $region38: #{encoder_with_jnd_forward.1} parent=11 // pred_check_branch
        %319 = sbr.rel (%p317) target = $region40
      $region39: #{encoder_with_jnd_forward.1} parent=11 // pred_region
        _
      $region40: #{encoder_with_jnd_forward.1} parent=11 // pred_fallthru
        _
      // Predicated region
      $region41: #{encoder_with_jnd_forward.1} parent=11 // pred_check
        %p320 = pneg %p237
      $region42: #{encoder_with_jnd_forward.1} parent=11 // pred_check_branch
        %322 = sbr.rel (%p320) target = $region44
      $region43: #{encoder_with_jnd_forward.1} parent=11 // pred_region
        _
      $region44: #{encoder_with_jnd_forward.1} parent=11 // pred_fallthru
        _
      // Predicated region
      $region45: #{encoder_with_jnd_forward.1} parent=11 // pred_check
        %p323 = pneg %p258
      $region46: #{encoder_with_jnd_forward.1} parent=11 // pred_check_branch
        %325 = sbr.rel (%p323) target = $region48
      $region47: #{encoder_with_jnd_forward.1} parent=11 // pred_region
        _
      $region48: #{encoder_with_jnd_forward.1} parent=11 // pred_fallthru
        _
    $region12: #{encoder_with_jnd_forward.1} parent=5 // pred_fallthru
      _
    %p326 = scmp.lt.s32.totalorder %s17, 2
    // Predicated region
    $region49: #{encoder_with_jnd_forward.1} parent=5 // pred_check
      %p327 = pneg %p326
    $region50: #{encoder_with_jnd_forward.1} parent=5 // pred_check_branch
      %329 = sbr.rel (%p327) target = $region52
    $region51: #{encoder_with_jnd_forward.1} parent=5 // pred_region
      // Predicated region
      $region53: #{encoder_with_jnd_forward.1} parent=51 // pred_check
        %p330 = pneg %p37
      $region54: #{encoder_with_jnd_forward.1} parent=51 // pred_check_branch
        %332 = sbr.rel (%p330) target = $region56
      $region55: #{encoder_with_jnd_forward.1} parent=51 // pred_region
        %s333 = smul.u32 2, %s17
        %p334 = scmp.lt.s32.totalorder %s333, 3
        %s335 = scalar_select %p334, %s333, 3
        %s336 = smul.addr %s335, 4
        %s337 = scalar_lea.vmem %s0, %s336
        %s338 = smul.u32 2, %s17
      $region56: #{encoder_with_jnd_forward.1} parent=51 // pred_fallthru
        _
      // Predicated region
      $region57: #{encoder_with_jnd_forward.1} parent=51 // pred_check
        %p339 = pneg %p63
      $region58: #{encoder_with_jnd_forward.1} parent=51 // pred_check_branch
        %341 = sbr.rel (%p339) target = $region60
      $region59: #{encoder_with_jnd_forward.1} parent=51 // pred_region
        %s342 = smul.u32 2, %s17
        %p343 = scmp.lt.s32.totalorder %s342, 3
        %s344 = scalar_select %p343, %s342, 3
        %s345 = smul.addr %s344, 8
        %s346 = scalar_lea.vmem %s1, %s345
        %s347 = smul.u32 2, %s17
      $region60: #{encoder_with_jnd_forward.1} parent=51 // pred_fallthru
        _
    $region52: #{encoder_with_jnd_forward.1} parent=5 // pred_fallthru
      _
    %p348 = scmp.le.s32.totalorder 1, %s17
    %p349 = scmp.lt.s32.totalorder %s17, 3
    %p350 = pnand %p348, %p349
    %p351 = pneg %p350
    // Predicated region
    $region61: #{encoder_with_jnd_forward.1} parent=5 // pred_check
      _
    $region62: #{encoder_with_jnd_forward.1} parent=5 // pred_check_branch
      %353 = sbr.rel (%p350) target = $region64
    $region63: #{encoder_with_jnd_forward.1} parent=5 // pred_region
      %s354 = ssub.s32 %s17, 1
      %s355 = smul.u32 2, %s22
      %p356 = scmp.lt.s32.totalorder %s355, 3
      %s357 = scalar_select %p356, %s355, 3
      %s358 = smul.addr %s357, 4
      %s359 = scalar_lea.vmem %s0, %s358
      %p360 = pneg %p43
      %p361 = pneg %p40
      %s362 = smul.u32 2, %s22
      %p363 = scmp.lt.s32.totalorder %s362, 3
      %s364 = scalar_select %p363, %s362, 3
      %s365 = smul.addr %s364, 8
      %s366 = scalar_lea.vmem %s1, %s365
      %p367 = pneg %p69
      %p368 = pneg %p66
      %p369 = pneg %p90
      %p370 = pneg %p87
      %p371 = pneg %p111
      %p372 = pneg %p108
      %p373 = pneg %p132
      %p374 = pneg %p129
      %p375 = pneg %p153
      %p376 = pneg %p150
      %p377 = pneg %p174
      %p378 = pneg %p171
      %p379 = pneg %p195
      %p380 = pneg %p192
      %p381 = pneg %p216
      %p382 = pneg %p213
      %p383 = pneg %p237
      %p384 = pneg %p234
      %p385 = pneg %p258
      %p386 = pneg %p255
      %p387 = pneg %p284
      %p388 = pneg %p281
      %s389 = smul.u32 2, %s22
      %p390 = scmp.lt.s32.totalorder %s389, 3
      %s391 = scalar_select %p390, %s389, 3
      %s392 = smul.addr %s391, 4
      %s393 = scalar_lea.vmem %s11, %s392
      %s394 = smul.u32 2, %s22
      %p395 = scmp.lt.s32.totalorder %s394, 3
      %s396 = scalar_select %p395, %s394, 3
      %s397 = smul.addr %s396, 4
      %s398 = scalar_lea.vmem %s0, %s397
      %s399 = smul.u32 2, %s22
      %s400 = smul.u32 2, %s22
      %p401 = scmp.lt.s32.totalorder %s400, 3
      %s402 = scalar_select %p401, %s400, 3
      %s403 = smul.addr %s402, 8
      %s404 = scalar_lea.vmem %s1, %s403
      %s405 = smul.u32 2, %s22
      %s406 = smul.u32 2, %s22
      %p407 = scmp.lt.s32.totalorder %s406, 3
      %s408 = scalar_select %p407, %s406, 3
      %s409 = smul.addr %s408, 4
      %s410 = scalar_lea.vmem %s11, %s409
      %s411 = smul.u32 2, %s22
      %v413 = vld [vmem:[%s398] sm:$0xff]
      %v415 = vcombine.high %v413, %v413
      %417 = vrot.lane.b32.xlu0 %v413, 17
      %v418 = vpop.permute.xlu0 %417
      %419 = vrot.lane.b32.xlu0 %v415, 17
      %v420 = vpop.permute.xlu0 %419
      %v421 = vlaneseq
      %v422 = vand.u32 %v421, 127
      %vm423 = vcmp.lt.s32.totalorder %v422, 17
      %v424 = vsel %vm423, %v418, %v420
      %v425 = vsel %vm423, %v420, %v418
      %s426 = scalar_lea.vmem %s2, 6
      %v427 = vld [vmem:[%s426] ss:$8 sm:$0x3]
      %v429 = vlaneseq
      %v430 = vshrl.u32 %v429, 7
      %v431 = vsub.s32 0, %v430
      %v432 = vrot.slane %v427, %v431
      %v433 = vlaneseq
      %v434 = vshrl.u32 %v433, 7
      %v435 = vsub.s32 1, %v434
      %v436 = vrot.slane %v427, %v435
      %v439 = vmul.f32 %v425, %v432
      %v440 = vmul.f32 %v424, %v436
      %v441 = vpack.c.bf16 %v439, %v439
      %v442 = vpack.c.bf16 %v440, %v440
      %v445 = vunpack.c.l.b16 %v441
      %v446 = vunpack.c.l.b16 %v442
      %v447 = vpack.c.b16 %v446, %v445
      %449 = vst [vmem:[#allocation2] sm:$0x33] %v447
      %450 = vrot.lane.b32.xlu0 %v413, 16
      %v451 = vpop.permute.xlu0 %450
      %452 = vrot.lane.b32.xlu0 %v415, 16
      %v453 = vpop.permute.xlu0 %452
      %vm454 = vcmp.lt.s32.totalorder %v422, 16
      %v455 = vsel %vm454, %v451, %v453
      %v456 = vsel %vm454, %v453, %v451
      %s457 = scalar_lea.vmem %s2, 7
      %v458 = vld [vmem:[%s457] ss:$8 sm:$0x3]
      %v460 = vlaneseq
      %v461 = vshrl.u32 %v460, 7
      %v462 = vsub.s32 0, %v461
      %v463 = vrot.slane %v458, %v462
      %v464 = vlaneseq
      %v465 = vshrl.u32 %v464, 7
      %v466 = vsub.s32 1, %v465
      %v467 = vrot.slane %v458, %v466
      %v470 = vmul.f32 %v456, %v463
      %v471 = vmul.f32 %v455, %v467
      %v472 = vpack.c.bf16 %v470, %v470
      %v473 = vpack.c.bf16 %v471, %v471
      %v476 = vunpack.c.l.b16 %v472
      %v477 = vunpack.c.l.b16 %v473
      %v478 = vpack.c.b16 %v477, %v476
      %v479 = vrot.slane %v478, 6
      %481 = vst [vmem:[#allocation2] sm:$0xcc] %v479
      %482 = vrot.lane.b32.xlu0 %v413, 15
      %v483 = vpop.permute.xlu0 %482
      %484 = vrot.lane.b32.xlu0 %v415, 15
      %v485 = vpop.permute.xlu0 %484
      %vm486 = vcmp.lt.s32.totalorder %v422, 15
      %v487 = vsel %vm486, %v483, %v485
      %v488 = vsel %vm486, %v485, %v483
      %s489 = scalar_lea.vmem %s2, 16
      %v490 = vld [vmem:[%s489] ss:$8 sm:$0x3]
      %v492 = vlaneseq
      %v493 = vshrl.u32 %v492, 7
      %v494 = vsub.s32 0, %v493
      %v495 = vrot.slane %v490, %v494
      %v496 = vlaneseq
      %v497 = vshrl.u32 %v496, 7
      %v498 = vsub.s32 1, %v497
      %v499 = vrot.slane %v490, %v498
      %v502 = vmul.f32 %v488, %v495
      %v503 = vmul.f32 %v487, %v499
      %v504 = vpack.c.bf16 %v502, %v502
      %v505 = vpack.c.bf16 %v503, %v503
      %v508 = vunpack.c.l.b16 %v504
      %v509 = vunpack.c.l.b16 %v505
      %v510 = vpack.c.b16 %v509, %v508
      %512 = vst [vmem:[#allocation2 + $0x8] sm:$0x33] %v510
      %513 = vrot.lane.b32.xlu0 %v413, 1
      %v514 = vpop.permute.xlu0 %513
      %515 = vrot.lane.b32.xlu0 %v415, 1
      %v516 = vpop.permute.xlu0 %515
      %vm517 = vcmp.lt.s32.totalorder %v422, 1
      %v518 = vsel %vm517, %v514, %v516
      %v519 = vsel %vm517, %v516, %v514
      %s520 = scalar_lea.vmem %s2, 19
      %v521 = vld [vmem:[%s520] ss:$8 sm:$0x3]
      %v523 = vlaneseq
      %v524 = vshrl.u32 %v523, 7
      %v525 = vsub.s32 0, %v524
      %v526 = vrot.slane %v521, %v525
      %v527 = vlaneseq
      %v528 = vshrl.u32 %v527, 7
      %v529 = vsub.s32 1, %v528
      %v530 = vrot.slane %v521, %v529
      %v533 = vmul.f32 %v519, %v526
      %v534 = vmul.f32 %v518, %v530
      %v535 = vpack.c.bf16 %v533, %v533
      %v536 = vpack.c.bf16 %v534, %v534
      %v539 = vunpack.c.l.b16 %v535
      %v540 = vunpack.c.l.b16 %v536
      %v541 = vpack.c.b16 %v540, %v539
      %v542 = vrot.slane %v541, 6
      %544 = vst [vmem:[#allocation2 + $0x8] sm:$0xcc] %v542
      %v545 = vpack.c.bf16 %v413, %v413
      %v546 = vpack.c.bf16 %v415, %v415
      %v549 = vunpack.c.l.b16 %v545
      %v550 = vunpack.c.l.b16 %v546
      %v551 = vpack.c.b16 %v550, %v549
      %553 = vst [vmem:[#allocation2 + $0x10] sm:$0x33] %v551
      %554 = vrot.lane.b32.xlu0 %v413, 127
      %v555 = vpop.permute.xlu0 %554
      %556 = vrot.lane.b32.xlu0 %v415, 127
      %v557 = vpop.permute.xlu0 %556
      %vm558 = vcmp.lt.s32.totalorder %v422, 127
      %v559 = vsel %vm558, %v555, %v557
      %v560 = vsel %vm558, %v557, %v555
      %s561 = scalar_lea.vmem %s2, 21
      %v562 = vld [vmem:[%s561] ss:$8 sm:$0x3]
      %v564 = vlaneseq
      %v565 = vshrl.u32 %v564, 7
      %v566 = vsub.s32 0, %v565
      %v567 = vrot.slane %v562, %v566
      %v568 = vlaneseq
      %v569 = vshrl.u32 %v568, 7
      %v570 = vsub.s32 1, %v569
      %v571 = vrot.slane %v562, %v570
      %v574 = vmul.f32 %v559, %v567
      %v575 = vmul.f32 %v560, %v571
      %v576 = vpack.c.bf16 %v574, %v574
      %v577 = vpack.c.bf16 %v575, %v575
      %v580 = vunpack.c.l.b16 %v576
      %v581 = vunpack.c.l.b16 %v577
      %v582 = vpack.c.b16 %v581, %v580
      %v583 = vrot.slane %v582, 6
      %585 = vst [vmem:[#allocation2 + $0x10] sm:$0xcc] %v583
      %586 = vrot.lane.b32.xlu0 %v413, 113
      %v587 = vpop.permute.xlu0 %586
      %588 = vrot.lane.b32.xlu0 %v415, 113
      %v589 = vpop.permute.xlu0 %588
      %vm590 = vcmp.lt.s32.totalorder %v422, 113
      %v591 = vsel %vm590, %v587, %v589
      %v592 = vsel %vm590, %v589, %v587
      %s593 = scalar_lea.vmem %s2, 32
      %v594 = vld [vmem:[%s593] ss:$8 sm:$0x3]
      %v596 = vlaneseq
      %v597 = vshrl.u32 %v596, 7
      %v598 = vsub.s32 0, %v597
      %v599 = vrot.slane %v594, %v598
      %v600 = vlaneseq
      %v601 = vshrl.u32 %v600, 7
      %v602 = vsub.s32 1, %v601
      %v603 = vrot.slane %v594, %v602
      %v606 = vmul.f32 %v591, %v599
      %v607 = vmul.f32 %v592, %v603
      %v608 = vpack.c.bf16 %v606, %v606
      %v609 = vpack.c.bf16 %v607, %v607
      %v612 = vunpack.c.l.b16 %v608
      %v613 = vunpack.c.l.b16 %v609
      %v614 = vpack.c.b16 %v613, %v612
      %616 = vst [vmem:[#allocation2 + $0x18] sm:$0x33] %v614
      %617 = vrot.lane.b32.xlu0 %v413, 112
      %v618 = vpop.permute.xlu0 %617
      %619 = vrot.lane.b32.xlu0 %v415, 112
      %v620 = vpop.permute.xlu0 %619
      %vm621 = vcmp.lt.s32.totalorder %v422, 112
      %v622 = vsel %vm621, %v618, %v620
      %v623 = vsel %vm621, %v620, %v618
      %s624 = scalar_lea.vmem %s2, 33
      %v625 = vld [vmem:[%s624] ss:$8 sm:$0x3]
      %v627 = vlaneseq
      %v628 = vshrl.u32 %v627, 7
      %v629 = vsub.s32 0, %v628
      %v630 = vrot.slane %v625, %v629
      %v631 = vlaneseq
      %v632 = vshrl.u32 %v631, 7
      %v633 = vsub.s32 1, %v632
      %v634 = vrot.slane %v625, %v633
      %v637 = vmul.f32 %v622, %v630
      %v638 = vmul.f32 %v623, %v634
      %v639 = vpack.c.bf16 %v637, %v637
      %v640 = vpack.c.bf16 %v638, %v638
      %v643 = vunpack.c.l.b16 %v639
      %v644 = vunpack.c.l.b16 %v640
      %v645 = vpack.c.b16 %v644, %v643
      %v646 = vrot.slane %v645, 6
      %648 = vst [vmem:[#allocation2 + $0x18] sm:$0xcc] %v646
      %649 = vrot.lane.b32.xlu0 %v413, 111
      %v650 = vpop.permute.xlu0 %649
      %651 = vrot.lane.b32.xlu0 %v415, 111
      %v652 = vpop.permute.xlu0 %651
      %vm653 = vcmp.lt.s32.totalorder %v422, 111
      %v654 = vsel %vm653, %v650, %v652
      %v655 = vsel %vm653, %v652, %v650
      %s656 = scalar_lea.vmem %s2, 34
      %v657 = vld [vmem:[%s656] ss:$8 sm:$0x3]
      %v659 = vlaneseq
      %v660 = vshrl.u32 %v659, 7
      %v661 = vsub.s32 0, %v660
      %v662 = vrot.slane %v657, %v661
      %v663 = vlaneseq
      %v664 = vshrl.u32 %v663, 7
      %v665 = vsub.s32 1, %v664
      %v666 = vrot.slane %v657, %v665
      %v669 = vmul.f32 %v654, %v662
      %v670 = vmul.f32 %v655, %v666
      %v671 = vpack.c.bf16 %v669, %v669
      %v672 = vpack.c.bf16 %v670, %v670
      %v675 = vunpack.c.l.b16 %v671
      %v676 = vunpack.c.l.b16 %v672
      %v677 = vpack.c.b16 %v676, %v675
      %679 = vst [vmem:[#allocation2 + $0x20] sm:$0x33] %v677
      %v680 = vld [vmem:[%s3] sm:$0xf]
      %v681 = vld [vmem:[%s3 + $0x4] sm:$0xf]
      %v682 = vld [vmem:[%s3 + $0x8] sm:$0xf]
      %v683 = vld [vmem:[%s3 + $0xc] sm:$0xf]
      %v684 = vld [vmem:[%s3 + $0x10] sm:$0x3]
      %v685 = vld [vmem:[#allocation2] sm:$0xff]
      %v686 = vld [vmem:[#allocation2 + $0x8] sm:$0xff]
      %v687 = vld [vmem:[#allocation2 + $0x10] sm:$0xff]
      %v688 = vld [vmem:[#allocation2 + $0x18] sm:$0xff]
      %v689 = vld [vmem:[#allocation2 + $0x20] sm:$0x33]
      %v695 = vunpack.c.l.b16 %v680
      %v696 = vunpack.c.l.b16 %v681
      %v697 = vunpack.c.l.b16 %v682
      %v698 = vunpack.c.l.b16 %v683
      %v699 = vunpack.c.l.b16 %v684
      %v700 = vpack.c.b16 %v696, %v695
      %v701 = vpack.c.b16 %v698, %v697
      %v702 = vpack.c.b16 %v699, %v699
      %v708 = vunpack.c.l.b16 %v685
      %v709 = vunpack.c.h.b16 %v685
      %v710 = vunpack.c.l.b16 %v686
      %v711 = vunpack.c.h.b16 %v686
      %v712 = vunpack.c.l.b16 %v687
      %v713 = vunpack.c.h.b16 %v687
      %v714 = vunpack.c.l.b16 %v688
      %v715 = vunpack.c.h.b16 %v688
      %v716 = vunpack.c.l.b16 %v689
      %v717 = vunpack.c.h.b16 %v689
      %v718 = vpack.c.b16 %v710, %v708
      %v719 = vpack.c.b16 %v711, %v709
      %v720 = vpack.c.b16 %v714, %v712
      %v721 = vpack.c.b16 %v715, %v713
      %v722 = vpack.c.b16 %v716, %v716
      %v723 = vpack.c.b16 %v717, %v717
      %vm728 = vcmask 293888
      %v730 = vsel %vm728, %v700, 0
      %v733 = vsel %vm728, %v701, 0
      %v736 = vsel %vm728, %v702, 0
      %vm738 = vcmask 1041408
      %v740 = vsel %vm738, %v722, 0
      %v743 = vsel %vm738, %v723, 0
      %745 = vmatprep.subr.bf16.mxu0 %v719
      %746 = vmatpush1.bf16.msra.mxu0 %v718
      %747 = vmatprep.subr.bf16.mxu0 %v721
      %748 = vmatpush1.bf16.msra.mxu0 %v720
      %749 = vmatprep.subr.bf16.mxu0 %v743
      %750 = vmatpush1.bf16.msra.mxu0 %v740
      %751 = vmatprep.subr.bf16.mxu0 0
      %752 = vmatpush1.bf16.msra.mxu0 0
      %753 = vmatprep.subr.bf16.mxu0 0
      %754 = vmatpush1.bf16.msra.mxu0 0
      %755 = vmatprep.subr.bf16.mxu0 0
      %756 = vmatpush1.bf16.msra.mxu0 0
      %757 = vmatprep.subr.bf16.mxu0 0
      %758 = vmatpush1.bf16.msra.mxu0 0
      %759 = vmatprep.subr.bf16.mxu0 0
      %760 = vmatpush1.bf16.msra.mxu0 0
      %761 = vmatprep.subr.bf16.mxu0 0
      %762 = vmatpush1.bf16.msra.mxu0 0
      %763 = vmatprep.subr.bf16.mxu0 0
      %764 = vmatpush1.bf16.msra.mxu0 0
      %765 = vmatprep.subr.bf16.mxu0 0
      %766 = vmatpush1.bf16.msra.mxu0 0
      %767 = vmatprep.subr.bf16.mxu0 0
      %768 = vmatpush1.bf16.msra.mxu0 0
      %769 = vmatprep.subr.bf16.mxu0 0
      %770 = vmatpush1.bf16.msra.mxu0 0
      %771 = vmatprep.subr.bf16.mxu0 0
      %772 = vmatpush1.bf16.msra.mxu0 0
      %773 = vmatprep.subr.bf16.mxu0 0
      %774 = vmatpush1.bf16.msra.mxu0 0
      %775 = vmatprep.subr.bf16.mxu0 0
      %776 = vmatpush1.bf16.msra.mxu0 0
      %777 = vmatprep.mubr.bf16.mxu0 0
      %778 = vmatmul.mubr.bf16.gmra.mrb[0].mxu0 %v730
      %v779 = vpop.f32.mrb[0].mxu0
      %v780 = vadd.f32 0.0, %v779
      %v781 = vpop.f32.mrb[0].mxu0
      %v782 = vadd.f32 0.0, %v781
      %v783 = vpop.f32.mrb[0].mxu0
      %v784 = vadd.f32 0.0, %v783
      %v785 = vpop.f32.mrb[0].mxu0
      %v786 = vadd.f32 0.0, %v785
      %787 = vmatprep.mubr.bf16.mxu0 0
      %788 = vmatmul.mubr.bf16.gmra.mrb[0].mxu0 %v733
      %v789 = vpop.f32.mrb[0].mxu0
      %v790 = vadd.f32 0.0, %v789
      %v791 = vpop.f32.mrb[0].mxu0
      %v792 = vadd.f32 0.0, %v791
      %v793 = vpop.f32.mrb[0].mxu0
      %v794 = vadd.f32 0.0, %v793
      %v795 = vpop.f32.mrb[0].mxu0
      %v796 = vadd.f32 0.0, %v795
      %797 = vmatprep.mubr.bf16.mxu0 0
      %798 = vmatmul.mubr.bf16.gmra.mrb[0].mxu0 %v736
      %v799 = vpop.f32.mrb[0].mxu0
      %v800 = vadd.f32 0.0, %v799
      %v801 = vpop.f32.mrb[0].mxu0
      %v802 = vadd.f32 0.0, %v801
      %v803 = vpop.f32.mrb[0].mxu0
      %v804 = vpop.f32.mrb[0].mxu0
      %805 = vdwg.mxu0
      %v806 = vld [vmem:[%s4] sm:$0xff]
      %v807 = vld [vmem:[%s4 + $0x8] sm:$0xff]
      %809 = vset.pattern.permute.xlu0 0
      %810 = vperm.xlu0 %809, %v806
      %v811 = vpop.permute.xlu0 %810
      %814 = vset.pattern.permute.xlu0 0
      %815 = vperm.xlu0 %814, %v807
      %v816 = vpop.permute.xlu0 %815
      %v818 = vadd.f32 %v780, %v811
      %v819 = vadd.f32 %v782, %v811
      %v820 = vadd.f32 %v784, %v816
      %v821 = vadd.f32 %v786, %v816
      %v822 = vmax.f32 %v818, 0.0
      %v823 = vmax.f32 %v819, 0.0
      %v824 = vmax.f32 %v820, 0.0
      %v825 = vmax.f32 %v821, 0.0
      %826 = vrot.lane.b32.xlu0 %v822, 17
      %v827 = vpop.permute.xlu0 %826
      %828 = vrot.lane.b32.xlu0 %v824, 17
      %v829 = vpop.permute.xlu0 %828
      %830 = vrot.lane.b32.xlu0 %v823, 17
      %v831 = vpop.permute.xlu0 %830
      %832 = vrot.lane.b32.xlu0 %v825, 17
      %v833 = vpop.permute.xlu0 %832
      %v834 = vsel %vm423, %v827, %v831
      %v835 = vsel %vm423, %v829, %v833
      %v836 = vsel %vm423, %v831, %v827
      %v837 = vsel %vm423, %v833, %v829
      %v838 = vld [vmem:[%s426] ss:$8 sm:$0x3]
      %v840 = vlaneseq
      %v841 = vshrl.u32 %v840, 7
      %v842 = vsub.s32 0, %v841
      %v843 = vrot.slane %v838, %v842
      %v844 = vlaneseq
      %v845 = vshrl.u32 %v844, 7
      %v846 = vsub.s32 1, %v845
      %v847 = vrot.slane %v838, %v846
      %v850 = vmul.f32 %v836, %v843
      %v851 = vmul.f32 %v834, %v847
      %v852 = vmul.f32 %v837, %v843
      %v853 = vmul.f32 %v835, %v847
      %v854 = vpack.c.bf16 %v852, %v850
      %v855 = vpack.c.bf16 %v853, %v851
      %v858 = vunpack.c.l.b16 %v854
      %v859 = vunpack.c.l.b16 %v855
      %v860 = vunpack.c.h.b16 %v854
      %v861 = vunpack.c.h.b16 %v855
      %v862 = vpack.c.b16 %v859, %v858
      %v863 = vpack.c.b16 %v861, %v860
      %866 = vst [vmem:[#allocation3] sm:$0xff] %v862
      %867 = vst [vmem:[#allocation3 + $0x8] sm:$0xff] %v863
      %868 = vrot.lane.b32.xlu0 %v822, 16
      %v869 = vpop.permute.xlu0 %868
      %870 = vrot.lane.b32.xlu0 %v824, 16
      %v871 = vpop.permute.xlu0 %870
      %872 = vrot.lane.b32.xlu0 %v823, 16
      %v873 = vpop.permute.xlu0 %872
      %874 = vrot.lane.b32.xlu0 %v825, 16
      %v875 = vpop.permute.xlu0 %874
      %v876 = vsel %vm454, %v869, %v873
      %v877 = vsel %vm454, %v871, %v875
      %v878 = vsel %vm454, %v873, %v869
      %v879 = vsel %vm454, %v875, %v871
      %v880 = vld [vmem:[%s457] ss:$8 sm:$0x3]
      %v882 = vlaneseq
      %v883 = vshrl.u32 %v882, 7
      %v884 = vsub.s32 0, %v883
      %v885 = vrot.slane %v880, %v884
      %v886 = vlaneseq
      %v887 = vshrl.u32 %v886, 7
      %v888 = vsub.s32 1, %v887
      %v889 = vrot.slane %v880, %v888
      %v892 = vmul.f32 %v878, %v885
      %v893 = vmul.f32 %v876, %v889
      %v894 = vmul.f32 %v879, %v885
      %v895 = vmul.f32 %v877, %v889
      %v896 = vpack.c.bf16 %v894, %v892
      %v897 = vpack.c.bf16 %v895, %v893
      %v900 = vunpack.c.l.b16 %v896
      %v901 = vunpack.c.l.b16 %v897
      %v902 = vunpack.c.h.b16 %v896
      %v903 = vunpack.c.h.b16 %v897
      %v904 = vpack.c.b16 %v901, %v900
      %v905 = vpack.c.b16 %v903, %v902
      %908 = vst [vmem:[#allocation3 + $0x10] sm:$0xff] %v904
      %909 = vst [vmem:[#allocation3 + $0x18] sm:$0xff] %v905
      %910 = vrot.lane.b32.xlu0 %v822, 15
      %v911 = vpop.permute.xlu0 %910
      %912 = vrot.lane.b32.xlu0 %v824, 15
      %v913 = vpop.permute.xlu0 %912
      %914 = vrot.lane.b32.xlu0 %v823, 15
      %v915 = vpop.permute.xlu0 %914
      %916 = vrot.lane.b32.xlu0 %v825, 15
      %v917 = vpop.permute.xlu0 %916
      %v918 = vsel %vm486, %v911, %v915
      %v919 = vsel %vm486, %v913, %v917
      %v920 = vsel %vm486, %v915, %v911
      %v921 = vsel %vm486, %v917, %v913
      %v922 = vld [vmem:[%s489] ss:$8 sm:$0x3]
      %v924 = vlaneseq
      %v925 = vshrl.u32 %v924, 7
      %v926 = vsub.s32 0, %v925
      %v927 = vrot.slane %v922, %v926
      %v928 = vlaneseq
      %v929 = vshrl.u32 %v928, 7
      %v930 = vsub.s32 1, %v929
      %v931 = vrot.slane %v922, %v930
      %v934 = vmul.f32 %v920, %v927
      %v935 = vmul.f32 %v918, %v931
      %v936 = vmul.f32 %v921, %v927
      %v937 = vmul.f32 %v919, %v931
      %v938 = vpack.c.bf16 %v936, %v934
      %v939 = vpack.c.bf16 %v937, %v935
      %v942 = vunpack.c.l.b16 %v938
      %v943 = vunpack.c.l.b16 %v939
      %v944 = vunpack.c.h.b16 %v938
      %v945 = vunpack.c.h.b16 %v939
      %v946 = vpack.c.b16 %v943, %v942
      %v947 = vpack.c.b16 %v945, %v944
      %950 = vst [vmem:[#allocation3 + $0x20] sm:$0xff] %v946
      %951 = vst [vmem:[#allocation3 + $0x28] sm:$0xff] %v947
      %952 = vrot.lane.b32.xlu0 %v822, 1
      %v953 = vpop.permute.xlu0 %952
      %954 = vrot.lane.b32.xlu0 %v824, 1
      %v955 = vpop.permute.xlu0 %954
      %956 = vrot.lane.b32.xlu0 %v823, 1
      %v957 = vpop.permute.xlu0 %956
      %958 = vrot.lane.b32.xlu0 %v825, 1
      %v959 = vpop.permute.xlu0 %958
      %v960 = vsel %vm517, %v953, %v957
      %v961 = vsel %vm517, %v955, %v959
      %v962 = vsel %vm517, %v957, %v953
      %v963 = vsel %vm517, %v959, %v955
      %v964 = vld [vmem:[%s520] ss:$8 sm:$0x3]
      %v966 = vlaneseq
      %v967 = vshrl.u32 %v966, 7
      %v968 = vsub.s32 0, %v967
      %v969 = vrot.slane %v964, %v968
      %v970 = vlaneseq
      %v971 = vshrl.u32 %v970, 7
      %v972 = vsub.s32 1, %v971
      %v973 = vrot.slane %v964, %v972
      %v976 = vmul.f32 %v962, %v969
      %v977 = vmul.f32 %v960, %v973
      %v978 = vmul.f32 %v963, %v969
      %v979 = vmul.f32 %v961, %v973
      %v980 = vpack.c.bf16 %v978, %v976
      %v981 = vpack.c.bf16 %v979, %v977
      %v984 = vunpack.c.l.b16 %v980
      %v985 = vunpack.c.l.b16 %v981
      %v986 = vunpack.c.h.b16 %v980
      %v987 = vunpack.c.h.b16 %v981
      %v988 = vpack.c.b16 %v985, %v984
      %v989 = vpack.c.b16 %v987, %v986
      %992 = vst [vmem:[#allocation3 + $0x30] sm:$0xff] %v988
      %993 = vst [vmem:[#allocation3 + $0x38] sm:$0xff] %v989
      %v994 = vpack.c.bf16 %v824, %v822
      %v995 = vpack.c.bf16 %v825, %v823
      %v998 = vunpack.c.l.b16 %v994
      %v999 = vunpack.c.l.b16 %v995
      %v1000 = vunpack.c.h.b16 %v994
      %v1001 = vunpack.c.h.b16 %v995
      %v1002 = vpack.c.b16 %v999, %v998
      %v1003 = vpack.c.b16 %v1001, %v1000
      %1006 = vst [vmem:[#allocation3 + $0x40] sm:$0xff] %v1002
      %1007 = vst [vmem:[#allocation3 + $0x48] sm:$0xff] %v1003
      %1008 = vrot.lane.b32.xlu0 %v822, 127
      %v1009 = vpop.permute.xlu0 %1008
      %1010 = vrot.lane.b32.xlu0 %v824, 127
      %v1011 = vpop.permute.xlu0 %1010
      %1012 = vrot.lane.b32.xlu0 %v823, 127
      %v1013 = vpop.permute.xlu0 %1012
      %1014 = vrot.lane.b32.xlu0 %v825, 127
      %v1015 = vpop.permute.xlu0 %1014
      %v1016 = vsel %vm558, %v1009, %v1013
      %v1017 = vsel %vm558, %v1011, %v1015
      %v1018 = vsel %vm558, %v1013, %v1009
      %v1019 = vsel %vm558, %v1015, %v1011
      %v1020 = vld [vmem:[%s561] ss:$8 sm:$0x3]
      %v1022 = vlaneseq
      %v1023 = vshrl.u32 %v1022, 7
      %v1024 = vsub.s32 0, %v1023
      %v1025 = vrot.slane %v1020, %v1024
      %v1026 = vlaneseq
      %v1027 = vshrl.u32 %v1026, 7
      %v1028 = vsub.s32 1, %v1027
      %v1029 = vrot.slane %v1020, %v1028
      %v1032 = vmul.f32 %v1016, %v1025
      %v1033 = vmul.f32 %v1018, %v1029
      %v1034 = vmul.f32 %v1017, %v1025
      %v1035 = vmul.f32 %v1019, %v1029
      %v1036 = vpack.c.bf16 %v1034, %v1032
      %v1037 = vpack.c.bf16 %v1035, %v1033
      %v1040 = vunpack.c.l.b16 %v1036
      %v1041 = vunpack.c.l.b16 %v1037
      %v1042 = vunpack.c.h.b16 %v1036
      %v1043 = vunpack.c.h.b16 %v1037
      %v1044 = vpack.c.b16 %v1041, %v1040
      %v1045 = vpack.c.b16 %v1043, %v1042
      %1048 = vst [vmem:[#allocation3 + $0x50] sm:$0xff] %v1044
      %1049 = vst [vmem:[#allocation3 + $0x58] sm:$0xff] %v1045
      %1050 = vrot.lane.b32.xlu0 %v822, 113
      %v1051 = vpop.permute.xlu0 %1050
      %1052 = vrot.lane.b32.xlu0 %v824, 113
      %v1053 = vpop.permute.xlu0 %1052
      %1054 = vrot.lane.b32.xlu0 %v823, 113
      %v1055 = vpop.permute.xlu0 %1054
      %1056 = vrot.lane.b32.xlu0 %v825, 113
      %v1057 = vpop.permute.xlu0 %1056
      %v1058 = vsel %vm590, %v1051, %v1055
      %v1059 = vsel %vm590, %v1053, %v1057
      %v1060 = vsel %vm590, %v1055, %v1051
      %v1061 = vsel %vm590, %v1057, %v1053
      %v1062 = vld [vmem:[%s593] ss:$8 sm:$0x3]
      %v1064 = vlaneseq
      %v1065 = vshrl.u32 %v1064, 7
      %v1066 = vsub.s32 0, %v1065
      %v1067 = vrot.slane %v1062, %v1066
      %v1068 = vlaneseq
      %v1069 = vshrl.u32 %v1068, 7
      %v1070 = vsub.s32 1, %v1069
      %v1071 = vrot.slane %v1062, %v1070
      %v1074 = vmul.f32 %v1058, %v1067
      %v1075 = vmul.f32 %v1060, %v1071
      %v1076 = vmul.f32 %v1059, %v1067
      %v1077 = vmul.f32 %v1061, %v1071
      %v1078 = vpack.c.bf16 %v1076, %v1074
      %v1079 = vpack.c.bf16 %v1077, %v1075
      %v1082 = vunpack.c.l.b16 %v1078
      %v1083 = vunpack.c.l.b16 %v1079
      %v1084 = vunpack.c.h.b16 %v1078
      %v1085 = vunpack.c.h.b16 %v1079
      %v1086 = vpack.c.b16 %v1083, %v1082
      %v1087 = vpack.c.b16 %v1085, %v1084
      %1090 = vst [vmem:[#allocation3 + $0x60] sm:$0xff] %v1086
      %1091 = vst [vmem:[#allocation3 + $0x68] sm:$0xff] %v1087
      %1092 = vrot.lane.b32.xlu0 %v822, 112
      %v1093 = vpop.permute.xlu0 %1092
      %1094 = vrot.lane.b32.xlu0 %v824, 112
      %v1095 = vpop.permute.xlu0 %1094
      %1096 = vrot.lane.b32.xlu0 %v823, 112
      %v1097 = vpop.permute.xlu0 %1096
      %1098 = vrot.lane.b32.xlu0 %v825, 112
      %v1099 = vpop.permute.xlu0 %1098
      %v1100 = vsel %vm621, %v1093, %v1097
      %v1101 = vsel %vm621, %v1095, %v1099
      %v1102 = vsel %vm621, %v1097, %v1093
      %v1103 = vsel %vm621, %v1099, %v1095
      %v1104 = vld [vmem:[%s624] ss:$8 sm:$0x3]
      %v1106 = vlaneseq
      %v1107 = vshrl.u32 %v1106, 7
      %v1108 = vsub.s32 0, %v1107
      %v1109 = vrot.slane %v1104, %v1108
      %v1110 = vlaneseq
      %v1111 = vshrl.u32 %v1110, 7
      %v1112 = vsub.s32 1, %v1111
      %v1113 = vrot.slane %v1104, %v1112
      %v1116 = vmul.f32 %v1100, %v1109
      %v1117 = vmul.f32 %v1102, %v1113
      %v1118 = vmul.f32 %v1101, %v1109
      %v1119 = vmul.f32 %v1103, %v1113
      %v1120 = vpack.c.bf16 %v1118, %v1116
      %v1121 = vpack.c.bf16 %v1119, %v1117
      %v1124 = vunpack.c.l.b16 %v1120
      %v1125 = vunpack.c.l.b16 %v1121
      %v1126 = vunpack.c.h.b16 %v1120
      %v1127 = vunpack.c.h.b16 %v1121
      %v1128 = vpack.c.b16 %v1125, %v1124
      %v1129 = vpack.c.b16 %v1127, %v1126
      %1132 = vst [vmem:[#allocation3 + $0x70] sm:$0xff] %v1128
      %1133 = vst [vmem:[#allocation3 + $0x78] sm:$0xff] %v1129
      %1134 = vrot.lane.b32.xlu0 %v822, 111
      %v1135 = vpop.permute.xlu0 %1134
      %1136 = vrot.lane.b32.xlu0 %v824, 111
      %v1137 = vpop.permute.xlu0 %1136
      %1138 = vrot.lane.b32.xlu0 %v823, 111
      %v1139 = vpop.permute.xlu0 %1138
      %1140 = vrot.lane.b32.xlu0 %v825, 111
      %v1141 = vpop.permute.xlu0 %1140
      %v1142 = vsel %vm653, %v1135, %v1139
      %v1143 = vsel %vm653, %v1137, %v1141
      %v1144 = vsel %vm653, %v1139, %v1135
      %v1145 = vsel %vm653, %v1141, %v1137
      %v1146 = vld [vmem:[%s656] ss:$8 sm:$0x3]
      %v1148 = vlaneseq
      %v1149 = vshrl.u32 %v1148, 7
      %v1150 = vsub.s32 0, %v1149
      %v1151 = vrot.slane %v1146, %v1150
      %v1152 = vlaneseq
      %v1153 = vshrl.u32 %v1152, 7
      %v1154 = vsub.s32 1, %v1153
      %v1155 = vrot.slane %v1146, %v1154
      %v1158 = vmul.f32 %v1142, %v1151
      %v1159 = vmul.f32 %v1144, %v1155
      %v1160 = vmul.f32 %v1143, %v1151
      %v1161 = vmul.f32 %v1145, %v1155
      %v1162 = vpack.c.bf16 %v1160, %v1158
      %v1163 = vpack.c.bf16 %v1161, %v1159
      %v1166 = vunpack.c.l.b16 %v1162
      %v1167 = vunpack.c.l.b16 %v1163
      %v1168 = vunpack.c.h.b16 %v1162
      %v1169 = vunpack.c.h.b16 %v1163
      %v1170 = vpack.c.b16 %v1167, %v1166
      %v1171 = vpack.c.b16 %v1169, %v1168
      %1174 = vst [vmem:[#allocation3 + $0x80] sm:$0xff] %v1170
      %1175 = vst [vmem:[#allocation3 + $0x88] sm:$0xff] %v1171
      %v1176 = vld [vmem:[%s5] sm:$0xff]
      %v1177 = vld [vmem:[%s5 + $0x8] sm:$0xff]
      %v1178 = vld [vmem:[#allocation3] sm:$0xff]
      %v1179 = vld [vmem:[#allocation3 + $0x8] sm:$0xff]
      %v1180 = vld [vmem:[#allocation3 + $0x10] sm:$0xff]
      %v1181 = vld [vmem:[#allocation3 + $0x18] sm:$0xff]
      %v1182 = vld [vmem:[#allocation3 + $0x20] sm:$0xff]
      %v1183 = vld [vmem:[#allocation3 + $0x28] sm:$0xff]
      %v1184 = vld [vmem:[#allocation3 + $0x30] sm:$0xff]
      %v1185 = vld [vmem:[#allocation3 + $0x38] sm:$0xff]
      %v1186 = vld [vmem:[#allocation3 + $0x40] sm:$0xff]
      %v1187 = vld [vmem:[#allocation3 + $0x48] sm:$0xff]
      %v1188 = vld [vmem:[#allocation3 + $0x50] sm:$0xff]
      %v1189 = vld [vmem:[#allocation3 + $0x58] sm:$0xff]
      %v1190 = vld [vmem:[#allocation3 + $0x60] sm:$0xff]
      %v1191 = vld [vmem:[#allocation3 + $0x68] sm:$0xff]
      %v1192 = vld [vmem:[#allocation3 + $0x70] sm:$0xff]
      %v1193 = vld [vmem:[#allocation3 + $0x78] sm:$0xff]
      %v1194 = vld [vmem:[#allocation3 + $0x80] sm:$0xff]
      %v1195 = vld [vmem:[#allocation3 + $0x88] sm:$0xff]
      %v1196 = vld [vmem:[%s6] sm:$0xff]
      %v1197 = vld [vmem:[%s6 + $0x8] sm:$0xff]
      %1199 = vset.pattern.permute.xlu0 0
      %1200 = vperm.xlu0 %1199, %v1196
      %v1201 = vpop.permute.xlu0 %1200
      %1204 = vset.pattern.permute.xlu0 0
      %1205 = vperm.xlu0 %1204, %v1197
      %v1206 = vpop.permute.xlu0 %1205
      %v1210 = vunpack.c.l.b16 %v1176
      %v1211 = vunpack.c.h.b16 %v1176
      %v1212 = vunpack.c.l.b16 %v1177
      %v1213 = vunpack.c.h.b16 %v1177
      %v1214 = vpack.c.b16 %v1212, %v1210
      %v1215 = vpack.c.b16 %v1213, %v1211
      %v1235 = vunpack.c.l.b16 %v1178
      %v1236 = vunpack.c.h.b16 %v1178
      %v1237 = vunpack.c.l.b16 %v1179
      %v1238 = vunpack.c.h.b16 %v1179
      %v1239 = vunpack.c.l.b16 %v1180
      %v1240 = vunpack.c.h.b16 %v1180
      %v1241 = vunpack.c.l.b16 %v1181
      %v1242 = vunpack.c.h.b16 %v1181
      %v1243 = vunpack.c.l.b16 %v1182
      %v1244 = vunpack.c.h.b16 %v1182
      %v1245 = vunpack.c.l.b16 %v1183
      %v1246 = vunpack.c.h.b16 %v1183
      %v1247 = vunpack.c.l.b16 %v1184
      %v1248 = vunpack.c.h.b16 %v1184
      %v1249 = vunpack.c.l.b16 %v1185
      %v1250 = vunpack.c.h.b16 %v1185
      %v1251 = vunpack.c.l.b16 %v1186
      %v1252 = vunpack.c.h.b16 %v1186
      %v1253 = vunpack.c.l.b16 %v1187
      %v1254 = vunpack.c.h.b16 %v1187
      %v1255 = vunpack.c.l.b16 %v1188
      %v1256 = vunpack.c.h.b16 %v1188
      %v1257 = vunpack.c.l.b16 %v1189
      %v1258 = vunpack.c.h.b16 %v1189
      %v1259 = vunpack.c.l.b16 %v1190
      %v1260 = vunpack.c.h.b16 %v1190
      %v1261 = vunpack.c.l.b16 %v1191
      %v1262 = vunpack.c.h.b16 %v1191
      %v1263 = vunpack.c.l.b16 %v1192
      %v1264 = vunpack.c.h.b16 %v1192
      %v1265 = vunpack.c.l.b16 %v1193
      %v1266 = vunpack.c.h.b16 %v1193
      %v1267 = vunpack.c.l.b16 %v1194
      %v1268 = vunpack.c.h.b16 %v1194
      %v1269 = vunpack.c.l.b16 %v1195
      %v1270 = vunpack.c.h.b16 %v1195
      %v1271 = vpack.c.b16 %v1237, %v1235
      %v1272 = vpack.c.b16 %v1238, %v1236
      %v1273 = vpack.c.b16 %v1241, %v1239
      %v1274 = vpack.c.b16 %v1242, %v1240
      %v1275 = vpack.c.b16 %v1245, %v1243
      %v1276 = vpack.c.b16 %v1246, %v1244
      %v1277 = vpack.c.b16 %v1249, %v1247
      %v1278 = vpack.c.b16 %v1250, %v1248
      %v1279 = vpack.c.b16 %v1253, %v1251
      %v1280 = vpack.c.b16 %v1254, %v1252
      %v1281 = vpack.c.b16 %v1257, %v1255
      %v1282 = vpack.c.b16 %v1258, %v1256
      %v1283 = vpack.c.b16 %v1261, %v1259
      %v1284 = vpack.c.b16 %v1262, %v1260
      %v1285 = vpack.c.b16 %v1265, %v1263
      %v1286 = vpack.c.b16 %v1266, %v1264
      %v1287 = vpack.c.b16 %v1269, %v1267
      %v1288 = vpack.c.b16 %v1270, %v1268
      %vm1307 = vcmask 130048
      %v1309 = vsel %vm1307, %v1215, 0
      %1311 = vmatprep.subr.bf16.mxu0 %v1272
      %1312 = vmatpush1.bf16.msra.mxu0 %v1271
      %1313 = vmatprep.subr.bf16.mxu0 %v1274
      %1314 = vmatpush1.bf16.msra.mxu0 %v1273
      %1315 = vmatprep.subr.bf16.mxu0 %v1276
      %1316 = vmatpush1.bf16.msra.mxu0 %v1275
      %1317 = vmatprep.subr.bf16.mxu0 %v1278
      %1318 = vmatpush1.bf16.msra.mxu0 %v1277
      %1319 = vmatprep.subr.bf16.mxu0 %v1280
      %1320 = vmatpush1.bf16.msra.mxu0 %v1279
      %1321 = vmatprep.subr.bf16.mxu0 %v1282
      %1322 = vmatpush1.bf16.msra.mxu0 %v1281
      %1323 = vmatprep.subr.bf16.mxu0 %v1284
      %1324 = vmatpush1.bf16.msra.mxu0 %v1283
      %1325 = vmatprep.subr.bf16.mxu0 %v1286
      %1326 = vmatpush1.bf16.msra.mxu0 %v1285
      %1327 = vmatprep.subr.bf16.mxu0 %v1288
      %1328 = vmatpush1.bf16.msra.mxu0 %v1287
      %1329 = vmatprep.subr.bf16.mxu0 0
      %1330 = vmatpush1.bf16.msra.mxu0 0
      %1331 = vmatprep.subr.bf16.mxu0 0
      %1332 = vmatpush1.bf16.msra.mxu0 0
      %1333 = vmatprep.subr.bf16.mxu0 0
      %1334 = vmatpush1.bf16.msra.mxu0 0
      %1335 = vmatprep.subr.bf16.mxu0 0
      %1336 = vmatpush1.bf16.msra.mxu0 0
      %1337 = vmatprep.subr.bf16.mxu0 0
      %1338 = vmatpush1.bf16.msra.mxu0 0
      %1339 = vmatprep.subr.bf16.mxu0 0
      %1340 = vmatpush1.bf16.msra.mxu0 0
      %1341 = vmatprep.subr.bf16.mxu0 0
      %1342 = vmatpush1.bf16.msra.mxu0 0
      %1343 = vmatprep.mubr.bf16.mxu0 %v1309
      %1344 = vmatmul.mubr.bf16.gmra.mrb[0].mxu0 %v1214
      %v1345 = vpop.f32.mrb[0].mxu0
      %v1346 = vadd.f32 %v1201, %v1345
      %v1347 = vpop.f32.mrb[0].mxu0
      %v1348 = vadd.f32 %v1201, %v1347
      %v1349 = vpop.f32.mrb[0].mxu0
      %v1350 = vadd.f32 %v1206, %v1349
      %v1351 = vpop.f32.mrb[0].mxu0
      %v1352 = vadd.f32 %v1206, %v1351
      %1353 = vdwg.mxu0
      %v1354 = vmax.f32 %v1346, 0.0
      %v1355 = vmax.f32 %v1348, 0.0
      %v1356 = vmax.f32 %v1350, 0.0
      %v1357 = vmax.f32 %v1352, 0.0
      %v1358 = vld [vmem:[%s404] sm:$0xff]
      %v1359 = vld [vmem:[%s404 + $0x8] sm:$0xff]
      %1360 = vrot.lane.b32.xlu0 %v1354, 17
      %v1361 = vpop.permute.xlu0 %1360
      %1362 = vrot.lane.b32.xlu0 %v1356, 17
      %v1363 = vpop.permute.xlu0 %1362
      %1364 = vrot.lane.b32.xlu0 %v1355, 17
      %v1365 = vpop.permute.xlu0 %1364
      %1366 = vrot.lane.b32.xlu0 %v1357, 17
      %v1367 = vpop.permute.xlu0 %1366
      %v1368 = vsel %vm423, %v1361, %v1365
      %v1369 = vsel %vm423, %v1363, %v1367
      %v1370 = vsel %vm423, %v1365, %v1361
      %v1371 = vsel %vm423, %v1367, %v1363
      %v1372 = vld [vmem:[%s426] ss:$8 sm:$0x3]
      %v1374 = vlaneseq
      %v1375 = vshrl.u32 %v1374, 7
      %v1376 = vsub.s32 0, %v1375
      %v1377 = vrot.slane %v1372, %v1376
      %v1378 = vlaneseq
      %v1379 = vshrl.u32 %v1378, 7
      %v1380 = vsub.s32 1, %v1379
      %v1381 = vrot.slane %v1372, %v1380
      %v1384 = vmul.f32 %v1370, %v1377
      %v1385 = vmul.f32 %v1368, %v1381
      %v1386 = vmul.f32 %v1371, %v1377
      %v1387 = vmul.f32 %v1369, %v1381
      %v1388 = vpack.c.bf16 %v1386, %v1384
      %v1389 = vpack.c.bf16 %v1387, %v1385
      %v1392 = vunpack.c.l.b16 %v1388
      %v1393 = vunpack.c.l.b16 %v1389
      %v1394 = vunpack.c.h.b16 %v1388
      %v1395 = vunpack.c.h.b16 %v1389
      %v1396 = vpack.c.b16 %v1393, %v1392
      %v1397 = vpack.c.b16 %v1395, %v1394
      %1400 = vst [vmem:[#allocation3] sm:$0xff] %v1396
      %1401 = vst [vmem:[#allocation3 + $0x8] sm:$0xff] %v1397
      %v1402 = vld [vmem:[%s426] ss:$8 sm:$0x3]
      %v1404 = vlaneseq
      %v1405 = vshrl.u32 %v1404, 7
      %v1406 = vsub.s32 0, %v1405
      %v1407 = vrot.slane %v1402, %v1406
      %v1408 = vlaneseq
      %v1409 = vshrl.u32 %v1408, 7
      %v1410 = vsub.s32 1, %v1409
      %v1411 = vrot.slane %v1402, %v1410
      %v1414 = vmul.f32 %v1358, %v1407
      %v1415 = vmul.f32 %v1359, %v1411
      %v1416 = vpack.c.bf16 %v1414, %v1414
      %v1417 = vpack.c.bf16 %v1415, %v1415
      %v1420 = vunpack.c.l.b16 %v1416
      %v1421 = vunpack.c.l.b16 %v1417
      %v1422 = vpack.c.b16 %v1421, %v1420
      %1424 = vst [vmem:[#allocation3 + $0x90] sm:$0xff] %v1422
      %1425 = vrot.lane.b32.xlu0 %v1354, 16
      %v1426 = vpop.permute.xlu0 %1425
      %1427 = vrot.lane.b32.xlu0 %v1356, 16
      %v1428 = vpop.permute.xlu0 %1427
      %1429 = vrot.lane.b32.xlu0 %v1355, 16
      %v1430 = vpop.permute.xlu0 %1429
      %1431 = vrot.lane.b32.xlu0 %v1357, 16
      %v1432 = vpop.permute.xlu0 %1431
      %v1433 = vsel %vm454, %v1426, %v1430
      %v1434 = vsel %vm454, %v1428, %v1432
      %v1435 = vsel %vm454, %v1430, %v1426
      %v1436 = vsel %vm454, %v1432, %v1428
      %v1437 = vld [vmem:[%s457] ss:$8 sm:$0x3]
      %v1439 = vlaneseq
      %v1440 = vshrl.u32 %v1439, 7
      %v1441 = vsub.s32 0, %v1440
      %v1442 = vrot.slane %v1437, %v1441
      %v1443 = vlaneseq
      %v1444 = vshrl.u32 %v1443, 7
      %v1445 = vsub.s32 1, %v1444
      %v1446 = vrot.slane %v1437, %v1445
      %v1449 = vmul.f32 %v1435, %v1442
      %v1450 = vmul.f32 %v1433, %v1446
      %v1451 = vmul.f32 %v1436, %v1442
      %v1452 = vmul.f32 %v1434, %v1446
      %v1453 = vpack.c.bf16 %v1451, %v1449
      %v1454 = vpack.c.bf16 %v1452, %v1450
      %v1457 = vunpack.c.l.b16 %v1453
      %v1458 = vunpack.c.l.b16 %v1454
      %v1459 = vunpack.c.h.b16 %v1453
      %v1460 = vunpack.c.h.b16 %v1454
      %v1461 = vpack.c.b16 %v1458, %v1457
      %v1462 = vpack.c.b16 %v1460, %v1459
      %1465 = vst [vmem:[#allocation3 + $0x10] sm:$0xff] %v1461
      %1466 = vst [vmem:[#allocation3 + $0x18] sm:$0xff] %v1462
      %v1467 = vld [vmem:[%s457] ss:$8 sm:$0x3]
      %v1469 = vlaneseq
      %v1470 = vshrl.u32 %v1469, 7
      %v1471 = vsub.s32 0, %v1470
      %v1472 = vrot.slane %v1467, %v1471
      %v1473 = vlaneseq
      %v1474 = vshrl.u32 %v1473, 7
      %v1475 = vsub.s32 1, %v1474
      %v1476 = vrot.slane %v1467, %v1475
      %v1479 = vmul.f32 %v1358, %v1472
      %v1480 = vmul.f32 %v1359, %v1476
      %v1481 = vpack.c.bf16 %v1479, %v1479
      %v1482 = vpack.c.bf16 %v1480, %v1480
      %v1485 = vunpack.c.l.b16 %v1481
      %v1486 = vunpack.c.l.b16 %v1482
      %v1487 = vpack.c.b16 %v1486, %v1485
      %1489 = vst [vmem:[#allocation3 + $0x98] sm:$0xff] %v1487
      %1490 = vrot.lane.b32.xlu0 %v1354, 15
      %v1491 = vpop.permute.xlu0 %1490
      %1492 = vrot.lane.b32.xlu0 %v1356, 15
      %v1493 = vpop.permute.xlu0 %1492
      %1494 = vrot.lane.b32.xlu0 %v1355, 15
      %v1495 = vpop.permute.xlu0 %1494
      %1496 = vrot.lane.b32.xlu0 %v1357, 15
      %v1497 = vpop.permute.xlu0 %1496
      %v1498 = vsel %vm486, %v1491, %v1495
      %v1499 = vsel %vm486, %v1493, %v1497
      %v1500 = vsel %vm486, %v1495, %v1491
      %v1501 = vsel %vm486, %v1497, %v1493
      %v1502 = vld [vmem:[%s489] ss:$8 sm:$0x3]
      %v1504 = vlaneseq
      %v1505 = vshrl.u32 %v1504, 7
      %v1506 = vsub.s32 0, %v1505
      %v1507 = vrot.slane %v1502, %v1506
      %v1508 = vlaneseq
      %v1509 = vshrl.u32 %v1508, 7
      %v1510 = vsub.s32 1, %v1509
      %v1511 = vrot.slane %v1502, %v1510
      %v1514 = vmul.f32 %v1500, %v1507
      %v1515 = vmul.f32 %v1498, %v1511
      %v1516 = vmul.f32 %v1501, %v1507
      %v1517 = vmul.f32 %v1499, %v1511
      %v1518 = vpack.c.bf16 %v1516, %v1514
      %v1519 = vpack.c.bf16 %v1517, %v1515
      %v1522 = vunpack.c.l.b16 %v1518
      %v1523 = vunpack.c.l.b16 %v1519
      %v1524 = vunpack.c.h.b16 %v1518
      %v1525 = vunpack.c.h.b16 %v1519
      %v1526 = vpack.c.b16 %v1523, %v1522
      %v1527 = vpack.c.b16 %v1525, %v1524
      %1530 = vst [vmem:[#allocation3 + $0x20] sm:$0xff] %v1526
      %1531 = vst [vmem:[#allocation3 + $0x28] sm:$0xff] %v1527
      %v1532 = vld [vmem:[%s489] ss:$8 sm:$0x3]
      %v1534 = vlaneseq
      %v1535 = vshrl.u32 %v1534, 7
      %v1536 = vsub.s32 0, %v1535
      %v1537 = vrot.slane %v1532, %v1536
      %v1538 = vlaneseq
      %v1539 = vshrl.u32 %v1538, 7
      %v1540 = vsub.s32 1, %v1539
      %v1541 = vrot.slane %v1532, %v1540
      %v1544 = vmul.f32 %v1358, %v1537
      %v1545 = vmul.f32 %v1359, %v1541
      %v1546 = vpack.c.bf16 %v1544, %v1544
      %v1547 = vpack.c.bf16 %v1545, %v1545
      %v1550 = vunpack.c.l.b16 %v1546
      %v1551 = vunpack.c.l.b16 %v1547
      %v1552 = vpack.c.b16 %v1551, %v1550
      %1554 = vst [vmem:[#allocation3 + $0xa0] sm:$0xff] %v1552
      %1555 = vrot.lane.b32.xlu0 %v1354, 1
      %v1556 = vpop.permute.xlu0 %1555
      %1557 = vrot.lane.b32.xlu0 %v1356, 1
      %v1558 = vpop.permute.xlu0 %1557
      %1559 = vrot.lane.b32.xlu0 %v1355, 1
      %v1560 = vpop.permute.xlu0 %1559
      %1561 = vrot.lane.b32.xlu0 %v1357, 1
      %v1562 = vpop.permute.xlu0 %1561
      %v1563 = vsel %vm517, %v1556, %v1560
      %v1564 = vsel %vm517, %v1558, %v1562
      %v1565 = vsel %vm517, %v1560, %v1556
      %v1566 = vsel %vm517, %v1562, %v1558
      %v1567 = vld [vmem:[%s520] ss:$8 sm:$0x3]
      %v1569 = vlaneseq
      %v1570 = vshrl.u32 %v1569, 7
      %v1571 = vsub.s32 0, %v1570
      %v1572 = vrot.slane %v1567, %v1571
      %v1573 = vlaneseq
      %v1574 = vshrl.u32 %v1573, 7
      %v1575 = vsub.s32 1, %v1574
      %v1576 = vrot.slane %v1567, %v1575
      %v1579 = vmul.f32 %v1565, %v1572
      %v1580 = vmul.f32 %v1563, %v1576
      %v1581 = vmul.f32 %v1566, %v1572
      %v1582 = vmul.f32 %v1564, %v1576
      %v1583 = vpack.c.bf16 %v1581, %v1579
      %v1584 = vpack.c.bf16 %v1582, %v1580
      %v1587 = vunpack.c.l.b16 %v1583
      %v1588 = vunpack.c.l.b16 %v1584
      %v1589 = vunpack.c.h.b16 %v1583
      %v1590 = vunpack.c.h.b16 %v1584
      %v1591 = vpack.c.b16 %v1588, %v1587
      %v1592 = vpack.c.b16 %v1590, %v1589
      %1595 = vst [vmem:[#allocation3 + $0x30] sm:$0xff] %v1591
      %1596 = vst [vmem:[#allocation3 + $0x38] sm:$0xff] %v1592
      %v1597 = vld [vmem:[%s520] ss:$8 sm:$0x3]
      %v1599 = vlaneseq
      %v1600 = vshrl.u32 %v1599, 7
      %v1601 = vsub.s32 0, %v1600
      %v1602 = vrot.slane %v1597, %v1601
      %v1603 = vlaneseq
      %v1604 = vshrl.u32 %v1603, 7
      %v1605 = vsub.s32 1, %v1604
      %v1606 = vrot.slane %v1597, %v1605
      %v1609 = vmul.f32 %v1358, %v1602
      %v1610 = vmul.f32 %v1359, %v1606
      %v1611 = vpack.c.bf16 %v1609, %v1609
      %v1612 = vpack.c.bf16 %v1610, %v1610
      %v1615 = vunpack.c.l.b16 %v1611
      %v1616 = vunpack.c.l.b16 %v1612
      %v1617 = vpack.c.b16 %v1616, %v1615
      %1619 = vst [vmem:[#allocation3 + $0xa8] sm:$0xff] %v1617
      %v1620 = vpack.c.bf16 %v1356, %v1354
      %v1621 = vpack.c.bf16 %v1357, %v1355
      %v1624 = vunpack.c.l.b16 %v1620
      %v1625 = vunpack.c.l.b16 %v1621
      %v1626 = vunpack.c.h.b16 %v1620
      %v1627 = vunpack.c.h.b16 %v1621
      %v1628 = vpack.c.b16 %v1625, %v1624
      %v1629 = vpack.c.b16 %v1627, %v1626
      %1632 = vst [vmem:[#allocation3 + $0x40] sm:$0xff] %v1628
      %1633 = vst [vmem:[#allocation3 + $0x48] sm:$0xff] %v1629
      %s1634 = scalar_lea.vmem %s2, 20
      %v1635 = vld [vmem:[%s1634] ss:$8 sm:$0x3]
      %v1637 = vlaneseq
      %v1638 = vshrl.u32 %v1637, 7
      %v1639 = vsub.s32 0, %v1638
      %v1640 = vrot.slane %v1635, %v1639
      %v1641 = vlaneseq
      %v1642 = vshrl.u32 %v1641, 7
      %v1643 = vsub.s32 1, %v1642
      %v1644 = vrot.slane %v1635, %v1643
      %v1647 = vmul.f32 %v1358, %v1640
      %v1648 = vmul.f32 %v1359, %v1644
      %v1649 = vpack.c.bf16 %v1647, %v1647
      %v1650 = vpack.c.bf16 %v1648, %v1648
      %v1653 = vunpack.c.l.b16 %v1649
      %v1654 = vunpack.c.l.b16 %v1650
      %v1655 = vpack.c.b16 %v1654, %v1653
      %1657 = vst [vmem:[#allocation3 + $0xb0] sm:$0xff] %v1655
      %1658 = vrot.lane.b32.xlu0 %v1354, 127
      %v1659 = vpop.permute.xlu0 %1658
      %1660 = vrot.lane.b32.xlu0 %v1356, 127
      %v1661 = vpop.permute.xlu0 %1660
      %1662 = vrot.lane.b32.xlu0 %v1355, 127
      %v1663 = vpop.permute.xlu0 %1662
      %1664 = vrot.lane.b32.xlu0 %v1357, 127
      %v1665 = vpop.permute.xlu0 %1664
      %v1666 = vsel %vm558, %v1659, %v1663
      %v1667 = vsel %vm558, %v1661, %v1665
      %v1668 = vsel %vm558, %v1663, %v1659
      %v1669 = vsel %vm558, %v1665, %v1661
      %v1670 = vld [vmem:[%s561] ss:$8 sm:$0x3]
      %v1672 = vlaneseq
      %v1673 = vshrl.u32 %v1672, 7
      %v1674 = vsub.s32 0, %v1673
      %v1675 = vrot.slane %v1670, %v1674
      %v1676 = vlaneseq
      %v1677 = vshrl.u32 %v1676, 7
      %v1678 = vsub.s32 1, %v1677
      %v1679 = vrot.slane %v1670, %v1678
      %v1682 = vmul.f32 %v1666, %v1675
      %v1683 = vmul.f32 %v1668, %v1679
      %v1684 = vmul.f32 %v1667, %v1675
      %v1685 = vmul.f32 %v1669, %v1679
      %v1686 = vpack.c.bf16 %v1684, %v1682
      %v1687 = vpack.c.bf16 %v1685, %v1683
      %v1690 = vunpack.c.l.b16 %v1686
      %v1691 = vunpack.c.l.b16 %v1687
      %v1692 = vunpack.c.h.b16 %v1686
      %v1693 = vunpack.c.h.b16 %v1687
      %v1694 = vpack.c.b16 %v1691, %v1690
      %v1695 = vpack.c.b16 %v1693, %v1692
      %1698 = vst [vmem:[#allocation3 + $0x50] sm:$0xff] %v1694
      %1699 = vst [vmem:[#allocation3 + $0x58] sm:$0xff] %v1695
      %v1700 = vld [vmem:[%s561] ss:$8 sm:$0x3]
      %v1702 = vlaneseq
      %v1703 = vshrl.u32 %v1702, 7
      %v1704 = vsub.s32 0, %v1703
      %v1705 = vrot.slane %v1700, %v1704
      %v1706 = vlaneseq
      %v1707 = vshrl.u32 %v1706, 7
      %v1708 = vsub.s32 1, %v1707
      %v1709 = vrot.slane %v1700, %v1708
      %v1712 = vmul.f32 %v1358, %v1705
      %v1713 = vmul.f32 %v1359, %v1709
      %v1714 = vpack.c.bf16 %v1712, %v1712
      %v1715 = vpack.c.bf16 %v1713, %v1713
      %v1718 = vunpack.c.l.b16 %v1714
      %v1719 = vunpack.c.l.b16 %v1715
      %v1720 = vpack.c.b16 %v1719, %v1718
      %1722 = vst [vmem:[#allocation3 + $0xb8] sm:$0xff] %v1720
      %1723 = vrot.lane.b32.xlu0 %v1354, 113
      %v1724 = vpop.permute.xlu0 %1723
      %1725 = vrot.lane.b32.xlu0 %v1356, 113
      %v1726 = vpop.permute.xlu0 %1725
      %1727 = vrot.lane.b32.xlu0 %v1355, 113
      %v1728 = vpop.permute.xlu0 %1727
      %1729 = vrot.lane.b32.xlu0 %v1357, 113
      %v1730 = vpop.permute.xlu0 %1729
      %v1731 = vsel %vm590, %v1724, %v1728
      %v1732 = vsel %vm590, %v1726, %v1730
      %v1733 = vsel %vm590, %v1728, %v1724
      %v1734 = vsel %vm590, %v1730, %v1726
      %v1735 = vld [vmem:[%s593] ss:$8 sm:$0x3]
      %v1737 = vlaneseq
      %v1738 = vshrl.u32 %v1737, 7
      %v1739 = vsub.s32 0, %v1738
      %v1740 = vrot.slane %v1735, %v1739
      %v1741 = vlaneseq
      %v1742 = vshrl.u32 %v1741, 7
      %v1743 = vsub.s32 1, %v1742
      %v1744 = vrot.slane %v1735, %v1743
      %v1747 = vmul.f32 %v1731, %v1740
      %v1748 = vmul.f32 %v1733, %v1744
      %v1749 = vmul.f32 %v1732, %v1740
      %v1750 = vmul.f32 %v1734, %v1744
      %v1751 = vpack.c.bf16 %v1749, %v1747
      %v1752 = vpack.c.bf16 %v1750, %v1748
      %v1755 = vunpack.c.l.b16 %v1751
      %v1756 = vunpack.c.l.b16 %v1752
      %v1757 = vunpack.c.h.b16 %v1751
      %v1758 = vunpack.c.h.b16 %v1752
      %v1759 = vpack.c.b16 %v1756, %v1755
      %v1760 = vpack.c.b16 %v1758, %v1757
      %1763 = vst [vmem:[#allocation3 + $0x60] sm:$0xff] %v1759
      %1764 = vst [vmem:[#allocation3 + $0x68] sm:$0xff] %v1760
      %v1765 = vld [vmem:[%s593] ss:$8 sm:$0x3]
      %v1767 = vlaneseq
      %v1768 = vshrl.u32 %v1767, 7
      %v1769 = vsub.s32 0, %v1768
      %v1770 = vrot.slane %v1765, %v1769
      %v1771 = vlaneseq
      %v1772 = vshrl.u32 %v1771, 7
      %v1773 = vsub.s32 1, %v1772
      %v1774 = vrot.slane %v1765, %v1773
      %v1777 = vmul.f32 %v1358, %v1770
      %v1778 = vmul.f32 %v1359, %v1774
      %v1779 = vpack.c.bf16 %v1777, %v1777
      %v1780 = vpack.c.bf16 %v1778, %v1778
      %v1783 = vunpack.c.l.b16 %v1779
      %v1784 = vunpack.c.l.b16 %v1780
      %v1785 = vpack.c.b16 %v1784, %v1783
      %1787 = vst [vmem:[#allocation3 + $0xc0] sm:$0xff] %v1785
      %1788 = vrot.lane.b32.xlu0 %v1354, 112
      %v1789 = vpop.permute.xlu0 %1788
      %1790 = vrot.lane.b32.xlu0 %v1356, 112
      %v1791 = vpop.permute.xlu0 %1790
      %1792 = vrot.lane.b32.xlu0 %v1355, 112
      %v1793 = vpop.permute.xlu0 %1792
      %1794 = vrot.lane.b32.xlu0 %v1357, 112
      %v1795 = vpop.permute.xlu0 %1794
      %v1796 = vsel %vm621, %v1789, %v1793
      %v1797 = vsel %vm621, %v1791, %v1795
      %v1798 = vsel %vm621, %v1793, %v1789
      %v1799 = vsel %vm621, %v1795, %v1791
      %v1800 = vld [vmem:[%s624] ss:$8 sm:$0x3]
      %v1802 = vlaneseq
      %v1803 = vshrl.u32 %v1802, 7
      %v1804 = vsub.s32 0, %v1803
      %v1805 = vrot.slane %v1800, %v1804
      %v1806 = vlaneseq
      %v1807 = vshrl.u32 %v1806, 7
      %v1808 = vsub.s32 1, %v1807
      %v1809 = vrot.slane %v1800, %v1808
      %v1812 = vmul.f32 %v1796, %v1805
      %v1813 = vmul.f32 %v1798, %v1809
      %v1814 = vmul.f32 %v1797, %v1805
      %v1815 = vmul.f32 %v1799, %v1809
      %v1816 = vpack.c.bf16 %v1814, %v1812
      %v1817 = vpack.c.bf16 %v1815, %v1813
      %v1820 = vunpack.c.l.b16 %v1816
      %v1821 = vunpack.c.l.b16 %v1817
      %v1822 = vunpack.c.h.b16 %v1816
      %v1823 = vunpack.c.h.b16 %v1817
      %v1824 = vpack.c.b16 %v1821, %v1820
      %v1825 = vpack.c.b16 %v1823, %v1822
      %1828 = vst [vmem:[#allocation3 + $0x70] sm:$0xff] %v1824
      %1829 = vst [vmem:[#allocation3 + $0x78] sm:$0xff] %v1825
      %v1830 = vld [vmem:[%s624] ss:$8 sm:$0x3]
      %v1832 = vlaneseq
      %v1833 = vshrl.u32 %v1832, 7
      %v1834 = vsub.s32 0, %v1833
      %v1835 = vrot.slane %v1830, %v1834
      %v1836 = vlaneseq
      %v1837 = vshrl.u32 %v1836, 7
      %v1838 = vsub.s32 1, %v1837
      %v1839 = vrot.slane %v1830, %v1838
      %v1842 = vmul.f32 %v1358, %v1835
      %v1843 = vmul.f32 %v1359, %v1839
      %v1844 = vpack.c.bf16 %v1842, %v1842
      %v1845 = vpack.c.bf16 %v1843, %v1843
      %v1848 = vunpack.c.l.b16 %v1844
      %v1849 = vunpack.c.l.b16 %v1845
      %v1850 = vpack.c.b16 %v1849, %v1848
      %1852 = vst [vmem:[#allocation3 + $0xc8] sm:$0xff] %v1850
      %1853 = vrot.lane.b32.xlu0 %v1354, 111
      %v1854 = vpop.permute.xlu0 %1853
      %1855 = vrot.lane.b32.xlu0 %v1356, 111
      %v1856 = vpop.permute.xlu0 %1855
      %1857 = vrot.lane.b32.xlu0 %v1355, 111
      %v1858 = vpop.permute.xlu0 %1857
      %1859 = vrot.lane.b32.xlu0 %v1357, 111
      %v1860 = vpop.permute.xlu0 %1859
      %v1861 = vsel %vm653, %v1854, %v1858
      %v1862 = vsel %vm653, %v1856, %v1860
      %v1863 = vsel %vm653, %v1858, %v1854
      %v1864 = vsel %vm653, %v1860, %v1856
      %v1865 = vld [vmem:[%s656] ss:$8 sm:$0x3]
      %v1867 = vlaneseq
      %v1868 = vshrl.u32 %v1867, 7
      %v1869 = vsub.s32 0, %v1868
      %v1870 = vrot.slane %v1865, %v1869
      %v1871 = vlaneseq
      %v1872 = vshrl.u32 %v1871, 7
      %v1873 = vsub.s32 1, %v1872
      %v1874 = vrot.slane %v1865, %v1873
      %v1877 = vmul.f32 %v1861, %v1870
      %v1878 = vmul.f32 %v1863, %v1874
      %v1879 = vmul.f32 %v1862, %v1870
      %v1880 = vmul.f32 %v1864, %v1874
      %v1881 = vpack.c.bf16 %v1879, %v1877
      %v1882 = vpack.c.bf16 %v1880, %v1878
      %v1885 = vunpack.c.l.b16 %v1881
      %v1886 = vunpack.c.l.b16 %v1882
      %v1887 = vunpack.c.h.b16 %v1881
      %v1888 = vunpack.c.h.b16 %v1882
      %v1889 = vpack.c.b16 %v1886, %v1885
      %v1890 = vpack.c.b16 %v1888, %v1887
      %1893 = vst [vmem:[#allocation3 + $0x80] sm:$0xff] %v1889
      %1894 = vst [vmem:[#allocation3 + $0x88] sm:$0xff] %v1890
      %v1895 = vld [vmem:[%s656] ss:$8 sm:$0x3]
      %v1897 = vlaneseq
      %v1898 = vshrl.u32 %v1897, 7
      %v1899 = vsub.s32 0, %v1898
      %v1900 = vrot.slane %v1895, %v1899
      %v1901 = vlaneseq
      %v1902 = vshrl.u32 %v1901, 7
      %v1903 = vsub.s32 1, %v1902
      %v1904 = vrot.slane %v1895, %v1903
      %v1907 = vmul.f32 %v1358, %v1900
      %v1908 = vmul.f32 %v1359, %v1904
      %v1909 = vpack.c.bf16 %v1907, %v1907
      %v1910 = vpack.c.bf16 %v1908, %v1908
      %v1913 = vunpack.c.l.b16 %v1909
      %v1914 = vunpack.c.l.b16 %v1910
      %v1915 = vpack.c.b16 %v1914, %v1913
      %1917 = vst [vmem:[#allocation3 + $0xd0] sm:$0xff] %v1915
      %v1918 = vld [vmem:[%s7] sm:$0xff]
      %v1919 = vld [vmem:[%s7 + $0x8] sm:$0xff]
      %v1920 = vld [vmem:[#allocation3] sm:$0xff]
      %v1921 = vld [vmem:[#allocation3 + $0x8] sm:$0xff]
      %v1922 = vld [vmem:[#allocation3 + $0x10] sm:$0xff]
      %v1923 = vld [vmem:[#allocation3 + $0x18] sm:$0xff]
      %v1924 = vld [vmem:[#allocation3 + $0x20] sm:$0xff]
      %v1925 = vld [vmem:[#allocation3 + $0x28] sm:$0xff]
      %v1926 = vld [vmem:[#allocation3 + $0x30] sm:$0xff]
      %v1927 = vld [vmem:[#allocation3 + $0x38] sm:$0xff]
      %v1928 = vld [vmem:[#allocation3 + $0x40] sm:$0xff]
      %v1929 = vld [vmem:[#allocation3 + $0x48] sm:$0xff]
      %v1930 = vld [vmem:[#allocation3 + $0x50] sm:$0xff]
      %v1931 = vld [vmem:[#allocation3 + $0x58] sm:$0xff]
      %v1932 = vld [vmem:[#allocation3 + $0x60] sm:$0xff]
      %v1933 = vld [vmem:[#allocation3 + $0x68] sm:$0xff]
      %v1934 = vld [vmem:[#allocation3 + $0x70] sm:$0xff]
      %v1935 = vld [vmem:[#allocation3 + $0x78] sm:$0xff]
      %v1936 = vld [vmem:[#allocation3 + $0x80] sm:$0xff]
      %v1937 = vld [vmem:[#allocation3 + $0x88] sm:$0xff]
      %v1938 = vld [vmem:[#allocation3 + $0x90] sm:$0xff]
      %v1939 = vld [vmem:[#allocation3 + $0x98] sm:$0xff]
      %v1940 = vld [vmem:[#allocation3 + $0xa0] sm:$0xff]
      %v1941 = vld [vmem:[#allocation3 + $0xa8] sm:$0xff]
      %v1942 = vld [vmem:[#allocation3 + $0xb0] sm:$0xff]
      %v1943 = vld [vmem:[#allocation3 + $0xb8] sm:$0xff]
      %v1944 = vld [vmem:[#allocation3 + $0xc0] sm:$0xff]
      %v1945 = vld [vmem:[#allocation3 + $0xc8] sm:$0xff]
      %v1946 = vld [vmem:[#allocation3 + $0xd0] sm:$0xff]
      %v1949 = vunpack.c.l.b16 %v1918
      %v1950 = vunpack.c.h.b16 %v1918
      %v1951 = vunpack.c.l.b16 %v1919
      %v1952 = vunpack.c.h.b16 %v1919
      %v1953 = vpack.c.b16 %v1951, %v1949
      %v1954 = vpack.c.b16 %v1952, %v1950
      %v1983 = vunpack.c.l.b16 %v1920
      %v1984 = vunpack.c.h.b16 %v1920
      %v1985 = vunpack.c.l.b16 %v1921
      %v1986 = vunpack.c.h.b16 %v1921
      %v1987 = vunpack.c.l.b16 %v1922
      %v1988 = vunpack.c.h.b16 %v1922
      %v1989 = vunpack.c.l.b16 %v1923
      %v1990 = vunpack.c.h.b16 %v1923
      %v1991 = vunpack.c.l.b16 %v1924
      %v1992 = vunpack.c.h.b16 %v1924
      %v1993 = vunpack.c.l.b16 %v1925
      %v1994 = vunpack.c.h.b16 %v1925
      %v1995 = vunpack.c.l.b16 %v1926
      %v1996 = vunpack.c.h.b16 %v1926
      %v1997 = vunpack.c.l.b16 %v1927
      %v1998 = vunpack.c.h.b16 %v1927
      %v1999 = vunpack.c.l.b16 %v1928
      %v2000 = vunpack.c.h.b16 %v1928
      %v2001 = vunpack.c.l.b16 %v1929
      %v2002 = vunpack.c.h.b16 %v1929
      %v2003 = vunpack.c.l.b16 %v1930
      %v2004 = vunpack.c.h.b16 %v1930
      %v2005 = vunpack.c.l.b16 %v1931
      %v2006 = vunpack.c.h.b16 %v1931
      %v2007 = vunpack.c.l.b16 %v1932
      %v2008 = vunpack.c.h.b16 %v1932
      %v2009 = vunpack.c.l.b16 %v1933
      %v2010 = vunpack.c.h.b16 %v1933
      %v2011 = vunpack.c.l.b16 %v1934
      %v2012 = vunpack.c.h.b16 %v1934
      %v2013 = vunpack.c.l.b16 %v1935
      %v2014 = vunpack.c.h.b16 %v1935
      %v2015 = vunpack.c.l.b16 %v1936
      %v2016 = vunpack.c.h.b16 %v1936
      %v2017 = vunpack.c.l.b16 %v1937
      %v2018 = vunpack.c.h.b16 %v1937
      %v2019 = vunpack.c.l.b16 %v1938
      %v2020 = vunpack.c.h.b16 %v1938
      %v2021 = vunpack.c.l.b16 %v1939
      %v2022 = vunpack.c.h.b16 %v1939
      %v2023 = vunpack.c.l.b16 %v1940
      %v2024 = vunpack.c.h.b16 %v1940
      %v2025 = vunpack.c.l.b16 %v1941
      %v2026 = vunpack.c.h.b16 %v1941
      %v2027 = vunpack.c.l.b16 %v1942
      %v2028 = vunpack.c.h.b16 %v1942
      %v2029 = vunpack.c.l.b16 %v1943
      %v2030 = vunpack.c.h.b16 %v1943
      %v2031 = vunpack.c.l.b16 %v1944
      %v2032 = vunpack.c.h.b16 %v1944
      %v2033 = vunpack.c.l.b16 %v1945
      %v2034 = vunpack.c.h.b16 %v1945
      %v2035 = vunpack.c.l.b16 %v1946
      %v2036 = vunpack.c.h.b16 %v1946
      %v2037 = vpack.c.b16 %v1985, %v1983
      %v2038 = vpack.c.b16 %v1986, %v1984
      %v2039 = vpack.c.b16 %v1989, %v1987
      %v2040 = vpack.c.b16 %v1990, %v1988
      %v2041 = vpack.c.b16 %v1993, %v1991
      %v2042 = vpack.c.b16 %v1994, %v1992
      %v2043 = vpack.c.b16 %v1997, %v1995
      %v2044 = vpack.c.b16 %v1998, %v1996
      %v2045 = vpack.c.b16 %v2001, %v1999
      %v2046 = vpack.c.b16 %v2002, %v2000
      %v2047 = vpack.c.b16 %v2005, %v2003
      %v2048 = vpack.c.b16 %v2006, %v2004
      %v2049 = vpack.c.b16 %v2009, %v2007
      %v2050 = vpack.c.b16 %v2010, %v2008
      %v2051 = vpack.c.b16 %v2013, %v2011
      %v2052 = vpack.c.b16 %v2014, %v2012
      %v2053 = vpack.c.b16 %v2017, %v2015
      %v2054 = vpack.c.b16 %v2018, %v2016
      %v2055 = vpack.c.b16 %v2021, %v2019
      %v2056 = vpack.c.b16 %v2022, %v2020
      %v2057 = vpack.c.b16 %v2025, %v2023
      %v2058 = vpack.c.b16 %v2026, %v2024
      %v2059 = vpack.c.b16 %v2029, %v2027
      %v2060 = vpack.c.b16 %v2030, %v2028
      %v2061 = vpack.c.b16 %v2033, %v2031
      %v2062 = vpack.c.b16 %v2034, %v2032
      %v2063 = vpack.c.b16 %v2035, %v2035
      %v2064 = vpack.c.b16 %v2036, %v2036
      %vm2091 = vcmask 719872
      %v2093 = vsel %vm2091, %v1954, 0
      %vm2095 = vcmask 1043456
      %v2097 = vsel %vm2095, %v2063, 0
      %v2100 = vsel %vm2095, %v2064, 0
      %2102 = vmatprep.subr.bf16.mxu0 %v2038
      %2103 = vmatpush1.bf16.msra.mxu0 %v2037
      %2104 = vmatprep.subr.bf16.mxu0 %v2040
      %2105 = vmatpush1.bf16.msra.mxu0 %v2039
      %2106 = vmatprep.subr.bf16.mxu0 %v2042
      %2107 = vmatpush1.bf16.msra.mxu0 %v2041
      %2108 = vmatprep.subr.bf16.mxu0 %v2044
      %2109 = vmatpush1.bf16.msra.mxu0 %v2043
      %2110 = vmatprep.subr.bf16.mxu0 %v2046
      %2111 = vmatpush1.bf16.msra.mxu0 %v2045
      %2112 = vmatprep.subr.bf16.mxu0 %v2048
      %2113 = vmatpush1.bf16.msra.mxu0 %v2047
      %2114 = vmatprep.subr.bf16.mxu0 %v2050
      %2115 = vmatpush1.bf16.msra.mxu0 %v2049
      %2116 = vmatprep.subr.bf16.mxu0 %v2052
      %2117 = vmatpush1.bf16.msra.mxu0 %v2051
      %2118 = vmatprep.subr.bf16.mxu0 %v2054
      %2119 = vmatpush1.bf16.msra.mxu0 %v2053
      %2120 = vmatprep.subr.bf16.mxu0 %v2056
      %2121 = vmatpush1.bf16.msra.mxu0 %v2055
      %2122 = vmatprep.subr.bf16.mxu0 %v2058
      %2123 = vmatpush1.bf16.msra.mxu0 %v2057
      %2124 = vmatprep.subr.bf16.mxu0 %v2060
      %2125 = vmatpush1.bf16.msra.mxu0 %v2059
      %2126 = vmatprep.subr.bf16.mxu0 %v2062
      %2127 = vmatpush1.bf16.msra.mxu0 %v2061
      %2128 = vmatprep.subr.bf16.mxu0 %v2100
      %2129 = vmatpush1.bf16.msra.mxu0 %v2097
      %2130 = vmatprep.subr.bf16.mxu0 0
      %2131 = vmatpush1.bf16.msra.mxu0 0
      %2132 = vmatprep.subr.bf16.mxu0 0
      %2133 = vmatpush1.bf16.msra.mxu0 0
      %2134 = vmatprep.mubr.bf16.mxu0 %v2093
      %2135 = vmatmul.mubr.bf16.gmra.mrb[0].mxu0 %v1953
      %v2136 = vpop.f32.mrb[0].mxu0
      %v2137 = vadd.f32 0.0, %v2136
      %v2138 = vpop.f32.mrb[0].mxu0
      %v2139 = vadd.f32 0.0, %v2138
      %v2140 = vpop.f32.mrb[0].mxu0
      %v2141 = vadd.f32 0.0, %v2140
      %v2142 = vpop.f32.mrb[0].mxu0
      %v2143 = vadd.f32 0.0, %v2142
      %2144 = vdwg.mxu0
      %v2145 = vadd.f32 %v790, %v2137
      %v2146 = vadd.f32 %v792, %v2139
      %v2147 = vadd.f32 %v794, %v2141
      %v2148 = vadd.f32 %v796, %v2143
      %v2149 = vld [vmem:[%s8] sm:$0xff]
      %v2150 = vld [vmem:[%s8 + $0x8] sm:$0xff]
      %2152 = vset.pattern.permute.xlu0 0
      %2153 = vperm.xlu0 %2152, %v2149
      %v2154 = vpop.permute.xlu0 %2153
      %2157 = vset.pattern.permute.xlu0 0
      %2158 = vperm.xlu0 %2157, %v2150
      %v2159 = vpop.permute.xlu0 %2158
      %v2161 = vadd.f32 %v2145, %v2154
      %v2162 = vadd.f32 %v2146, %v2154
      %v2163 = vadd.f32 %v2147, %v2159
      %v2164 = vadd.f32 %v2148, %v2159
      %v2165 = vmax.f32 %v2161, 0.0
      %v2166 = vmax.f32 %v2162, 0.0
      %v2167 = vmax.f32 %v2163, 0.0
      %v2168 = vmax.f32 %v2164, 0.0
      %v2169 = vld [vmem:[%s9] sm:$0x3]
      %v2170 = vpack.c.bf16 %v2167, %v2165
      %v2171 = vpack.c.bf16 %v2168, %v2166
      %v2172 = vld [vmem:[%s10] sm:$0x7]
      %2174 = vset.pattern.permute.xlu0 0
      %2175 = vperm.xlu0 %2174, %v2172
      %v2176 = vpop.permute.xlu0 %2175
      %v2179 = vsel %vm1307, %v2169, 0
      %2181 = vmatprep.subr.bf16.mxu0 %v2171
      %2182 = vmatpush1.bf16.msra.mxu0 %v2170
      %2183 = vmatprep.subr.bf16.mxu0 0
      %2184 = vmatpush1.bf16.msra.mxu0 0
      %2185 = vmatprep.subr.bf16.mxu0 0
      %2186 = vmatpush1.bf16.msra.mxu0 0
      %2187 = vmatprep.subr.bf16.mxu0 0
      %2188 = vmatpush1.bf16.msra.mxu0 0
      %2189 = vmatprep.subr.bf16.mxu0 0
      %2190 = vmatpush1.bf16.msra.mxu0 0
      %2191 = vmatprep.subr.bf16.mxu0 0
      %2192 = vmatpush1.bf16.msra.mxu0 0
      %2193 = vmatprep.subr.bf16.mxu0 0
      %2194 = vmatpush1.bf16.msra.mxu0 0
      %2195 = vmatprep.subr.bf16.mxu0 0
      %2196 = vmatpush1.bf16.msra.mxu0 0
      %2197 = vmatprep.subr.bf16.mxu0 0
      %2198 = vmatpush1.bf16.msra.mxu0 0
      %2199 = vmatprep.subr.bf16.mxu0 0
      %2200 = vmatpush1.bf16.msra.mxu0 0
      %2201 = vmatprep.subr.bf16.mxu0 0
      %2202 = vmatpush1.bf16.msra.mxu0 0
      %2203 = vmatprep.subr.bf16.mxu0 0
      %2204 = vmatpush1.bf16.msra.mxu0 0
      %2205 = vmatprep.subr.bf16.mxu0 0
      %2206 = vmatpush1.bf16.msra.mxu0 0
      %2207 = vmatprep.subr.bf16.mxu0 0
      %2208 = vmatpush1.bf16.msra.mxu0 0
      %2209 = vmatprep.subr.bf16.mxu0 0
      %2210 = vmatpush1.bf16.msra.mxu0 0
      %2211 = vmatprep.subr.bf16.mxu0 0
      %2212 = vmatpush1.bf16.msra.mxu0 0
      %2213 = vmatprep.mubr.bf16.mxu0 0
      %2214 = vmatmul.mubr.bf16.gmra.mrb[0].mxu0 %v2179
      %v2215 = vpop.f32.mrb[0].mxu0
      %v2216 = vadd.f32 %v2176, %v2215
      %v2217 = vpop.f32.mrb[0].mxu0
      %v2218 = vadd.f32 %v2176, %v2217
      %v2219 = vpop.f32.mrb[0].mxu0
      %v2220 = vpop.f32.mrb[0].mxu0
      %2221 = vdwg.mxu0
      %s2222 = scalar_lea.vmem %s398, 3
      %v2223 = vld [vmem:[%s2222] ss:$4 sm:$0x3]
      %v2225 = vlaneseq
      %v2226 = vshrl.u32 %v2225, 7
      %v2227 = vsub.s32 0, %v2226
      %v2228 = vrot.slane %v2223, %v2227
      %v2229 = vlaneseq
      %v2230 = vshrl.u32 %v2229, 7
      %v2231 = vsub.s32 1, %v2230
      %v2232 = vrot.slane %v2223, %v2231
      %2235 = vrot.lane.b32.xlu0 %v2228, 34
      %v2236 = vpop.permute.xlu0 %2235
      %2237 = vrot.lane.b32.xlu0 %v2232, 34
      %v2238 = vpop.permute.xlu0 %2237
      %vm2239 = vcmp.lt.s32.totalorder %v422, 34
      %v2240 = vsel %vm2239, %v2236, %v2238
      %v2241 = vsel %vm2239, %v2238, %v2236
      %v2242 = vld [vmem:[%s2] ss:$8 sm:$0x3]
      %v2244 = vlaneseq
      %v2245 = vshrl.u32 %v2244, 7
      %v2246 = vsub.s32 0, %v2245
      %v2247 = vrot.slane %v2242, %v2246
      %v2248 = vlaneseq
      %v2249 = vshrl.u32 %v2248, 7
      %v2250 = vsub.s32 1, %v2249
      %v2251 = vrot.slane %v2242, %v2250
      %v2254 = vmul.f32 %v2241, %v2247
      %v2255 = vmul.f32 %v2240, %v2251
      %v2256 = vadd.f32 %v800, %v2254
      %v2257 = vadd.f32 %v802, %v2255
      %2258 = vrot.lane.b32.xlu0 %v2228, 33
      %v2259 = vpop.permute.xlu0 %2258
      %2260 = vrot.lane.b32.xlu0 %v2232, 33
      %v2261 = vpop.permute.xlu0 %2260
      %vm2262 = vcmp.lt.s32.totalorder %v422, 33
      %v2263 = vsel %vm2262, %v2259, %v2261
      %v2264 = vsel %vm2262, %v2261, %v2259
      %s2265 = scalar_lea.vmem %s2, 1
      %v2266 = vld [vmem:[%s2265] ss:$8 sm:$0x3]
      %v2268 = vlaneseq
      %v2269 = vshrl.u32 %v2268, 7
      %v2270 = vsub.s32 0, %v2269
      %v2271 = vrot.slane %v2266, %v2270
      %v2272 = vlaneseq
      %v2273 = vshrl.u32 %v2272, 7
      %v2274 = vsub.s32 1, %v2273
      %v2275 = vrot.slane %v2266, %v2274
      %v2278 = vmul.f32 %v2264, %v2271
      %v2279 = vmul.f32 %v2263, %v2275
      %v2280 = vadd.f32 %v2256, %v2278
      %v2281 = vadd.f32 %v2257, %v2279
      %2282 = vrot.lane.b32.xlu0 %v2228, 32
      %v2283 = vpop.permute.xlu0 %2282
      %2284 = vrot.lane.b32.xlu0 %v2232, 32
      %v2285 = vpop.permute.xlu0 %2284
      %vm2286 = vcmp.lt.s32.totalorder %v422, 32
      %v2287 = vsel %vm2286, %v2283, %v2285
      %v2288 = vsel %vm2286, %v2285, %v2283
      %s2289 = scalar_lea.vmem %s2, 2
      %v2290 = vld [vmem:[%s2289] ss:$8 sm:$0x3]
      %v2292 = vlaneseq
      %v2293 = vshrl.u32 %v2292, 7
      %v2294 = vsub.s32 0, %v2293
      %v2295 = vrot.slane %v2290, %v2294
      %v2296 = vlaneseq
      %v2297 = vshrl.u32 %v2296, 7
      %v2298 = vsub.s32 1, %v2297
      %v2299 = vrot.slane %v2290, %v2298
      %v2302 = vmul.f32 %v2288, %v2295
      %v2303 = vmul.f32 %v2287, %v2299
      %v2304 = vadd.f32 %v2280, %v2302
      %v2305 = vadd.f32 %v2281, %v2303
      %2306 = vrot.lane.b32.xlu0 %v2228, 31
      %v2307 = vpop.permute.xlu0 %2306
      %2308 = vrot.lane.b32.xlu0 %v2232, 31
      %v2309 = vpop.permute.xlu0 %2308
      %vm2310 = vcmp.lt.s32.totalorder %v422, 31
      %v2311 = vsel %vm2310, %v2307, %v2309
      %v2312 = vsel %vm2310, %v2309, %v2307
      %s2313 = scalar_lea.vmem %s2, 3
      %v2314 = vld [vmem:[%s2313] ss:$8 sm:$0x3]
      %v2316 = vlaneseq
      %v2317 = vshrl.u32 %v2316, 7
      %v2318 = vsub.s32 0, %v2317
      %v2319 = vrot.slane %v2314, %v2318
      %v2320 = vlaneseq
      %v2321 = vshrl.u32 %v2320, 7
      %v2322 = vsub.s32 1, %v2321
      %v2323 = vrot.slane %v2314, %v2322
      %v2326 = vmul.f32 %v2312, %v2319
      %v2327 = vmul.f32 %v2311, %v2323
      %v2328 = vadd.f32 %v2304, %v2326
      %v2329 = vadd.f32 %v2305, %v2327
      %2330 = vrot.lane.b32.xlu0 %v2228, 30
      %v2331 = vpop.permute.xlu0 %2330
      %2332 = vrot.lane.b32.xlu0 %v2232, 30
      %v2333 = vpop.permute.xlu0 %2332
      %vm2334 = vcmp.lt.s32.totalorder %v422, 30
      %v2335 = vsel %vm2334, %v2331, %v2333
      %v2336 = vsel %vm2334, %v2333, %v2331
      %s2337 = scalar_lea.vmem %s2, 4
      %v2338 = vld [vmem:[%s2337] ss:$8 sm:$0x3]
      %v2340 = vlaneseq
      %v2341 = vshrl.u32 %v2340, 7
      %v2342 = vsub.s32 0, %v2341
      %v2343 = vrot.slane %v2338, %v2342
      %v2344 = vlaneseq
      %v2345 = vshrl.u32 %v2344, 7
      %v2346 = vsub.s32 1, %v2345
      %v2347 = vrot.slane %v2338, %v2346
      %v2350 = vmul.f32 %v2336, %v2343
      %v2351 = vmul.f32 %v2335, %v2347
      %v2352 = vadd.f32 %v2328, %v2350
      %v2353 = vadd.f32 %v2329, %v2351
      %2354 = vrot.lane.b32.xlu0 %v2228, 18
      %v2355 = vpop.permute.xlu0 %2354
      %2356 = vrot.lane.b32.xlu0 %v2232, 18
      %v2357 = vpop.permute.xlu0 %2356
      %vm2358 = vcmp.lt.s32.totalorder %v422, 18
      %v2359 = vsel %vm2358, %v2355, %v2357
      %v2360 = vsel %vm2358, %v2357, %v2355
      %s2361 = scalar_lea.vmem %s2, 5
      %v2362 = vld [vmem:[%s2361] ss:$8 sm:$0x3]
      %v2364 = vlaneseq
      %v2365 = vshrl.u32 %v2364, 7
      %v2366 = vsub.s32 0, %v2365
      %v2367 = vrot.slane %v2362, %v2366
      %v2368 = vlaneseq
      %v2369 = vshrl.u32 %v2368, 7
      %v2370 = vsub.s32 1, %v2369
      %v2371 = vrot.slane %v2362, %v2370
      %v2374 = vmul.f32 %v2360, %v2367
      %v2375 = vmul.f32 %v2359, %v2371
      %v2376 = vadd.f32 %v2352, %v2374
      %v2377 = vadd.f32 %v2353, %v2375
      %2378 = vrot.lane.b32.xlu0 %v2228, 14
      %v2379 = vpop.permute.xlu0 %2378
      %2380 = vrot.lane.b32.xlu0 %v2232, 14
      %v2381 = vpop.permute.xlu0 %2380
      %vm2382 = vcmp.lt.s32.totalorder %v422, 14
      %v2383 = vsel %vm2382, %v2379, %v2381
      %v2384 = vsel %vm2382, %v2381, %v2379
      %s2385 = scalar_lea.vmem %s2, 17
      %v2386 = vld [vmem:[%s2385] ss:$8 sm:$0x3]
      %v2388 = vlaneseq
      %v2389 = vshrl.u32 %v2388, 7
      %v2390 = vsub.s32 0, %v2389
      %v2391 = vrot.slane %v2386, %v2390
      %v2392 = vlaneseq
      %v2393 = vshrl.u32 %v2392, 7
      %v2394 = vsub.s32 1, %v2393
      %v2395 = vrot.slane %v2386, %v2394
      %v2398 = vmul.f32 %v2384, %v2391
      %v2399 = vmul.f32 %v2383, %v2395
      %v2400 = vadd.f32 %v2376, %v2398
      %v2401 = vadd.f32 %v2377, %v2399
      %2402 = vrot.lane.b32.xlu0 %v2228, 2
      %v2403 = vpop.permute.xlu0 %2402
      %2404 = vrot.lane.b32.xlu0 %v2232, 2
      %v2405 = vpop.permute.xlu0 %2404
      %vm2406 = vcmp.lt.s32.totalorder %v422, 2
      %v2407 = vsel %vm2406, %v2403, %v2405
      %v2408 = vsel %vm2406, %v2405, %v2403
      %s2409 = scalar_lea.vmem %s2, 18
      %v2410 = vld [vmem:[%s2409] ss:$8 sm:$0x3]
      %v2412 = vlaneseq
      %v2413 = vshrl.u32 %v2412, 7
      %v2414 = vsub.s32 0, %v2413
      %v2415 = vrot.slane %v2410, %v2414
      %v2416 = vlaneseq
      %v2417 = vshrl.u32 %v2416, 7
      %v2418 = vsub.s32 1, %v2417
      %v2419 = vrot.slane %v2410, %v2418
      %v2422 = vmul.f32 %v2408, %v2415
      %v2423 = vmul.f32 %v2407, %v2419
      %v2424 = vadd.f32 %v2400, %v2422
      %v2425 = vadd.f32 %v2401, %v2423
      %2426 = vrot.lane.b32.xlu0 %v2228, 126
      %v2427 = vpop.permute.xlu0 %2426
      %2428 = vrot.lane.b32.xlu0 %v2232, 126
      %v2429 = vpop.permute.xlu0 %2428
      %vm2430 = vcmp.lt.s32.totalorder %v422, 126
      %v2431 = vsel %vm2430, %v2427, %v2429
      %v2432 = vsel %vm2430, %v2429, %v2427
      %s2433 = scalar_lea.vmem %s2, 22
      %v2434 = vld [vmem:[%s2433] ss:$8 sm:$0x3]
      %v2436 = vlaneseq
      %v2437 = vshrl.u32 %v2436, 7
      %v2438 = vsub.s32 0, %v2437
      %v2439 = vrot.slane %v2434, %v2438
      %v2440 = vlaneseq
      %v2441 = vshrl.u32 %v2440, 7
      %v2442 = vsub.s32 1, %v2441
      %v2443 = vrot.slane %v2434, %v2442
      %v2446 = vmul.f32 %v2431, %v2439
      %v2447 = vmul.f32 %v2432, %v2443
      %v2448 = vadd.f32 %v2424, %v2446
      %v2449 = vadd.f32 %v2425, %v2447
      %2450 = vrot.lane.b32.xlu0 %v2228, 114
      %v2451 = vpop.permute.xlu0 %2450
      %2452 = vrot.lane.b32.xlu0 %v2232, 114
      %v2453 = vpop.permute.xlu0 %2452
      %vm2454 = vcmp.lt.s32.totalorder %v422, 114
      %v2455 = vsel %vm2454, %v2451, %v2453
      %v2456 = vsel %vm2454, %v2453, %v2451
      %s2457 = scalar_lea.vmem %s2, 23
      %v2458 = vld [vmem:[%s2457] ss:$8 sm:$0x3]
      %v2460 = vlaneseq
      %v2461 = vshrl.u32 %v2460, 7
      %v2462 = vsub.s32 0, %v2461
      %v2463 = vrot.slane %v2458, %v2462
      %v2464 = vlaneseq
      %v2465 = vshrl.u32 %v2464, 7
      %v2466 = vsub.s32 1, %v2465
      %v2467 = vrot.slane %v2458, %v2466
      %v2470 = vmul.f32 %v2455, %v2463
      %v2471 = vmul.f32 %v2456, %v2467
      %v2472 = vadd.f32 %v2448, %v2470
      %v2473 = vadd.f32 %v2449, %v2471
      %2474 = vrot.lane.b32.xlu0 %v2228, 110
      %v2475 = vpop.permute.xlu0 %2474
      %2476 = vrot.lane.b32.xlu0 %v2232, 110
      %v2477 = vpop.permute.xlu0 %2476
      %vm2478 = vcmp.lt.s32.totalorder %v422, 110
      %v2479 = vsel %vm2478, %v2475, %v2477
      %v2480 = vsel %vm2478, %v2477, %v2475
      %s2481 = scalar_lea.vmem %s2, 35
      %v2482 = vld [vmem:[%s2481] ss:$8 sm:$0x3]
      %v2484 = vlaneseq
      %v2485 = vshrl.u32 %v2484, 7
      %v2486 = vsub.s32 0, %v2485
      %v2487 = vrot.slane %v2482, %v2486
      %v2488 = vlaneseq
      %v2489 = vshrl.u32 %v2488, 7
      %v2490 = vsub.s32 1, %v2489
      %v2491 = vrot.slane %v2482, %v2490
      %v2494 = vmul.f32 %v2479, %v2487
      %v2495 = vmul.f32 %v2480, %v2491
      %v2496 = vadd.f32 %v2472, %v2494
      %v2497 = vadd.f32 %v2473, %v2495
      %2498 = vrot.lane.b32.xlu0 %v2228, 98
      %v2499 = vpop.permute.xlu0 %2498
      %2500 = vrot.lane.b32.xlu0 %v2232, 98
      %v2501 = vpop.permute.xlu0 %2500
      %vm2502 = vcmp.lt.s32.totalorder %v422, 98
      %v2503 = vsel %vm2502, %v2499, %v2501
      %v2504 = vsel %vm2502, %v2501, %v2499
      %s2505 = scalar_lea.vmem %s2, 36
      %v2506 = vld [vmem:[%s2505] ss:$8 sm:$0x3]
      %v2508 = vlaneseq
      %v2509 = vshrl.u32 %v2508, 7
      %v2510 = vsub.s32 0, %v2509
      %v2511 = vrot.slane %v2506, %v2510
      %v2512 = vlaneseq
      %v2513 = vshrl.u32 %v2512, 7
      %v2514 = vsub.s32 1, %v2513
      %v2515 = vrot.slane %v2506, %v2514
      %v2518 = vmul.f32 %v2503, %v2511
      %v2519 = vmul.f32 %v2504, %v2515
      %v2520 = vadd.f32 %v2496, %v2518
      %v2521 = vadd.f32 %v2497, %v2519
      %2522 = vrot.lane.b32.xlu0 %v2228, 97
      %v2523 = vpop.permute.xlu0 %2522
      %2524 = vrot.lane.b32.xlu0 %v2232, 97
      %v2525 = vpop.permute.xlu0 %2524
      %vm2526 = vcmp.lt.s32.totalorder %v422, 97
      %v2527 = vsel %vm2526, %v2523, %v2525
      %v2528 = vsel %vm2526, %v2525, %v2523
      %s2529 = scalar_lea.vmem %s2, 37
      %v2530 = vld [vmem:[%s2529] ss:$8 sm:$0x3]
      %v2532 = vlaneseq
      %v2533 = vshrl.u32 %v2532, 7
      %v2534 = vsub.s32 0, %v2533
      %v2535 = vrot.slane %v2530, %v2534
      %v2536 = vlaneseq
      %v2537 = vshrl.u32 %v2536, 7
      %v2538 = vsub.s32 1, %v2537
      %v2539 = vrot.slane %v2530, %v2538
      %v2542 = vmul.f32 %v2527, %v2535
      %v2543 = vmul.f32 %v2528, %v2539
      %v2544 = vadd.f32 %v2520, %v2542
      %v2545 = vadd.f32 %v2521, %v2543
      %2546 = vrot.lane.b32.xlu0 %v2228, 96
      %v2547 = vpop.permute.xlu0 %2546
      %2548 = vrot.lane.b32.xlu0 %v2232, 96
      %v2549 = vpop.permute.xlu0 %2548
      %vm2550 = vcmp.lt.s32.totalorder %v422, 96
      %v2551 = vsel %vm2550, %v2547, %v2549
      %v2552 = vsel %vm2550, %v2549, %v2547
      %s2553 = scalar_lea.vmem %s2, 38
      %v2554 = vld [vmem:[%s2553] ss:$8 sm:$0x3]
      %v2556 = vlaneseq
      %v2557 = vshrl.u32 %v2556, 7
      %v2558 = vsub.s32 0, %v2557
      %v2559 = vrot.slane %v2554, %v2558
      %v2560 = vlaneseq
      %v2561 = vshrl.u32 %v2560, 7
      %v2562 = vsub.s32 1, %v2561
      %v2563 = vrot.slane %v2554, %v2562
      %v2566 = vmul.f32 %v2551, %v2559
      %v2567 = vmul.f32 %v2552, %v2563
      %v2568 = vadd.f32 %v2544, %v2566
      %v2569 = vadd.f32 %v2545, %v2567
      %2570 = vrot.lane.b32.xlu0 %v2228, 95
      %v2571 = vpop.permute.xlu0 %2570
      %2572 = vrot.lane.b32.xlu0 %v2232, 95
      %v2573 = vpop.permute.xlu0 %2572
      %vm2574 = vcmp.lt.s32.totalorder %v422, 95
      %v2575 = vsel %vm2574, %v2571, %v2573
      %v2576 = vsel %vm2574, %v2573, %v2571
      %s2577 = scalar_lea.vmem %s2, 39
      %v2578 = vld [vmem:[%s2577] ss:$8 sm:$0x3]
      %v2580 = vlaneseq
      %v2581 = vshrl.u32 %v2580, 7
      %v2582 = vsub.s32 0, %v2581
      %v2583 = vrot.slane %v2578, %v2582
      %v2584 = vlaneseq
      %v2585 = vshrl.u32 %v2584, 7
      %v2586 = vsub.s32 1, %v2585
      %v2587 = vrot.slane %v2578, %v2586
      %v2590 = vmul.f32 %v2575, %v2583
      %v2591 = vmul.f32 %v2576, %v2587
      %v2592 = vadd.f32 %v2568, %v2590
      %v2593 = vadd.f32 %v2569, %v2591
      %2594 = vrot.lane.b32.xlu0 %v2228, 94
      %v2595 = vpop.permute.xlu0 %2594
      %2596 = vrot.lane.b32.xlu0 %v2232, 94
      %v2597 = vpop.permute.xlu0 %2596
      %vm2598 = vcmp.lt.s32.totalorder %v422, 94
      %v2599 = vsel %vm2598, %v2595, %v2597
      %v2600 = vsel %vm2598, %v2597, %v2595
      %s2601 = scalar_lea.vmem %s2, 48
      %v2602 = vld [vmem:[%s2601] ss:$8 sm:$0x3]
      %v2604 = vlaneseq
      %v2605 = vshrl.u32 %v2604, 7
      %v2606 = vsub.s32 0, %v2605
      %v2607 = vrot.slane %v2602, %v2606
      %v2608 = vlaneseq
      %v2609 = vshrl.u32 %v2608, 7
      %v2610 = vsub.s32 1, %v2609
      %v2611 = vrot.slane %v2602, %v2610
      %v2614 = vmul.f32 %v2599, %v2607
      %v2615 = vmul.f32 %v2600, %v2611
      %v2616 = vadd.f32 %v2592, %v2614
      %v2617 = vadd.f32 %v2593, %v2615
      %v2618 = vmul.f32 %v2616, 0.03125
      %v2619 = vmul.f32 %v2617, 0.03125
      %vm2620 = vcmp.le.f32.partialorder %v2618, 127.0
      %vm2621 = vcmp.le.f32.partialorder %v2619, 127.0
      %v2622 = vrcp.pop 127.0
      %v2623 = vmul.f32 %v2618, %v2622
      %v2624 = vmul.f32 %v2619, %v2622
      %v2625 = vadd.f32 %v2623, 0.001
      %v2626 = vadd.f32 %v2624, 0.001
      %v2627 = vrsqrt.pop %v2625
      %v2628 = vmul.f32 %v2625, %v2627
      %vm2629 = vcmp.eq.f32.partialorder %v2625, inf
      %v2630 = vsel %vm2629, %v2625, %v2628
      %vm2631 = vcmp.eq.f32.partialorder %v2625, 0.0
      %v2632 = vand.u32 %v2625, 2147483648
      %v2633 = vsel %vm2631, %v2632, %v2630
      %v2634 = vrsqrt.pop %v2626
      %v2635 = vmul.f32 %v2626, %v2634
      %vm2636 = vcmp.eq.f32.partialorder %v2626, inf
      %v2637 = vsel %vm2636, %v2626, %v2635
      %vm2638 = vcmp.eq.f32.partialorder %v2626, 0.0
      %v2639 = vand.u32 %v2626, 2147483648
      %v2640 = vsel %vm2638, %v2639, %v2637
      %v2641 = vsub.f32 1.0, %v2633
      %v2642 = vsub.f32 1.0, %v2640
      %v2643 = vmul.f32 %v2641, 17.0
      %v2644 = vmul.f32 %v2642, 17.0
      %v2645 = vadd.f32 %v2643, 3.0
      %v2646 = vadd.f32 %v2644, 3.0
      %v2647 = vsub.f32 %v2618, 127.0
      %v2648 = vsub.f32 %v2619, 127.0
      %v2649 = vmul.f32 %v2647, 0.0234375
      %v2650 = vmul.f32 %v2648, 0.0234375
      %v2651 = vadd.f32 %v2649, 3.0
      %v2652 = vadd.f32 %v2650, 3.0
      %v2653 = vsel %vm2620, %v2645, %v2651
      %v2654 = vsel %vm2621, %v2646, %v2652
      %v2655 = vmul.f32 %v800, %v800
      %v2656 = vmul.f32 %v802, %v802
      %v2659 = vrot.slane %v2655, 1
      %v2660 = vrot.slane %v2656, 1
      %v2663 = vadd.f32 %v2655, %v2659
      %v2664 = vadd.f32 %v2656, %v2660
      %v2665 = vrsqrt.pop %v2663
      %v2666 = vmul.f32 %v2663, %v2665
      %vm2667 = vcmp.eq.f32.partialorder %v2663, inf
      %v2668 = vsel %vm2667, %v2663, %v2666
      %vm2669 = vcmp.eq.f32.partialorder %v2663, 0.0
      %v2670 = vand.u32 %v2663, 2147483648
      %v2671 = vsel %vm2669, %v2670, %v2668
      %v2672 = vrsqrt.pop %v2664
      %v2673 = vmul.f32 %v2664, %v2672
      %vm2674 = vcmp.eq.f32.partialorder %v2664, inf
      %v2675 = vsel %vm2674, %v2664, %v2673
      %vm2676 = vcmp.eq.f32.partialorder %v2664, 0.0
      %v2677 = vand.u32 %v2664, 2147483648
      %v2678 = vsel %vm2676, %v2677, %v2675
      %v2679 = vmax.f32 %v2671, 1e-12
      %v2680 = vmax.f32 %v2678, 1e-12
      %v2681 = vlog2.pop %v2679
      %v2682 = vmul.f32 %v2681, 0.6931472
      %v2683 = vlog2.pop %v2680
      %v2684 = vmul.f32 %v2683, 0.6931472
      %v2685 = vmul.f32 %v2682, 2.4
      %v2686 = vmul.f32 %v2684, 2.4
      %v2687 = vmul.f32 %v2685, 1.442695
      %v2688 = vpow.pop %v2687
      %v2689 = vmul.f32 %v2686, 1.442695
      %v2690 = vpow.pop %v2689
      %vm2691 = vcmp.gt.f32.partialorder %v2671, 0.0
      %vm2692 = vcmp.gt.f32.partialorder %v2678, 0.0
      %v2693 = vsel %vm2691, %v2688, 0.0
      %v2694 = vsel %vm2692, %v2690, 0.0
      %v2695 = vmul.f32 %v2693, 16.0
      %v2696 = vmul.f32 %v2694, 16.0
      %v2697 = vmul.f32 %v2671, %v2671
      %v2698 = vmul.f32 %v2678, %v2678
      %v2699 = vadd.f32 %v2697, 676.0
      %v2700 = vadd.f32 %v2698, 676.0
      %v2701 = vrcp.pop %v2699
      %v2702 = vmul.f32 %v2695, %v2701
      %v2703 = vrcp.pop %v2700
      %v2704 = vmul.f32 %v2696, %v2703
      %v2705 = vmul.f32 %v2702, 0.117
      %v2706 = vmul.f32 %v2704, 0.117
      %v2709 = vrot.slane %v2705, 1
      %v2710 = vrot.slane %v2706, 1
      %v2713 = vadd.f32 %v2653, %v2709
      %v2714 = vadd.f32 %v2654, %v2710
      %v2715 = vmin.f32 %v2653, %v2709
      %v2716 = vmin.f32 %v2654, %v2710
      %v2717 = vmul.f32 %v2715, 0.3
      %v2718 = vmul.f32 %v2716, 0.3
      %v2719 = vsub.f32 %v2713, %v2717
      %v2720 = vsub.f32 %v2714, %v2718
      %v2721 = vmul.f32 %v2719, 0.003921569
      %v2722 = vmul.f32 %v2720, 0.003921569
      %v2723 = vld [vmem:[%s398] sm:$0x77]
      %v2724 = vlaneseq
      %v2725 = vshrl.u32 %v2724, 7
      %v2726 = vsub.s32 0, %v2725
      %v2727 = vrot.slane %v2721, %v2726
      %v2728 = vlaneseq
      %v2729 = vshrl.u32 %v2728, 7
      %v2730 = vsub.s32 0, %v2729
      %v2731 = vrot.slane %v2722, %v2730
      %v2732 = vmul.f32 %v2216, %v2727
      %v2733 = vmul.f32 %v2218, %v2731
      %v2736 = vcombine.low %v2732, %v2733
      %v2738 = vadd.f32 %v2723, %v2736
      %2739 = vst [vmem:[%s410] sm:$0x77] %v2738
      %s2740 = smul.u32 2, %s22
      %p2741 = scmp.lt.s32.totalorder %s2740, 3
      %s2742 = scalar_select %p2741, %s2740, 3
      %s2743 = smul.addr %s2742, 4
      %s2744 = scalar_lea.vmem %s11, %s2743
      // Predicated region
      $region65: #{encoder_with_jnd_forward.1} parent=63 // pred_check
        %p2745 = pneg %p281
      $region66: #{encoder_with_jnd_forward.1} parent=63 // pred_check_branch
        %2747 = sbr.rel (%p2745) target = $region68
      $region67: #{encoder_with_jnd_forward.1} parent=63 // pred_region
        %s2748 = smul.u32 2, %s22
      $region68: #{encoder_with_jnd_forward.1} parent=63 // pred_fallthru
        _
    $region64: #{encoder_with_jnd_forward.1} parent=5 // pred_fallthru
      _
    %p2749 = scmp.le.s32.totalorder 2, %s17
    // Predicated region
    $region69: #{encoder_with_jnd_forward.1} parent=5 // pred_check
      %p2750 = pneg %p2749
    $region70: #{encoder_with_jnd_forward.1} parent=5 // pred_check_branch
      %2752 = sbr.rel (%p2750) target = $region72
    $region71: #{encoder_with_jnd_forward.1} parent=5 // pred_region
      %s2753 = ssub.s32 %s17, 2
      // Predicated region
      $region73: #{encoder_with_jnd_forward.1} parent=71 // pred_check
        %p2754 = pneg %p287
      $region74: #{encoder_with_jnd_forward.1} parent=71 // pred_check_branch
        %2756 = sbr.rel (%p2754) target = $region76
      $region75: #{encoder_with_jnd_forward.1} parent=71 // pred_region
        %s2757 = smul.u32 2, %s23
        %p2758 = scmp.lt.s32.totalorder %s2757, 3
        %s2759 = scalar_select %p2758, %s2757, 3
        %s2760 = smul.addr %s2759, 4
        %s2761 = scalar_lea.vmem %s11, %s2760
      $region76: #{encoder_with_jnd_forward.1} parent=71 // pred_fallthru
        _
    $region72: #{encoder_with_jnd_forward.1} parent=5 // pred_fallthru
      _
  $region6: #{encoder_with_jnd_forward.1} parent=0 // loop_footer
    %s21 = sadd.s32 1, %s17
  $region7: #{encoder_with_jnd_forward.1} parent=0 // loop_footer_branch
    %16 = sbr.rel target = $region3
  $region8: #{encoder_with_jnd_forward.1} parent=0 // loop_exit
    _

</llo_original>
